<compile_context>
chip_gen: v7x
topology: tpu7x:2x2x1
jax: 0.10.0
libtpu: 0.0.40
codegen_flags: <defaults>
</compile_context>

<pallas_src>
import jax
import jax.numpy as jnp
import numpy as np
from jax.experimental import pallas as pl
from jax.experimental.pallas import tpu as pltpu

# ----------------------------- model dimensions ------------------------------
VOCAB = 50          # vocabulary_dim (small synthetic)
VEC = 128           # vec_size / model_dim (lane friendly; torch default 300)
HEADS = 4           # num_heads (VEC % HEADS == 0; torch default 3 w/ vec 300)
DH = VEC // HEADS
LAYERS = 3          # transformer_num_layers
FFN = VEC           # ffn_dim = vec_size * 1
HIST = 5            # history_num
FINAL = VEC         # final_dim (must equal vec_size for the concat in forward)
OUTC = 8            # out_channels (torch default 50; small synthetic)
KSIZES = (2, 3, 4)  # kernel_size
MAX_K = max(KSIZES)
CPACK = len(KSIZES) * OUTC       # 24 packed conv channels (lanes 0..23)
CLASSES = 6         # class_num
META_TOK = 6        # number of meta tokens (meta_vec + history_vec -> seq of 7)
SIDE_SEQ = 7        # encoder real seq len
S_PAD = 8           # padded encoder seq len (full sublane group)
BATCH = 2
N_TOK = BATCH * S_PAD            # 16 encoder rows
STATE_LEN = 12      # statement sequence length
L_PAD = 16          # padded statement length (mult of 8, >= STATE_LEN + MAX_K-1)
C_ROWS = BATCH * L_PAD           # 32 flattened conv rows
OUT_PAD = 128       # lane-dense conv-channel / classifier width
HPAD = 8            # sublane padding for the tiny history matmuls
INDEX = (6, 0, 1, 2, 3, 4, 5)    # static reorder of the 7 side slots (6 = history)
NEG_INF = -1e9


# ---------------------------- static constants --------------------------------
def _static_consts():
    # history injection: row b*S_PAD + j receives hv row b where INDEX[j] == 6
    hinj = np.zeros((N_TOK, HPAD), np.float32)
    for b in range(BATCH):
        for j, src in enumerate(INDEX):
            if src == META_TOK:
                hinj[b * S_PAD + j, b] = 1.0
    # stacked head masks: rows h*N_TOK..(h+1)*N_TOK isolate head h's lanes
    hm = np.zeros((HEADS * N_TOK, VEC), np.float32)
    for h in range(HEADS):
        hm[h * N_TOK:(h + 1) * N_TOK, h * DH:(h + 1) * DH] = 1.0
    # additive attention score bias, tiled per head: 0 for same-batch real keys,
    # -inf for cross-batch keys and the padded key row
    ab1 = np.full((N_TOK, N_TOK), NEG_INF, np.float32)
    for b in range(BATCH):
        ab1[b * S_PAD:(b + 1) * S_PAD, b * S_PAD:b * S_PAD + SIDE_SEQ] = 0.0
    ab = np.tile(ab1, (HEADS, 1))                       # (HEADS*N_TOK, N_TOK)
    # conv validity mask: position j valid for kernel-size k iff j <= L - k
    cm = np.zeros((C_ROWS, OUT_PAD), np.float32)
    for b in range(BATCH):
        for ki, k in enumerate(KSIZES):
            cm[b * L_PAD: b * L_PAD + (STATE_LEN - k + 1),
               ki * OUTC:(ki + 1) * OUTC] = 1.0
    # -inf bias on encoder pad rows (excluded from the max-over-sequence)
    pb = np.zeros((N_TOK, VEC), np.float32)
    for b in range(BATCH):
        pb[b * S_PAD + SIDE_SEQ:(b + 1) * S_PAD, :] = NEG_INF
    return (jnp.asarray(hinj, jnp.bfloat16), jnp.asarray(hm), jnp.asarray(ab),
            jnp.asarray(cm), jnp.asarray(pb))


def positional_encoding(seq_len, dim):
    pos = np.arange(seq_len)[:, None].astype(np.float32)
    i = np.arange(dim)[None, :]
    angle = pos / np.power(10000.0, (2 * (i // 2)) / float(dim))
    pe = np.where(i % 2 == 0, np.sin(angle), np.cos(angle)).astype(np.float32)
    return jnp.asarray(pe)  # (seq_len, dim)


_HINJ, _HMST, _ABIAS, _CMASK, _PADB = _static_consts()
_PE8 = jnp.pad(positional_encoding(SIDE_SEQ, VEC),
               ((0, S_PAD - SIDE_SEQ), (0, 0)))          # (S_PAD, VEC)


# ------------------------------ kernel helpers ---------------------------------
def _mxu(a, b, *, trans_b=False):
    """MXU matmul with f32 accumulation.  `a` (activation) is cast to bf16 here;
    weights are pre-cast to bf16 at init so their cast is a trace-time no-op."""
    cdim = b.ndim - 1 if trans_b else 0
    return jax.lax.dot_general(
        a.astype(jnp.bfloat16), b.astype(jnp.bfloat16),
        dimension_numbers=(((a.ndim - 1,), (cdim,)), ((), ())),
        preferred_element_type=jnp.float32)


def _layernorm(y, g, b):
    mu = jnp.mean(y, axis=-1, keepdims=True)
    var = jnp.mean(jnp.square(y - mu), axis=-1, keepdims=True)
    return (y - mu) * jax.lax.rsqrt(var + 1e-5) * g + b


# ------------------------------ Pallas kernel ----------------------------------
def _net_kernel(stmt_ref, cwp_ref, cb_ref, cmask_ref,
                xin_ref, hist_ref, hw_ref, hb_ref, hinj_ref,
                hmst_ref, abias_ref, padb_ref,
                wqkv_ref, bqkv_ref, wo_ref, bo_ref,
                g1_ref, be1_ref, w1_ref, b1_ref, w2_ref, b2_ref,
                g2_ref, be2_ref, wcls_ref, bout_ref,
                o_ref):
    # -------- CNN branch: batched, lane-packed conv as roll-shifted matmuls ----
    xs = stmt_ref[...]                                   # (C_ROWS, VEC) f32
    acc = jnp.zeros((C_ROWS, OUT_PAD), jnp.float32)
    for t in range(MAX_K):                               # 4 shifted matmuls total
        xt = xs if t == 0 else pltpu.roll(xs, shift=C_ROWS - t, axis=0)
        acc = acc + _mxu(xt, cwp_ref[t])                 # (C_ROWS, OUT_PAD)
    y = jnp.maximum(acc + cb_ref[...], 0.0) * cmask_ref[...]    # ReLU + validity
    conv_pooled = jnp.max(y.reshape(BATCH, L_PAD, OUT_PAD), axis=1)   # (B, OUT_PAD)

    # -------- encoder input: fused history Linear injected via one matmul ------
    x = xin_ref[...]                                     # (N_TOK, VEC) f32, PE added
    hv = _mxu(hist_ref[...], hw_ref[...]) + hb_ref[...]  # (HPAD, VEC)
    x = x + _mxu(hinj_ref[...], hv)                      # history -> its seq slot

    hm = hmst_ref[...]                                   # (HEADS*N_TOK, VEC)
    ab = abias_ref[...]                                  # (HEADS*N_TOK, N_TOK)
    scale = 1.0 / float(np.sqrt(DH))
    for l in range(LAYERS):                              # static unroll: 3 layers
        # fused QKV projection, split with 128-aligned lane slices
        qkv = _mxu(x, wqkv_ref[l]) + bqkv_ref[l]         # (N_TOK, 3*VEC)
        q = qkv[:, :VEC]
        k_ = qkv[:, VEC:2 * VEC]
        v = qkv[:, 2 * VEC:]
        # all heads in one score matmul / one softmax / one ctx matmul
        q_st = jnp.concatenate([q] * HEADS, axis=0) * hm          # (H*N, VEC)
        s = _mxu(q_st, k_, trans_b=True) * scale + ab             # (H*N, N)
        s = s - jnp.max(s, axis=-1, keepdims=True)
        p = jnp.exp(s)
        p = p * pl.reciprocal(jnp.sum(p, axis=-1, keepdims=True), approx=True)
        cs = _mxu(p, v) * hm                                      # (H*N, VEC)
        ctx = cs[:N_TOK]                                          # combine heads
        for h in range(1, HEADS):
            ctx = ctx + cs[h * N_TOK:(h + 1) * N_TOK]
        attn = _mxu(ctx, wo_ref[l]) + bo_ref[l]
        yr = _layernorm(x + attn, g1_ref[l], be1_ref[l])          # residual + LN1
        f = jnp.maximum(_mxu(yr, w1_ref[l]) + b1_ref[l], 0.0)     # FFN
        f = _mxu(f, w2_ref[l]) + b2_ref[l]
        x = _layernorm(yr + f, g2_ref[l], be2_ref[l])             # residual + LN2

    # max over the 7 real positions per batch (pad rows biased to -inf)
    side_vec = jnp.max((x + padb_ref[...]).reshape(BATCH, S_PAD, VEC), axis=1)

    # -------- classifier: one matmul on lane-concatenated features --------------
    feats = jnp.concatenate([conv_pooled, side_vec], axis=-1)     # (B, 2*VEC)
    o_ref[...] = _mxu(feats, wcls_ref[...]) + bout_ref[...]       # (B, OUT_PAD)


# ------------------------------ parameter setup --------------------------------
def _nrm(key, shape, scale=0.05):
    return scale * jax.random.normal(key, shape, jnp.float32)


def init_params(key):
    """Builds kernel-ready parameters: packed / padded / bf16-cast at init so the
    per-step jit graph is just gathers + PE add + the fused kernel."""
    keys = iter(jax.random.split(key, 40))
    p = {}
    p["embedding"] = _nrm(next(keys), (VOCAB, VEC))      # word2vec_preweight

    # Linear_history, input rows padded to HPAD, weight pre-cast to bf16
    p["hist_w"] = jnp.pad(_nrm(next(keys), (HIST, FINAL)),
                          ((0, HPAD - HIST), (0, 0))).astype(jnp.bfloat16)
    p["hist_b"] = _nrm(next(keys), (1, FINAL))

    # statement convs, packed tap-major into (MAX_K, VEC, OUT_PAD):
    # block ki*OUTC..(ki+1)*OUTC of tap t holds conv{k_i} weights for t < k_i.
    # (Porting real torch Conv2d weights needs W_torch[c,0,t,d] -> w[t,d,c].)
    cw = jnp.zeros((MAX_K, VEC, OUT_PAD), jnp.float32)
    cb = jnp.zeros((1, OUT_PAD), jnp.float32)
    for ki, k in enumerate(KSIZES):
        cw = cw.at[:k, :, ki * OUTC:(ki + 1) * OUTC].set(_nrm(next(keys), (k, VEC, OUTC)))
        cb = cb.at[:, ki * OUTC:(ki + 1) * OUTC].set(_nrm(next(keys), (1, OUTC)))
    p["conv_w"] = cw.astype(jnp.bfloat16)
    p["conv_b"] = cb

    # transformer encoder layers, stacked on a leading LAYERS axis, fused QKV
    p["wqkv"] = jnp.concatenate(
        [_nrm(next(keys), (LAYERS, VEC, VEC)) for _ in range(3)], axis=-1
    ).astype(jnp.bfloat16)                               # (LAYERS, VEC, 3*VEC)
    p["bqkv"] = _nrm(next(keys), (LAYERS, 1, 3 * VEC))
    p["wo"] = _nrm(next(keys), (LAYERS, VEC, VEC)).astype(jnp.bfloat16)
    p["bo"] = _nrm(next(keys), (LAYERS, 1, VEC))
    p["g1"] = jnp.ones((LAYERS, 1, VEC), jnp.float32)
    p["be1"] = jnp.zeros((LAYERS, 1, VEC), jnp.float32)
    p["w1"] = _nrm(next(keys), (LAYERS, VEC, FFN)).astype(jnp.bfloat16)
    p["b1"] = _nrm(next(keys), (LAYERS, 1, FFN))
    p["w2"] = _nrm(next(keys), (LAYERS, FFN, VEC)).astype(jnp.bfloat16)
    p["b2"] = _nrm(next(keys), (LAYERS, 1, VEC))
    p["g2"] = jnp.ones((LAYERS, 1, VEC), jnp.float32)
    p["be2"] = jnp.zeros((LAYERS, 1, VEC), jnp.float32)

    # final classifier (3*OUTC + VEC) -> CLASSES, pre-split into the packed
    # feature layout (conv lanes 0..23 | side_vec lanes 128..255), lane-padded
    ow = _nrm(next(keys), (CPACK + VEC, CLASSES))
    wcls = jnp.zeros((2 * VEC, OUT_PAD), jnp.float32)
    wcls = wcls.at[:CPACK, :CLASSES].set(ow[:CPACK])
    wcls = wcls.at[VEC:, :CLASSES].set(ow[CPACK:])
    p["out_w"] = wcls.astype(jnp.bfloat16)
    p["out_b"] = jnp.pad(_nrm(next(keys), (1, CLASSES)),
                         ((0, 0), (0, OUT_PAD - CLASSES)))
    return p


# ------------------------------- forward pass ----------------------------------
def net_forward(params, statement, statement_len, meta, history):
    del statement_len  # unused by the reference forward
    emb = params["embedding"]

    # statement embeddings, padded to L_PAD per batch, flattened (B*L_PAD, D)
    stmt = jnp.pad(emb[statement], ((0, 0), (0, L_PAD - STATE_LEN), (0, 0)))
    stmt_flat = stmt.reshape(C_ROWS, VEC)

    # side-information assembly (static index-select + PE) — glue; the history
    # slot is left zero and injected inside the kernel after the fused Linear.
    meta_vec = emb[meta]                                 # (B, META_TOK, D)
    cols = [meta_vec[:, src, :] if src < META_TOK
            else jnp.zeros((BATCH, VEC), jnp.float32) for src in INDEX]
    side = jnp.stack(cols, axis=1)                       # (B, SIDE_SEQ, D)
    side = jnp.pad(side, ((0, 0), (0, S_PAD - SIDE_SEQ), (0, 0))) + _PE8[None]
    xin = side.reshape(N_TOK, VEC)

    hist_pad = jnp.pad(history, ((0, HPAD - BATCH), (0, HPAD - HIST)))  # (8, 8)

    args = (stmt_flat, params["conv_w"], params["conv_b"], _CMASK,
            xin, hist_pad, params["hist_w"], params["hist_b"], _HINJ,
            _HMST, _ABIAS, _PADB,
            params["wqkv"], params["bqkv"], params["wo"], params["bo"],
            params["g1"], params["be1"], params["w1"], params["b1"],
            params["w2"], params["b2"], params["g2"], params["be2"],
            params["out_w"], params["out_b"])

    in_specs = [pl.BlockSpec(a.shape, lambda i, n=a.ndim: (0,) * n) for a in args]

    logits_padded = pl.pallas_call(
        _net_kernel,
        out_shape=jax.ShapeDtypeStruct((BATCH, OUT_PAD), jnp.float32),
        grid=(1,),                                       # single fused launch
        in_specs=in_specs,
        out_specs=pl.BlockSpec((BATCH, OUT_PAD), lambda i: (0, 0)),
        compiler_params=pltpu.CompilerParams(dimension_semantics=("arbitrary",)),
    )(*args)
    return logits_padded[:, :CLASSES]


# ----------------------------------- main ---------------------------------------
if __name__ == "__main__":
    root = jax.random.PRNGKey(0)
    k_par, k_st, k_meta, k_hist = jax.random.split(root, 4)

    params = init_params(k_par)

    statement = jax.random.randint(k_st, (BATCH, STATE_LEN), 0, VOCAB, dtype=jnp.int32)
    statement_len = jnp.full((BATCH,), STATE_LEN, dtype=jnp.int32)
    meta = jax.random.randint(k_meta, (BATCH, META_TOK), 0, VOCAB, dtype=jnp.int32)
    history = jax.random.normal(k_hist, (BATCH, HIST), jnp.float32)

    fwd = jax.jit(net_forward)
    out = jax.block_until_ready(fwd(params, statement, statement_len, meta, history))
    assert out.shape == (BATCH, CLASSES) and out.dtype == jnp.float32
    assert bool(jnp.all(jnp.isfinite(out)))
    print("KERNEL_OK")
</pallas_src>

<mosaic_0001>
module attributes {stable_mosaic.version = 11 : i64} {
  func.func @_net_kernel(%arg0: i32, %arg1: memref<32x128xf32, #tpu.memory_space<vmem>>, %arg2: memref<4x128x128xbf16, #tpu.memory_space<vmem>>, %arg3: memref<1x128xf32, #tpu.memory_space<vmem>>, %arg4: memref<32x128xf32, #tpu.memory_space<vmem>>, %arg5: memref<16x128xf32, #tpu.memory_space<vmem>>, %arg6: memref<8x8xf32, #tpu.memory_space<vmem>>, %arg7: memref<8x128xbf16, #tpu.memory_space<vmem>>, %arg8: memref<1x128xf32, #tpu.memory_space<vmem>>, %arg9: memref<16x8xbf16, #tpu.memory_space<vmem>>, %arg10: memref<64x128xf32, #tpu.memory_space<vmem>>, %arg11: memref<64x16xf32, #tpu.memory_space<vmem>>, %arg12: memref<16x128xf32, #tpu.memory_space<vmem>>, %arg13: memref<3x128x384xbf16, #tpu.memory_space<vmem>>, %arg14: memref<3x1x384xf32, #tpu.memory_space<vmem>>, %arg15: memref<3x128x128xbf16, #tpu.memory_space<vmem>>, %arg16: memref<3x1x128xf32, #tpu.memory_space<vmem>>, %arg17: memref<3x1x128xf32, #tpu.memory_space<vmem>>, %arg18: memref<3x1x128xf32, #tpu.memory_space<vmem>>, %arg19: memref<3x128x128xbf16, #tpu.memory_space<vmem>>, %arg20: memref<3x1x128xf32, #tpu.memory_space<vmem>>, %arg21: memref<3x128x128xbf16, #tpu.memory_space<vmem>>, %arg22: memref<3x1x128xf32, #tpu.memory_space<vmem>>, %arg23: memref<3x1x128xf32, #tpu.memory_space<vmem>>, %arg24: memref<3x1x128xf32, #tpu.memory_space<vmem>>, %arg25: memref<256x128xbf16, #tpu.memory_space<vmem>>, %arg26: memref<1x128xf32, #tpu.memory_space<vmem>>, %arg27: memref<2x128xf32, #tpu.memory_space<vmem>>) attributes {dimension_semantics = [#tpu.dimension_semantics<arbitrary>], iteration_bounds = array<i64: 1>, scalar_prefetch = 0 : i64, scratch_operands = 0 : i64, tpu.core_type = #tpu.core_type<tc>, window_params = [{pipeline_mode = #tpu.pipeline_mode<synchronous>, transform_indices = @transform_0, window_bounds = array<i64: 32, 128>}, {pipeline_mode = #tpu.pipeline_mode<synchronous>, transform_indices = @transform_1, window_bounds = array<i64: 4, 128, 128>}, {pipeline_mode = #tpu.pipeline_mode<synchronous>, transform_indices = @transform_2, window_bounds = array<i64: 1, 128>}, {pipeline_mode = #tpu.pipeline_mode<synchronous>, transform_indices = @transform_3, window_bounds = array<i64: 32, 128>}, {pipeline_mode = #tpu.pipeline_mode<synchronous>, transform_indices = @transform_4, window_bounds = array<i64: 16, 128>}, {pipeline_mode = #tpu.pipeline_mode<synchronous>, transform_indices = @transform_5, window_bounds = array<i64: 8, 8>}, {pipeline_mode = #tpu.pipeline_mode<synchronous>, transform_indices = @transform_6, window_bounds = array<i64: 8, 128>}, {pipeline_mode = #tpu.pipeline_mode<synchronous>, transform_indices = @transform_7, window_bounds = array<i64: 1, 128>}, {pipeline_mode = #tpu.pipeline_mode<synchronous>, transform_indices = @transform_8, window_bounds = array<i64: 16, 8>}, {pipeline_mode = #tpu.pipeline_mode<synchronous>, transform_indices = @transform_9, window_bounds = array<i64: 64, 128>}, {pipeline_mode = #tpu.pipeline_mode<synchronous>, transform_indices = @transform_10, window_bounds = array<i64: 64, 16>}, {pipeline_mode = #tpu.pipeline_mode<synchronous>, transform_indices = @transform_11, window_bounds = array<i64: 16, 128>}, {pipeline_mode = #tpu.pipeline_mode<synchronous>, transform_indices = @transform_12, window_bounds = array<i64: 3, 128, 384>}, {pipeline_mode = #tpu.pipeline_mode<synchronous>, transform_indices = @transform_13, window_bounds = array<i64: 3, 1, 384>}, {pipeline_mode = #tpu.pipeline_mode<synchronous>, transform_indices = @transform_14, window_bounds = array<i64: 3, 128, 128>}, {pipeline_mode = #tpu.pipeline_mode<synchronous>, transform_indices = @transform_15, window_bounds = array<i64: 3, 1, 128>}, {pipeline_mode = #tpu.pipeline_mode<synchronous>, transform_indices = @transform_16, window_bounds = array<i64: 3, 1, 128>}, {pipeline_mode = #tpu.pipeline_mode<synchronous>, transform_indices = @transform_17, window_bounds = array<i64: 3, 1, 128>}, {pipeline_mode = #tpu.pipeline_mode<synchronous>, transform_indices = @transform_18, window_bounds = array<i64: 3, 128, 128>}, {pipeline_mode = #tpu.pipeline_mode<synchronous>, transform_indices = @transform_19, window_bounds = array<i64: 3, 1, 128>}, {pipeline_mode = #tpu.pipeline_mode<synchronous>, transform_indices = @transform_20, window_bounds = array<i64: 3, 128, 128>}, {pipeline_mode = #tpu.pipeline_mode<synchronous>, transform_indices = @transform_21, window_bounds = array<i64: 3, 1, 128>}, {pipeline_mode = #tpu.pipeline_mode<synchronous>, transform_indices = @transform_22, window_bounds = array<i64: 3, 1, 128>}, {pipeline_mode = #tpu.pipeline_mode<synchronous>, transform_indices = @transform_23, window_bounds = array<i64: 3, 1, 128>}, {pipeline_mode = #tpu.pipeline_mode<synchronous>, transform_indices = @transform_24, window_bounds = array<i64: 256, 128>}, {pipeline_mode = #tpu.pipeline_mode<synchronous>, transform_indices = @transform_25, window_bounds = array<i64: 1, 128>}, {pipeline_mode = #tpu.pipeline_mode<synchronous>, transform_indices = @transform_26, window_bounds = array<i64: 2, 128>}]} {
    %c0 = arith.constant 0 : index
    %c0_0 = arith.constant 0 : index
    %0 = vector.load %arg1[%c0, %c0_0] : memref<32x128xf32, #tpu.memory_space<vmem>>, vector<32x128xf32>
    %cst = arith.constant 0.000000e+00 : f32
    %1 = vector.broadcast %cst : f32 to vector<32x128xf32>
    %c0_1 = arith.constant 0 : index
    %c0_2 = arith.constant 0 : index
    %c0_3 = arith.constant 0 : index
    %2 = vector.load %arg2[%c0_1, %c0_2, %c0_3] : memref<4x128x128xbf16, #tpu.memory_space<vmem>>, vector<1x128x128xbf16>
    %3 = vector.shape_cast %2 : vector<1x128x128xbf16> to vector<128x128xbf16>
    %4 = arith.truncf %0 : vector<32x128xf32> to vector<32x128xbf16>
    %cst_4 = arith.constant dense<0.000000e+00> : vector<32x128xf32>
    %5 = tpu.matmul %4, %3, %cst_4 {dimension_numbers = #tpu.dot_dimension_numbers<[1], [0], [0], [1], [0, 0, 1, 1], [], []>} : vector<32x128xbf16>, vector<128x128xbf16>, vector<32x128xf32> -> vector<32x128xf32>
    %6 = arith.addf %1, %5 : vector<32x128xf32>
    %c31_i32 = arith.constant 31 : i32
    %7 = tpu.dynamic_rotate %0 by %c31_i32 dim 0 : vector<32x128xf32>, i32 -> vector<32x128xf32>
    %c1 = arith.constant 1 : index
    %c0_5 = arith.constant 0 : index
    %c0_6 = arith.constant 0 : index
    %8 = vector.load %arg2[%c1, %c0_5, %c0_6] : memref<4x128x128xbf16, #tpu.memory_space<vmem>>, vector<1x128x128xbf16>
    %9 = vector.shape_cast %8 : vector<1x128x128xbf16> to vector<128x128xbf16>
    %10 = arith.truncf %7 : vector<32x128xf32> to vector<32x128xbf16>
    %cst_7 = arith.constant dense<0.000000e+00> : vector<32x128xf32>
    %11 = tpu.matmul %10, %9, %cst_7 {dimension_numbers = #tpu.dot_dimension_numbers<[1], [0], [0], [1], [0, 0, 1, 1], [], []>} : vector<32x128xbf16>, vector<128x128xbf16>, vector<32x128xf32> -> vector<32x128xf32>
    %12 = arith.addf %6, %11 : vector<32x128xf32>
    %c30_i32 = arith.constant 30 : i32
    %13 = tpu.dynamic_rotate %0 by %c30_i32 dim 0 : vector<32x128xf32>, i32 -> vector<32x128xf32>
    %c2 = arith.constant 2 : index
    %c0_8 = arith.constant 0 : index
    %c0_9 = arith.constant 0 : index
    %14 = vector.load %arg2[%c2, %c0_8, %c0_9] : memref<4x128x128xbf16, #tpu.memory_space<vmem>>, vector<1x128x128xbf16>
    %15 = vector.shape_cast %14 : vector<1x128x128xbf16> to vector<128x128xbf16>
    %16 = arith.truncf %13 : vector<32x128xf32> to vector<32x128xbf16>
    %cst_10 = arith.constant dense<0.000000e+00> : vector<32x128xf32>
    %17 = tpu.matmul %16, %15, %cst_10 {dimension_numbers = #tpu.dot_dimension_numbers<[1], [0], [0], [1], [0, 0, 1, 1], [], []>} : vector<32x128xbf16>, vector<128x128xbf16>, vector<32x128xf32> -> vector<32x128xf32>
    %18 = arith.addf %12, %17 : vector<32x128xf32>
    %c29_i32 = arith.constant 29 : i32
    %19 = tpu.dynamic_rotate %0 by %c29_i32 dim 0 : vector<32x128xf32>, i32 -> vector<32x128xf32>
    %c3 = arith.constant 3 : index
    %c0_11 = arith.constant 0 : index
    %c0_12 = arith.constant 0 : index
    %20 = vector.load %arg2[%c3, %c0_11, %c0_12] : memref<4x128x128xbf16, #tpu.memory_space<vmem>>, vector<1x128x128xbf16>
    %21 = vector.shape_cast %20 : vector<1x128x128xbf16> to vector<128x128xbf16>
    %22 = arith.truncf %19 : vector<32x128xf32> to vector<32x128xbf16>
    %cst_13 = arith.constant dense<0.000000e+00> : vector<32x128xf32>
    %23 = tpu.matmul %22, %21, %cst_13 {dimension_numbers = #tpu.dot_dimension_numbers<[1], [0], [0], [1], [0, 0, 1, 1], [], []>} : vector<32x128xbf16>, vector<128x128xbf16>, vector<32x128xf32> -> vector<32x128xf32>
    %24 = arith.addf %18, %23 : vector<32x128xf32>
    %c0_14 = arith.constant 0 : index
    %c0_15 = arith.constant 0 : index
    %25 = vector.load %arg3[%c0_14, %c0_15] : memref<1x128xf32, #tpu.memory_space<vmem>>, vector<1x128xf32>
    %26 = vector.broadcast %25 : vector<1x128xf32> to vector<32x128xf32>
    %27 = arith.addf %24, %26 : vector<32x128xf32>
    %cst_16 = arith.constant 0.000000e+00 : f32
    %28 = vector.broadcast %cst_16 : f32 to vector<32x128xf32>
    %29 = arith.maximumf %27, %28 : vector<32x128xf32>
    %c0_17 = arith.constant 0 : index
    %c0_18 = arith.constant 0 : index
    %30 = vector.load %arg4[%c0_17, %c0_18] : memref<32x128xf32, #tpu.memory_space<vmem>>, vector<32x128xf32>
    %31 = arith.mulf %29, %30 : vector<32x128xf32>
    %32 = vector.shape_cast %31 : vector<32x128xf32> to vector<2x16x128xf32>
    %cst_19 = arith.constant dense<0xFF800000> : vector<2x128xf32>
    %33 = vector.multi_reduction <maximumf>, %32, %cst_19 [1] : vector<2x16x128xf32> to vector<2x128xf32>
    %c0_20 = arith.constant 0 : index
    %c0_21 = arith.constant 0 : index
    %34 = vector.load %arg5[%c0_20, %c0_21] : memref<16x128xf32, #tpu.memory_space<vmem>>, vector<16x128xf32>
    %c0_22 = arith.constant 0 : index
    %c0_23 = arith.constant 0 : index
    %35 = vector.load %arg6[%c0_22, %c0_23] : memref<8x8xf32, #tpu.memory_space<vmem>>, vector<8x8xf32>
    %c0_24 = arith.constant 0 : index
    %c0_25 = arith.constant 0 : index
    %36 = vector.load %arg7[%c0_24, %c0_25] : memref<8x128xbf16, #tpu.memory_space<vmem>>, vector<8x128xbf16>
    %37 = arith.truncf %35 : vector<8x8xf32> to vector<8x8xbf16>
    %cst_26 = arith.constant dense<0.000000e+00> : vector<8x128xf32>
    %38 = tpu.matmul %37, %36, %cst_26 {dimension_numbers = #tpu.dot_dimension_numbers<[1], [0], [0], [1], [0, 0, 1, 1], [], []>} : vector<8x8xbf16>, vector<8x128xbf16>, vector<8x128xf32> -> vector<8x128xf32>
    %c0_27 = arith.constant 0 : index
    %c0_28 = arith.constant 0 : index
    %39 = vector.load %arg8[%c0_27, %c0_28] : memref<1x128xf32, #tpu.memory_space<vmem>>, vector<1x128xf32>
    %40 = vector.broadcast %39 : vector<1x128xf32> to vector<8x128xf32>
    %41 = arith.addf %38, %40 : vector<8x128xf32>
    %c0_29 = arith.constant 0 : index
    %c0_30 = arith.constant 0 : index
    %42 = vector.load %arg9[%c0_29, %c0_30] : memref<16x8xbf16, #tpu.memory_space<vmem>>, vector<16x8xbf16>
    %43 = arith.truncf %41 : vector<8x128xf32> to vector<8x128xbf16>
    %cst_31 = arith.constant dense<0.000000e+00> : vector<16x128xf32>
    %44 = tpu.matmul %42, %43, %cst_31 {dimension_numbers = #tpu.dot_dimension_numbers<[1], [0], [0], [1], [0, 0, 1, 1], [], []>} : vector<16x8xbf16>, vector<8x128xbf16>, vector<16x128xf32> -> vector<16x128xf32>
    %45 = arith.addf %34, %44 : vector<16x128xf32>
    %c0_32 = arith.constant 0 : index
    %c0_33 = arith.constant 0 : index
    %46 = vector.load %arg10[%c0_32, %c0_33] : memref<64x128xf32, #tpu.memory_space<vmem>>, vector<64x128xf32>
    %c0_34 = arith.constant 0 : index
    %c0_35 = arith.constant 0 : index
    %47 = vector.load %arg11[%c0_34, %c0_35] : memref<64x16xf32, #tpu.memory_space<vmem>>, vector<64x16xf32>
    %c0_36 = arith.constant 0 : index
    %c0_37 = arith.constant 0 : index
    %c0_38 = arith.constant 0 : index
    %48 = vector.load %arg13[%c0_36, %c0_37, %c0_38] : memref<3x128x384xbf16, #tpu.memory_space<vmem>>, vector<1x128x384xbf16>
    %49 = vector.shape_cast %48 : vector<1x128x384xbf16> to vector<128x384xbf16>
    %50 = arith.truncf %45 : vector<16x128xf32> to vector<16x128xbf16>
    %cst_39 = arith.constant dense<0.000000e+00> : vector<16x384xf32>
    %51 = tpu.matmul %50, %49, %cst_39 {dimension_numbers = #tpu.dot_dimension_numbers<[1], [0], [0], [1], [0, 0, 1, 1], [], []>} : vector<16x128xbf16>, vector<128x384xbf16>, vector<16x384xf32> -> vector<16x384xf32>
    %c0_40 = arith.constant 0 : index
    %c0_41 = arith.constant 0 : index
    %c0_42 = arith.constant 0 : index
    %52 = vector.load %arg14[%c0_40, %c0_41, %c0_42] : memref<3x1x384xf32, #tpu.memory_space<vmem>>, vector<1x1x384xf32>
    %53 = vector.shape_cast %52 : vector<1x1x384xf32> to vector<1x384xf32>
    %54 = vector.broadcast %53 : vector<1x384xf32> to vector<16x384xf32>
    %55 = arith.addf %51, %54 : vector<16x384xf32>
    %56 = vector.extract_strided_slice %55 {offsets = [0, 0], sizes = [16, 128], strides = [1, 1]} : vector<16x384xf32> to vector<16x128xf32>
    %57 = vector.extract_strided_slice %55 {offsets = [0, 128], sizes = [16, 128], strides = [1, 1]} : vector<16x384xf32> to vector<16x128xf32>
    %58 = vector.extract_strided_slice %55 {offsets = [0, 256], sizes = [16, 128], strides = [1, 1]} : vector<16x384xf32> to vector<16x128xf32>
    %59 = tpu.concatenate %56, %56, %56, %56 in 0 : vector<16x128xf32>, vector<16x128xf32>, vector<16x128xf32>, vector<16x128xf32> -> vector<64x128xf32>
    %60 = arith.mulf %59, %46 : vector<64x128xf32>
    %61 = arith.truncf %60 : vector<64x128xf32> to vector<64x128xbf16>
    %62 = arith.truncf %57 : vector<16x128xf32> to vector<16x128xbf16>
    %cst_43 = arith.constant dense<0.000000e+00> : vector<64x16xf32>
    %63 = tpu.matmul %61, %62, %cst_43 {dimension_numbers = #tpu.dot_dimension_numbers<[1], [1], [0], [0], [0, 0, 1, 0], [], []>} : vector<64x128xbf16>, vector<16x128xbf16>, vector<64x16xf32> -> vector<64x16xf32>
    %cst_44 = arith.constant 0.176776692 : f32
    %64 = vector.broadcast %cst_44 : f32 to vector<64x16xf32>
    %65 = arith.mulf %63, %64 : vector<64x16xf32>
    %66 = arith.addf %65, %47 : vector<64x16xf32>
    %cst_45 = arith.constant dense<0xFF800000> : vector<64xf32>
    %67 = vector.multi_reduction <maximumf>, %66, %cst_45 [1] : vector<64x16xf32> to vector<64xf32>
    %68 = vector.shape_cast %67 : vector<64xf32> to vector<64x1xf32>
    %69 = vector.broadcast %68 : vector<64x1xf32> to vector<64x16xf32>
    %70 = arith.subf %66, %69 : vector<64x16xf32>
    %71 = math.exp %70 : vector<64x16xf32>
    %cst_46 = arith.constant dense<0.000000e+00> : vector<64xf32>
    %72 = vector.multi_reduction <add>, %71, %cst_46 [1] : vector<64x16xf32> to vector<64xf32>
    %73 = vector.shape_cast %72 : vector<64xf32> to vector<64x1xf32>
    %74 = tpu.reciprocal %73 {approx = true} : vector<64x1xf32> -> vector<64x1xf32>
    %75 = vector.broadcast %74 : vector<64x1xf32> to vector<64x16xf32>
    %76 = arith.mulf %71, %75 : vector<64x16xf32>
    %77 = arith.truncf %76 : vector<64x16xf32> to vector<64x16xbf16>
    %78 = arith.truncf %58 : vector<16x128xf32> to vector<16x128xbf16>
    %cst_47 = arith.constant dense<0.000000e+00> : vector<64x128xf32>
    %79 = tpu.matmul %77, %78, %cst_47 {dimension_numbers = #tpu.dot_dimension_numbers<[1], [0], [0], [1], [0, 0, 1, 1], [], []>} : vector<64x16xbf16>, vector<16x128xbf16>, vector<64x128xf32> -> vector<64x128xf32>
    %80 = arith.mulf %79, %46 : vector<64x128xf32>
    %81 = vector.extract_strided_slice %80 {offsets = [0, 0], sizes = [16, 128], strides = [1, 1]} : vector<64x128xf32> to vector<16x128xf32>
    %82 = vector.extract_strided_slice %80 {offsets = [16, 0], sizes = [16, 128], strides = [1, 1]} : vector<64x128xf32> to vector<16x128xf32>
    %83 = arith.addf %81, %82 : vector<16x128xf32>
    %84 = vector.extract_strided_slice %80 {offsets = [32, 0], sizes = [16, 128], strides = [1, 1]} : vector<64x128xf32> to vector<16x128xf32>
    %85 = arith.addf %83, %84 : vector<16x128xf32>
    %86 = vector.extract_strided_slice %80 {offsets = [48, 0], sizes = [16, 128], strides = [1, 1]} : vector<64x128xf32> to vector<16x128xf32>
    %87 = arith.addf %85, %86 : vector<16x128xf32>
    %c0_48 = arith.constant 0 : index
    %c0_49 = arith.constant 0 : index
    %c0_50 = arith.constant 0 : index
    %88 = vector.load %arg15[%c0_48, %c0_49, %c0_50] : memref<3x128x128xbf16, #tpu.memory_space<vmem>>, vector<1x128x128xbf16>
    %89 = vector.shape_cast %88 : vector<1x128x128xbf16> to vector<128x128xbf16>
    %90 = arith.truncf %87 : vector<16x128xf32> to vector<16x128xbf16>
    %cst_51 = arith.constant dense<0.000000e+00> : vector<16x128xf32>
    %91 = tpu.matmul %90, %89, %cst_51 {dimension_numbers = #tpu.dot_dimension_numbers<[1], [0], [0], [1], [0, 0, 1, 1], [], []>} : vector<16x128xbf16>, vector<128x128xbf16>, vector<16x128xf32> -> vector<16x128xf32>
    %c0_52 = arith.constant 0 : index
    %c0_53 = arith.constant 0 : index
    %c0_54 = arith.constant 0 : index
    %92 = vector.load %arg16[%c0_52, %c0_53, %c0_54] : memref<3x1x128xf32, #tpu.memory_space<vmem>>, vector<1x1x128xf32>
    %93 = vector.shape_cast %92 : vector<1x1x128xf32> to vector<1x128xf32>
    %94 = vector.broadcast %93 : vector<1x128xf32> to vector<16x128xf32>
    %95 = arith.addf %91, %94 : vector<16x128xf32>
    %96 = arith.addf %45, %95 : vector<16x128xf32>
    %c0_55 = arith.constant 0 : index
    %c0_56 = arith.constant 0 : index
    %c0_57 = arith.constant 0 : index
    %97 = vector.load %arg17[%c0_55, %c0_56, %c0_57] : memref<3x1x128xf32, #tpu.memory_space<vmem>>, vector<1x1x128xf32>
    %98 = vector.shape_cast %97 : vector<1x1x128xf32> to vector<1x128xf32>
    %c0_58 = arith.constant 0 : index
    %c0_59 = arith.constant 0 : index
    %c0_60 = arith.constant 0 : index
    %99 = vector.load %arg18[%c0_58, %c0_59, %c0_60] : memref<3x1x128xf32, #tpu.memory_space<vmem>>, vector<1x1x128xf32>
    %100 = vector.shape_cast %99 : vector<1x1x128xf32> to vector<1x128xf32>
    %cst_61 = arith.constant dense<0.000000e+00> : vector<16xf32>
    %101 = vector.multi_reduction <add>, %96, %cst_61 [1] : vector<16x128xf32> to vector<16xf32>
    %102 = vector.shape_cast %101 : vector<16xf32> to vector<16x1xf32>
    %cst_62 = arith.constant 1.280000e+02 : f32
    %103 = vector.broadcast %cst_62 : f32 to vector<16x1xf32>
    %104 = arith.divf %102, %103 : vector<16x1xf32>
    %105 = vector.broadcast %104 : vector<16x1xf32> to vector<16x128xf32>
    %106 = arith.subf %96, %105 : vector<16x128xf32>
    %107 = arith.mulf %106, %106 : vector<16x128xf32>
    %cst_63 = arith.constant dense<0.000000e+00> : vector<16xf32>
    %108 = vector.multi_reduction <add>, %107, %cst_63 [1] : vector<16x128xf32> to vector<16xf32>
    %109 = vector.shape_cast %108 : vector<16xf32> to vector<16x1xf32>
    %cst_64 = arith.constant 1.280000e+02 : f32
    %110 = vector.broadcast %cst_64 : f32 to vector<16x1xf32>
    %111 = arith.divf %109, %110 : vector<16x1xf32>
    %112 = vector.broadcast %104 : vector<16x1xf32> to vector<16x128xf32>
    %113 = arith.subf %96, %112 : vector<16x128xf32>
    %cst_65 = arith.constant 9.99999974E-6 : f32
    %114 = vector.broadcast %cst_65 : f32 to vector<16x1xf32>
    %115 = arith.addf %111, %114 : vector<16x1xf32>
    %116 = math.rsqrt %115 : vector<16x1xf32>
    %117 = vector.broadcast %116 : vector<16x1xf32> to vector<16x128xf32>
    %118 = arith.mulf %113, %117 : vector<16x128xf32>
    %119 = vector.broadcast %98 : vector<1x128xf32> to vector<16x128xf32>
    %120 = arith.mulf %118, %119 : vector<16x128xf32>
    %121 = vector.broadcast %100 : vector<1x128xf32> to vector<16x128xf32>
    %122 = arith.addf %120, %121 : vector<16x128xf32>
    %c0_66 = arith.constant 0 : index
    %c0_67 = arith.constant 0 : index
    %c0_68 = arith.constant 0 : index
    %123 = vector.load %arg19[%c0_66, %c0_67, %c0_68] : memref<3x128x128xbf16, #tpu.memory_space<vmem>>, vector<1x128x128xbf16>
    %124 = vector.shape_cast %123 : vector<1x128x128xbf16> to vector<128x128xbf16>
    %125 = arith.truncf %122 : vector<16x128xf32> to vector<16x128xbf16>
    %cst_69 = arith.constant dense<0.000000e+00> : vector<16x128xf32>
    %126 = tpu.matmul %125, %124, %cst_69 {dimension_numbers = #tpu.dot_dimension_numbers<[1], [0], [0], [1], [0, 0, 1, 1], [], []>} : vector<16x128xbf16>, vector<128x128xbf16>, vector<16x128xf32> -> vector<16x128xf32>
    %c0_70 = arith.constant 0 : index
    %c0_71 = arith.constant 0 : index
    %c0_72 = arith.constant 0 : index
    %127 = vector.load %arg20[%c0_70, %c0_71, %c0_72] : memref<3x1x128xf32, #tpu.memory_space<vmem>>, vector<1x1x128xf32>
    %128 = vector.shape_cast %127 : vector<1x1x128xf32> to vector<1x128xf32>
    %129 = vector.broadcast %128 : vector<1x128xf32> to vector<16x128xf32>
    %130 = arith.addf %126, %129 : vector<16x128xf32>
    %cst_73 = arith.constant 0.000000e+00 : f32
    %131 = vector.broadcast %cst_73 : f32 to vector<16x128xf32>
    %132 = arith.maximumf %130, %131 : vector<16x128xf32>
    %c0_74 = arith.constant 0 : index
    %c0_75 = arith.constant 0 : index
    %c0_76 = arith.constant 0 : index
    %133 = vector.load %arg21[%c0_74, %c0_75, %c0_76] : memref<3x128x128xbf16, #tpu.memory_space<vmem>>, vector<1x128x128xbf16>
    %134 = vector.shape_cast %133 : vector<1x128x128xbf16> to vector<128x128xbf16>
    %135 = arith.truncf %132 : vector<16x128xf32> to vector<16x128xbf16>
    %cst_77 = arith.constant dense<0.000000e+00> : vector<16x128xf32>
    %136 = tpu.matmul %135, %134, %cst_77 {dimension_numbers = #tpu.dot_dimension_numbers<[1], [0], [0], [1], [0, 0, 1, 1], [], []>} : vector<16x128xbf16>, vector<128x128xbf16>, vector<16x128xf32> -> vector<16x128xf32>
    %c0_78 = arith.constant 0 : index
    %c0_79 = arith.constant 0 : index
    %c0_80 = arith.constant 0 : index
    %137 = vector.load %arg22[%c0_78, %c0_79, %c0_80] : memref<3x1x128xf32, #tpu.memory_space<vmem>>, vector<1x1x128xf32>
    %138 = vector.shape_cast %137 : vector<1x1x128xf32> to vector<1x128xf32>
    %139 = vector.broadcast %138 : vector<1x128xf32> to vector<16x128xf32>
    %140 = arith.addf %136, %139 : vector<16x128xf32>
    %141 = arith.addf %122, %140 : vector<16x128xf32>
    %c0_81 = arith.constant 0 : index
    %c0_82 = arith.constant 0 : index
    %c0_83 = arith.constant 0 : index
    %142 = vector.load %arg23[%c0_81, %c0_82, %c0_83] : memref<3x1x128xf32, #tpu.memory_space<vmem>>, vector<1x1x128xf32>
    %143 = vector.shape_cast %142 : vector<1x1x128xf32> to vector<1x128xf32>
    %c0_84 = arith.constant 0 : index
    %c0_85 = arith.constant 0 : index
    %c0_86 = arith.constant 0 : index
    %144 = vector.load %arg24[%c0_84, %c0_85, %c0_86] : memref<3x1x128xf32, #tpu.memory_space<vmem>>, vector<1x1x128xf32>
    %145 = vector.shape_cast %144 : vector<1x1x128xf32> to vector<1x128xf32>
    %cst_87 = arith.constant dense<0.000000e+00> : vector<16xf32>
    %146 = vector.multi_reduction <add>, %141, %cst_87 [1] : vector<16x128xf32> to vector<16xf32>
    %147 = vector.shape_cast %146 : vector<16xf32> to vector<16x1xf32>
    %cst_88 = arith.constant 1.280000e+02 : f32
    %148 = vector.broadcast %cst_88 : f32 to vector<16x1xf32>
    %149 = arith.divf %147, %148 : vector<16x1xf32>
    %150 = vector.broadcast %149 : vector<16x1xf32> to vector<16x128xf32>
    %151 = arith.subf %141, %150 : vector<16x128xf32>
    %152 = arith.mulf %151, %151 : vector<16x128xf32>
    %cst_89 = arith.constant dense<0.000000e+00> : vector<16xf32>
    %153 = vector.multi_reduction <add>, %152, %cst_89 [1] : vector<16x128xf32> to vector<16xf32>
    %154 = vector.shape_cast %153 : vector<16xf32> to vector<16x1xf32>
    %cst_90 = arith.constant 1.280000e+02 : f32
    %155 = vector.broadcast %cst_90 : f32 to vector<16x1xf32>
    %156 = arith.divf %154, %155 : vector<16x1xf32>
    %157 = vector.broadcast %149 : vector<16x1xf32> to vector<16x128xf32>
    %158 = arith.subf %141, %157 : vector<16x128xf32>
    %cst_91 = arith.constant 9.99999974E-6 : f32
    %159 = vector.broadcast %cst_91 : f32 to vector<16x1xf32>
    %160 = arith.addf %156, %159 : vector<16x1xf32>
    %161 = math.rsqrt %160 : vector<16x1xf32>
    %162 = vector.broadcast %161 : vector<16x1xf32> to vector<16x128xf32>
    %163 = arith.mulf %158, %162 : vector<16x128xf32>
    %164 = vector.broadcast %143 : vector<1x128xf32> to vector<16x128xf32>
    %165 = arith.mulf %163, %164 : vector<16x128xf32>
    %166 = vector.broadcast %145 : vector<1x128xf32> to vector<16x128xf32>
    %167 = arith.addf %165, %166 : vector<16x128xf32>
    %c1_92 = arith.constant 1 : index
    %c0_93 = arith.constant 0 : index
    %c0_94 = arith.constant 0 : index
    %168 = vector.load %arg13[%c1_92, %c0_93, %c0_94] : memref<3x128x384xbf16, #tpu.memory_space<vmem>>, vector<1x128x384xbf16>
    %169 = vector.shape_cast %168 : vector<1x128x384xbf16> to vector<128x384xbf16>
    %170 = arith.truncf %167 : vector<16x128xf32> to vector<16x128xbf16>
    %cst_95 = arith.constant dense<0.000000e+00> : vector<16x384xf32>
    %171 = tpu.matmul %170, %169, %cst_95 {dimension_numbers = #tpu.dot_dimension_numbers<[1], [0], [0], [1], [0, 0, 1, 1], [], []>} : vector<16x128xbf16>, vector<128x384xbf16>, vector<16x384xf32> -> vector<16x384xf32>
    %c1_96 = arith.constant 1 : index
    %c0_97 = arith.constant 0 : index
    %c0_98 = arith.constant 0 : index
    %172 = vector.load %arg14[%c1_96, %c0_97, %c0_98] : memref<3x1x384xf32, #tpu.memory_space<vmem>>, vector<1x1x384xf32>
    %173 = vector.shape_cast %172 : vector<1x1x384xf32> to vector<1x384xf32>
    %174 = vector.broadcast %173 : vector<1x384xf32> to vector<16x384xf32>
    %175 = arith.addf %171, %174 : vector<16x384xf32>
    %176 = vector.extract_strided_slice %175 {offsets = [0, 0], sizes = [16, 128], strides = [1, 1]} : vector<16x384xf32> to vector<16x128xf32>
    %177 = vector.extract_strided_slice %175 {offsets = [0, 128], sizes = [16, 128], strides = [1, 1]} : vector<16x384xf32> to vector<16x128xf32>
    %178 = vector.extract_strided_slice %175 {offsets = [0, 256], sizes = [16, 128], strides = [1, 1]} : vector<16x384xf32> to vector<16x128xf32>
    %179 = tpu.concatenate %176, %176, %176, %176 in 0 : vector<16x128xf32>, vector<16x128xf32>, vector<16x128xf32>, vector<16x128xf32> -> vector<64x128xf32>
    %180 = arith.mulf %179, %46 : vector<64x128xf32>
    %181 = arith.truncf %180 : vector<64x128xf32> to vector<64x128xbf16>
    %182 = arith.truncf %177 : vector<16x128xf32> to vector<16x128xbf16>
    %cst_99 = arith.constant dense<0.000000e+00> : vector<64x16xf32>
    %183 = tpu.matmul %181, %182, %cst_99 {dimension_numbers = #tpu.dot_dimension_numbers<[1], [1], [0], [0], [0, 0, 1, 0], [], []>} : vector<64x128xbf16>, vector<16x128xbf16>, vector<64x16xf32> -> vector<64x16xf32>
    %cst_100 = arith.constant 0.176776692 : f32
    %184 = vector.broadcast %cst_100 : f32 to vector<64x16xf32>
    %185 = arith.mulf %183, %184 : vector<64x16xf32>
    %186 = arith.addf %185, %47 : vector<64x16xf32>
    %cst_101 = arith.constant dense<0xFF800000> : vector<64xf32>
    %187 = vector.multi_reduction <maximumf>, %186, %cst_101 [1] : vector<64x16xf32> to vector<64xf32>
    %188 = vector.shape_cast %187 : vector<64xf32> to vector<64x1xf32>
    %189 = vector.broadcast %188 : vector<64x1xf32> to vector<64x16xf32>
    %190 = arith.subf %186, %189 : vector<64x16xf32>
    %191 = math.exp %190 : vector<64x16xf32>
    %cst_102 = arith.constant dense<0.000000e+00> : vector<64xf32>
    %192 = vector.multi_reduction <add>, %191, %cst_102 [1] : vector<64x16xf32> to vector<64xf32>
    %193 = vector.shape_cast %192 : vector<64xf32> to vector<64x1xf32>
    %194 = tpu.reciprocal %193 {approx = true} : vector<64x1xf32> -> vector<64x1xf32>
    %195 = vector.broadcast %194 : vector<64x1xf32> to vector<64x16xf32>
    %196 = arith.mulf %191, %195 : vector<64x16xf32>
    %197 = arith.truncf %196 : vector<64x16xf32> to vector<64x16xbf16>
    %198 = arith.truncf %178 : vector<16x128xf32> to vector<16x128xbf16>
    %cst_103 = arith.constant dense<0.000000e+00> : vector<64x128xf32>
    %199 = tpu.matmul %197, %198, %cst_103 {dimension_numbers = #tpu.dot_dimension_numbers<[1], [0], [0], [1], [0, 0, 1, 1], [], []>} : vector<64x16xbf16>, vector<16x128xbf16>, vector<64x128xf32> -> vector<64x128xf32>
    %200 = arith.mulf %199, %46 : vector<64x128xf32>
    %201 = vector.extract_strided_slice %200 {offsets = [0, 0], sizes = [16, 128], strides = [1, 1]} : vector<64x128xf32> to vector<16x128xf32>
    %202 = vector.extract_strided_slice %200 {offsets = [16, 0], sizes = [16, 128], strides = [1, 1]} : vector<64x128xf32> to vector<16x128xf32>
    %203 = arith.addf %201, %202 : vector<16x128xf32>
    %204 = vector.extract_strided_slice %200 {offsets = [32, 0], sizes = [16, 128], strides = [1, 1]} : vector<64x128xf32> to vector<16x128xf32>
    %205 = arith.addf %203, %204 : vector<16x128xf32>
    %206 = vector.extract_strided_slice %200 {offsets = [48, 0], sizes = [16, 128], strides = [1, 1]} : vector<64x128xf32> to vector<16x128xf32>
    %207 = arith.addf %205, %206 : vector<16x128xf32>
    %c1_104 = arith.constant 1 : index
    %c0_105 = arith.constant 0 : index
    %c0_106 = arith.constant 0 : index
    %208 = vector.load %arg15[%c1_104, %c0_105, %c0_106] : memref<3x128x128xbf16, #tpu.memory_space<vmem>>, vector<1x128x128xbf16>
    %209 = vector.shape_cast %208 : vector<1x128x128xbf16> to vector<128x128xbf16>
    %210 = arith.truncf %207 : vector<16x128xf32> to vector<16x128xbf16>
    %cst_107 = arith.constant dense<0.000000e+00> : vector<16x128xf32>
    %211 = tpu.matmul %210, %209, %cst_107 {dimension_numbers = #tpu.dot_dimension_numbers<[1], [0], [0], [1], [0, 0, 1, 1], [], []>} : vector<16x128xbf16>, vector<128x128xbf16>, vector<16x128xf32> -> vector<16x128xf32>
    %c1_108 = arith.constant 1 : index
    %c0_109 = arith.constant 0 : index
    %c0_110 = arith.constant 0 : index
    %212 = vector.load %arg16[%c1_108, %c0_109, %c0_110] : memref<3x1x128xf32, #tpu.memory_space<vmem>>, vector<1x1x128xf32>
    %213 = vector.shape_cast %212 : vector<1x1x128xf32> to vector<1x128xf32>
    %214 = vector.broadcast %213 : vector<1x128xf32> to vector<16x128xf32>
    %215 = arith.addf %211, %214 : vector<16x128xf32>
    %216 = arith.addf %167, %215 : vector<16x128xf32>
    %c1_111 = arith.constant 1 : index
    %c0_112 = arith.constant 0 : index
    %c0_113 = arith.constant 0 : index
    %217 = vector.load %arg17[%c1_111, %c0_112, %c0_113] : memref<3x1x128xf32, #tpu.memory_space<vmem>>, vector<1x1x128xf32>
    %218 = vector.shape_cast %217 : vector<1x1x128xf32> to vector<1x128xf32>
    %c1_114 = arith.constant 1 : index
    %c0_115 = arith.constant 0 : index
    %c0_116 = arith.constant 0 : index
    %219 = vector.load %arg18[%c1_114, %c0_115, %c0_116] : memref<3x1x128xf32, #tpu.memory_space<vmem>>, vector<1x1x128xf32>
    %220 = vector.shape_cast %219 : vector<1x1x128xf32> to vector<1x128xf32>
    %cst_117 = arith.constant dense<0.000000e+00> : vector<16xf32>
    %221 = vector.multi_reduction <add>, %216, %cst_117 [1] : vector<16x128xf32> to vector<16xf32>
    %222 = vector.shape_cast %221 : vector<16xf32> to vector<16x1xf32>
    %cst_118 = arith.constant 1.280000e+02 : f32
    %223 = vector.broadcast %cst_118 : f32 to vector<16x1xf32>
    %224 = arith.divf %222, %223 : vector<16x1xf32>
    %225 = vector.broadcast %224 : vector<16x1xf32> to vector<16x128xf32>
    %226 = arith.subf %216, %225 : vector<16x128xf32>
    %227 = arith.mulf %226, %226 : vector<16x128xf32>
    %cst_119 = arith.constant dense<0.000000e+00> : vector<16xf32>
    %228 = vector.multi_reduction <add>, %227, %cst_119 [1] : vector<16x128xf32> to vector<16xf32>
    %229 = vector.shape_cast %228 : vector<16xf32> to vector<16x1xf32>
    %cst_120 = arith.constant 1.280000e+02 : f32
    %230 = vector.broadcast %cst_120 : f32 to vector<16x1xf32>
    %231 = arith.divf %229, %230 : vector<16x1xf32>
    %232 = vector.broadcast %224 : vector<16x1xf32> to vector<16x128xf32>
    %233 = arith.subf %216, %232 : vector<16x128xf32>
    %cst_121 = arith.constant 9.99999974E-6 : f32
    %234 = vector.broadcast %cst_121 : f32 to vector<16x1xf32>
    %235 = arith.addf %231, %234 : vector<16x1xf32>
    %236 = math.rsqrt %235 : vector<16x1xf32>
    %237 = vector.broadcast %236 : vector<16x1xf32> to vector<16x128xf32>
    %238 = arith.mulf %233, %237 : vector<16x128xf32>
    %239 = vector.broadcast %218 : vector<1x128xf32> to vector<16x128xf32>
    %240 = arith.mulf %238, %239 : vector<16x128xf32>
    %241 = vector.broadcast %220 : vector<1x128xf32> to vector<16x128xf32>
    %242 = arith.addf %240, %241 : vector<16x128xf32>
    %c1_122 = arith.constant 1 : index
    %c0_123 = arith.constant 0 : index
    %c0_124 = arith.constant 0 : index
    %243 = vector.load %arg19[%c1_122, %c0_123, %c0_124] : memref<3x128x128xbf16, #tpu.memory_space<vmem>>, vector<1x128x128xbf16>
    %244 = vector.shape_cast %243 : vector<1x128x128xbf16> to vector<128x128xbf16>
    %245 = arith.truncf %242 : vector<16x128xf32> to vector<16x128xbf16>
    %cst_125 = arith.constant dense<0.000000e+00> : vector<16x128xf32>
    %246 = tpu.matmul %245, %244, %cst_125 {dimension_numbers = #tpu.dot_dimension_numbers<[1], [0], [0], [1], [0, 0, 1, 1], [], []>} : vector<16x128xbf16>, vector<128x128xbf16>, vector<16x128xf32> -> vector<16x128xf32>
    %c1_126 = arith.constant 1 : index
    %c0_127 = arith.constant 0 : index
    %c0_128 = arith.constant 0 : index
    %247 = vector.load %arg20[%c1_126, %c0_127, %c0_128] : memref<3x1x128xf32, #tpu.memory_space<vmem>>, vector<1x1x128xf32>
    %248 = vector.shape_cast %247 : vector<1x1x128xf32> to vector<1x128xf32>
    %249 = vector.broadcast %248 : vector<1x128xf32> to vector<16x128xf32>
    %250 = arith.addf %246, %249 : vector<16x128xf32>
    %cst_129 = arith.constant 0.000000e+00 : f32
    %251 = vector.broadcast %cst_129 : f32 to vector<16x128xf32>
    %252 = arith.maximumf %250, %251 : vector<16x128xf32>
    %c1_130 = arith.constant 1 : index
    %c0_131 = arith.constant 0 : index
    %c0_132 = arith.constant 0 : index
    %253 = vector.load %arg21[%c1_130, %c0_131, %c0_132] : memref<3x128x128xbf16, #tpu.memory_space<vmem>>, vector<1x128x128xbf16>
    %254 = vector.shape_cast %253 : vector<1x128x128xbf16> to vector<128x128xbf16>
    %255 = arith.truncf %252 : vector<16x128xf32> to vector<16x128xbf16>
    %cst_133 = arith.constant dense<0.000000e+00> : vector<16x128xf32>
    %256 = tpu.matmul %255, %254, %cst_133 {dimension_numbers = #tpu.dot_dimension_numbers<[1], [0], [0], [1], [0, 0, 1, 1], [], []>} : vector<16x128xbf16>, vector<128x128xbf16>, vector<16x128xf32> -> vector<16x128xf32>
    %c1_134 = arith.constant 1 : index
    %c0_135 = arith.constant 0 : index
    %c0_136 = arith.constant 0 : index
    %257 = vector.load %arg22[%c1_134, %c0_135, %c0_136] : memref<3x1x128xf32, #tpu.memory_space<vmem>>, vector<1x1x128xf32>
    %258 = vector.shape_cast %257 : vector<1x1x128xf32> to vector<1x128xf32>
    %259 = vector.broadcast %258 : vector<1x128xf32> to vector<16x128xf32>
    %260 = arith.addf %256, %259 : vector<16x128xf32>
    %261 = arith.addf %242, %260 : vector<16x128xf32>
    %c1_137 = arith.constant 1 : index
    %c0_138 = arith.constant 0 : index
    %c0_139 = arith.constant 0 : index
    %262 = vector.load %arg23[%c1_137, %c0_138, %c0_139] : memref<3x1x128xf32, #tpu.memory_space<vmem>>, vector<1x1x128xf32>
    %263 = vector.shape_cast %262 : vector<1x1x128xf32> to vector<1x128xf32>
    %c1_140 = arith.constant 1 : index
    %c0_141 = arith.constant 0 : index
    %c0_142 = arith.constant 0 : index
    %264 = vector.load %arg24[%c1_140, %c0_141, %c0_142] : memref<3x1x128xf32, #tpu.memory_space<vmem>>, vector<1x1x128xf32>
    %265 = vector.shape_cast %264 : vector<1x1x128xf32> to vector<1x128xf32>
    %cst_143 = arith.constant dense<0.000000e+00> : vector<16xf32>
    %266 = vector.multi_reduction <add>, %261, %cst_143 [1] : vector<16x128xf32> to vector<16xf32>
    %267 = vector.shape_cast %266 : vector<16xf32> to vector<16x1xf32>
    %cst_144 = arith.constant 1.280000e+02 : f32
    %268 = vector.broadcast %cst_144 : f32 to vector<16x1xf32>
    %269 = arith.divf %267, %268 : vector<16x1xf32>
    %270 = vector.broadcast %269 : vector<16x1xf32> to vector<16x128xf32>
    %271 = arith.subf %261, %270 : vector<16x128xf32>
    %272 = arith.mulf %271, %271 : vector<16x128xf32>
    %cst_145 = arith.constant dense<0.000000e+00> : vector<16xf32>
    %273 = vector.multi_reduction <add>, %272, %cst_145 [1] : vector<16x128xf32> to vector<16xf32>
    %274 = vector.shape_cast %273 : vector<16xf32> to vector<16x1xf32>
    %cst_146 = arith.constant 1.280000e+02 : f32
    %275 = vector.broadcast %cst_146 : f32 to vector<16x1xf32>
    %276 = arith.divf %274, %275 : vector<16x1xf32>
    %277 = vector.broadcast %269 : vector<16x1xf32> to vector<16x128xf32>
    %278 = arith.subf %261, %277 : vector<16x128xf32>
    %cst_147 = arith.constant 9.99999974E-6 : f32
    %279 = vector.broadcast %cst_147 : f32 to vector<16x1xf32>
    %280 = arith.addf %276, %279 : vector<16x1xf32>
    %281 = math.rsqrt %280 : vector<16x1xf32>
    %282 = vector.broadcast %281 : vector<16x1xf32> to vector<16x128xf32>
    %283 = arith.mulf %278, %282 : vector<16x128xf32>
    %284 = vector.broadcast %263 : vector<1x128xf32> to vector<16x128xf32>
    %285 = arith.mulf %283, %284 : vector<16x128xf32>
    %286 = vector.broadcast %265 : vector<1x128xf32> to vector<16x128xf32>
    %287 = arith.addf %285, %286 : vector<16x128xf32>
    %c2_148 = arith.constant 2 : index
    %c0_149 = arith.constant 0 : index
    %c0_150 = arith.constant 0 : index
    %288 = vector.load %arg13[%c2_148, %c0_149, %c0_150] : memref<3x128x384xbf16, #tpu.memory_space<vmem>>, vector<1x128x384xbf16>
    %289 = vector.shape_cast %288 : vector<1x128x384xbf16> to vector<128x384xbf16>
    %290 = arith.truncf %287 : vector<16x128xf32> to vector<16x128xbf16>
    %cst_151 = arith.constant dense<0.000000e+00> : vector<16x384xf32>
    %291 = tpu.matmul %290, %289, %cst_151 {dimension_numbers = #tpu.dot_dimension_numbers<[1], [0], [0], [1], [0, 0, 1, 1], [], []>} : vector<16x128xbf16>, vector<128x384xbf16>, vector<16x384xf32> -> vector<16x384xf32>
    %c2_152 = arith.constant 2 : index
    %c0_153 = arith.constant 0 : index
    %c0_154 = arith.constant 0 : index
    %292 = vector.load %arg14[%c2_152, %c0_153, %c0_154] : memref<3x1x384xf32, #tpu.memory_space<vmem>>, vector<1x1x384xf32>
    %293 = vector.shape_cast %292 : vector<1x1x384xf32> to vector<1x384xf32>
    %294 = vector.broadcast %293 : vector<1x384xf32> to vector<16x384xf32>
    %295 = arith.addf %291, %294 : vector<16x384xf32>
    %296 = vector.extract_strided_slice %295 {offsets = [0, 0], sizes = [16, 128], strides = [1, 1]} : vector<16x384xf32> to vector<16x128xf32>
    %297 = vector.extract_strided_slice %295 {offsets = [0, 128], sizes = [16, 128], strides = [1, 1]} : vector<16x384xf32> to vector<16x128xf32>
    %298 = vector.extract_strided_slice %295 {offsets = [0, 256], sizes = [16, 128], strides = [1, 1]} : vector<16x384xf32> to vector<16x128xf32>
    %299 = tpu.concatenate %296, %296, %296, %296 in 0 : vector<16x128xf32>, vector<16x128xf32>, vector<16x128xf32>, vector<16x128xf32> -> vector<64x128xf32>
    %300 = arith.mulf %299, %46 : vector<64x128xf32>
    %301 = arith.truncf %300 : vector<64x128xf32> to vector<64x128xbf16>
    %302 = arith.truncf %297 : vector<16x128xf32> to vector<16x128xbf16>
    %cst_155 = arith.constant dense<0.000000e+00> : vector<64x16xf32>
    %303 = tpu.matmul %301, %302, %cst_155 {dimension_numbers = #tpu.dot_dimension_numbers<[1], [1], [0], [0], [0, 0, 1, 0], [], []>} : vector<64x128xbf16>, vector<16x128xbf16>, vector<64x16xf32> -> vector<64x16xf32>
    %cst_156 = arith.constant 0.176776692 : f32
    %304 = vector.broadcast %cst_156 : f32 to vector<64x16xf32>
    %305 = arith.mulf %303, %304 : vector<64x16xf32>
    %306 = arith.addf %305, %47 : vector<64x16xf32>
    %cst_157 = arith.constant dense<0xFF800000> : vector<64xf32>
    %307 = vector.multi_reduction <maximumf>, %306, %cst_157 [1] : vector<64x16xf32> to vector<64xf32>
    %308 = vector.shape_cast %307 : vector<64xf32> to vector<64x1xf32>
    %309 = vector.broadcast %308 : vector<64x1xf32> to vector<64x16xf32>
    %310 = arith.subf %306, %309 : vector<64x16xf32>
    %311 = math.exp %310 : vector<64x16xf32>
    %cst_158 = arith.constant dense<0.000000e+00> : vector<64xf32>
    %312 = vector.multi_reduction <add>, %311, %cst_158 [1] : vector<64x16xf32> to vector<64xf32>
    %313 = vector.shape_cast %312 : vector<64xf32> to vector<64x1xf32>
    %314 = tpu.reciprocal %313 {approx = true} : vector<64x1xf32> -> vector<64x1xf32>
    %315 = vector.broadcast %314 : vector<64x1xf32> to vector<64x16xf32>
    %316 = arith.mulf %311, %315 : vector<64x16xf32>
    %317 = arith.truncf %316 : vector<64x16xf32> to vector<64x16xbf16>
    %318 = arith.truncf %298 : vector<16x128xf32> to vector<16x128xbf16>
    %cst_159 = arith.constant dense<0.000000e+00> : vector<64x128xf32>
    %319 = tpu.matmul %317, %318, %cst_159 {dimension_numbers = #tpu.dot_dimension_numbers<[1], [0], [0], [1], [0, 0, 1, 1], [], []>} : vector<64x16xbf16>, vector<16x128xbf16>, vector<64x128xf32> -> vector<64x128xf32>
    %320 = arith.mulf %319, %46 : vector<64x128xf32>
    %321 = vector.extract_strided_slice %320 {offsets = [0, 0], sizes = [16, 128], strides = [1, 1]} : vector<64x128xf32> to vector<16x128xf32>
    %322 = vector.extract_strided_slice %320 {offsets = [16, 0], sizes = [16, 128], strides = [1, 1]} : vector<64x128xf32> to vector<16x128xf32>
    %323 = arith.addf %321, %322 : vector<16x128xf32>
    %324 = vector.extract_strided_slice %320 {offsets = [32, 0], sizes = [16, 128], strides = [1, 1]} : vector<64x128xf32> to vector<16x128xf32>
    %325 = arith.addf %323, %324 : vector<16x128xf32>
    %326 = vector.extract_strided_slice %320 {offsets = [48, 0], sizes = [16, 128], strides = [1, 1]} : vector<64x128xf32> to vector<16x128xf32>
    %327 = arith.addf %325, %326 : vector<16x128xf32>
    %c2_160 = arith.constant 2 : index
    %c0_161 = arith.constant 0 : index
    %c0_162 = arith.constant 0 : index
    %328 = vector.load %arg15[%c2_160, %c0_161, %c0_162] : memref<3x128x128xbf16, #tpu.memory_space<vmem>>, vector<1x128x128xbf16>
    %329 = vector.shape_cast %328 : vector<1x128x128xbf16> to vector<128x128xbf16>
    %330 = arith.truncf %327 : vector<16x128xf32> to vector<16x128xbf16>
    %cst_163 = arith.constant dense<0.000000e+00> : vector<16x128xf32>
    %331 = tpu.matmul %330, %329, %cst_163 {dimension_numbers = #tpu.dot_dimension_numbers<[1], [0], [0], [1], [0, 0, 1, 1], [], []>} : vector<16x128xbf16>, vector<128x128xbf16>, vector<16x128xf32> -> vector<16x128xf32>
    %c2_164 = arith.constant 2 : index
    %c0_165 = arith.constant 0 : index
    %c0_166 = arith.constant 0 : index
    %332 = vector.load %arg16[%c2_164, %c0_165, %c0_166] : memref<3x1x128xf32, #tpu.memory_space<vmem>>, vector<1x1x128xf32>
    %333 = vector.shape_cast %332 : vector<1x1x128xf32> to vector<1x128xf32>
    %334 = vector.broadcast %333 : vector<1x128xf32> to vector<16x128xf32>
    %335 = arith.addf %331, %334 : vector<16x128xf32>
    %336 = arith.addf %287, %335 : vector<16x128xf32>
    %c2_167 = arith.constant 2 : index
    %c0_168 = arith.constant 0 : index
    %c0_169 = arith.constant 0 : index
    %337 = vector.load %arg17[%c2_167, %c0_168, %c0_169] : memref<3x1x128xf32, #tpu.memory_space<vmem>>, vector<1x1x128xf32>
    %338 = vector.shape_cast %337 : vector<1x1x128xf32> to vector<1x128xf32>
    %c2_170 = arith.constant 2 : index
    %c0_171 = arith.constant 0 : index
    %c0_172 = arith.constant 0 : index
    %339 = vector.load %arg18[%c2_170, %c0_171, %c0_172] : memref<3x1x128xf32, #tpu.memory_space<vmem>>, vector<1x1x128xf32>
    %340 = vector.shape_cast %339 : vector<1x1x128xf32> to vector<1x128xf32>
    %cst_173 = arith.constant dense<0.000000e+00> : vector<16xf32>
    %341 = vector.multi_reduction <add>, %336, %cst_173 [1] : vector<16x128xf32> to vector<16xf32>
    %342 = vector.shape_cast %341 : vector<16xf32> to vector<16x1xf32>
    %cst_174 = arith.constant 1.280000e+02 : f32
    %343 = vector.broadcast %cst_174 : f32 to vector<16x1xf32>
    %344 = arith.divf %342, %343 : vector<16x1xf32>
    %345 = vector.broadcast %344 : vector<16x1xf32> to vector<16x128xf32>
    %346 = arith.subf %336, %345 : vector<16x128xf32>
    %347 = arith.mulf %346, %346 : vector<16x128xf32>
    %cst_175 = arith.constant dense<0.000000e+00> : vector<16xf32>
    %348 = vector.multi_reduction <add>, %347, %cst_175 [1] : vector<16x128xf32> to vector<16xf32>
    %349 = vector.shape_cast %348 : vector<16xf32> to vector<16x1xf32>
    %cst_176 = arith.constant 1.280000e+02 : f32
    %350 = vector.broadcast %cst_176 : f32 to vector<16x1xf32>
    %351 = arith.divf %349, %350 : vector<16x1xf32>
    %352 = vector.broadcast %344 : vector<16x1xf32> to vector<16x128xf32>
    %353 = arith.subf %336, %352 : vector<16x128xf32>
    %cst_177 = arith.constant 9.99999974E-6 : f32
    %354 = vector.broadcast %cst_177 : f32 to vector<16x1xf32>
    %355 = arith.addf %351, %354 : vector<16x1xf32>
    %356 = math.rsqrt %355 : vector<16x1xf32>
    %357 = vector.broadcast %356 : vector<16x1xf32> to vector<16x128xf32>
    %358 = arith.mulf %353, %357 : vector<16x128xf32>
    %359 = vector.broadcast %338 : vector<1x128xf32> to vector<16x128xf32>
    %360 = arith.mulf %358, %359 : vector<16x128xf32>
    %361 = vector.broadcast %340 : vector<1x128xf32> to vector<16x128xf32>
    %362 = arith.addf %360, %361 : vector<16x128xf32>
    %c2_178 = arith.constant 2 : index
    %c0_179 = arith.constant 0 : index
    %c0_180 = arith.constant 0 : index
    %363 = vector.load %arg19[%c2_178, %c0_179, %c0_180] : memref<3x128x128xbf16, #tpu.memory_space<vmem>>, vector<1x128x128xbf16>
    %364 = vector.shape_cast %363 : vector<1x128x128xbf16> to vector<128x128xbf16>
    %365 = arith.truncf %362 : vector<16x128xf32> to vector<16x128xbf16>
    %cst_181 = arith.constant dense<0.000000e+00> : vector<16x128xf32>
    %366 = tpu.matmul %365, %364, %cst_181 {dimension_numbers = #tpu.dot_dimension_numbers<[1], [0], [0], [1], [0, 0, 1, 1], [], []>} : vector<16x128xbf16>, vector<128x128xbf16>, vector<16x128xf32> -> vector<16x128xf32>
    %c2_182 = arith.constant 2 : index
    %c0_183 = arith.constant 0 : index
    %c0_184 = arith.constant 0 : index
    %367 = vector.load %arg20[%c2_182, %c0_183, %c0_184] : memref<3x1x128xf32, #tpu.memory_space<vmem>>, vector<1x1x128xf32>
    %368 = vector.shape_cast %367 : vector<1x1x128xf32> to vector<1x128xf32>
    %369 = vector.broadcast %368 : vector<1x128xf32> to vector<16x128xf32>
    %370 = arith.addf %366, %369 : vector<16x128xf32>
    %cst_185 = arith.constant 0.000000e+00 : f32
    %371 = vector.broadcast %cst_185 : f32 to vector<16x128xf32>
    %372 = arith.maximumf %370, %371 : vector<16x128xf32>
    %c2_186 = arith.constant 2 : index
    %c0_187 = arith.constant 0 : index
    %c0_188 = arith.constant 0 : index
    %373 = vector.load %arg21[%c2_186, %c0_187, %c0_188] : memref<3x128x128xbf16, #tpu.memory_space<vmem>>, vector<1x128x128xbf16>
    %374 = vector.shape_cast %373 : vector<1x128x128xbf16> to vector<128x128xbf16>
    %375 = arith.truncf %372 : vector<16x128xf32> to vector<16x128xbf16>
    %cst_189 = arith.constant dense<0.000000e+00> : vector<16x128xf32>
    %376 = tpu.matmul %375, %374, %cst_189 {dimension_numbers = #tpu.dot_dimension_numbers<[1], [0], [0], [1], [0, 0, 1, 1], [], []>} : vector<16x128xbf16>, vector<128x128xbf16>, vector<16x128xf32> -> vector<16x128xf32>
    %c2_190 = arith.constant 2 : index
    %c0_191 = arith.constant 0 : index
    %c0_192 = arith.constant 0 : index
    %377 = vector.load %arg22[%c2_190, %c0_191, %c0_192] : memref<3x1x128xf32, #tpu.memory_space<vmem>>, vector<1x1x128xf32>
    %378 = vector.shape_cast %377 : vector<1x1x128xf32> to vector<1x128xf32>
    %379 = vector.broadcast %378 : vector<1x128xf32> to vector<16x128xf32>
    %380 = arith.addf %376, %379 : vector<16x128xf32>
    %381 = arith.addf %362, %380 : vector<16x128xf32>
    %c2_193 = arith.constant 2 : index
    %c0_194 = arith.constant 0 : index
    %c0_195 = arith.constant 0 : index
    %382 = vector.load %arg23[%c2_193, %c0_194, %c0_195] : memref<3x1x128xf32, #tpu.memory_space<vmem>>, vector<1x1x128xf32>
    %383 = vector.shape_cast %382 : vector<1x1x128xf32> to vector<1x128xf32>
    %c2_196 = arith.constant 2 : index
    %c0_197 = arith.constant 0 : index
    %c0_198 = arith.constant 0 : index
    %384 = vector.load %arg24[%c2_196, %c0_197, %c0_198] : memref<3x1x128xf32, #tpu.memory_space<vmem>>, vector<1x1x128xf32>
    %385 = vector.shape_cast %384 : vector<1x1x128xf32> to vector<1x128xf32>
    %cst_199 = arith.constant dense<0.000000e+00> : vector<16xf32>
    %386 = vector.multi_reduction <add>, %381, %cst_199 [1] : vector<16x128xf32> to vector<16xf32>
    %387 = vector.shape_cast %386 : vector<16xf32> to vector<16x1xf32>
    %cst_200 = arith.constant 1.280000e+02 : f32
    %388 = vector.broadcast %cst_200 : f32 to vector<16x1xf32>
    %389 = arith.divf %387, %388 : vector<16x1xf32>
    %390 = vector.broadcast %389 : vector<16x1xf32> to vector<16x128xf32>
    %391 = arith.subf %381, %390 : vector<16x128xf32>
    %392 = arith.mulf %391, %391 : vector<16x128xf32>
    %cst_201 = arith.constant dense<0.000000e+00> : vector<16xf32>
    %393 = vector.multi_reduction <add>, %392, %cst_201 [1] : vector<16x128xf32> to vector<16xf32>
    %394 = vector.shape_cast %393 : vector<16xf32> to vector<16x1xf32>
    %cst_202 = arith.constant 1.280000e+02 : f32
    %395 = vector.broadcast %cst_202 : f32 to vector<16x1xf32>
    %396 = arith.divf %394, %395 : vector<16x1xf32>
    %397 = vector.broadcast %389 : vector<16x1xf32> to vector<16x128xf32>
    %398 = arith.subf %381, %397 : vector<16x128xf32>
    %cst_203 = arith.constant 9.99999974E-6 : f32
    %399 = vector.broadcast %cst_203 : f32 to vector<16x1xf32>
    %400 = arith.addf %396, %399 : vector<16x1xf32>
    %401 = math.rsqrt %400 : vector<16x1xf32>
    %402 = vector.broadcast %401 : vector<16x1xf32> to vector<16x128xf32>
    %403 = arith.mulf %398, %402 : vector<16x128xf32>
    %404 = vector.broadcast %383 : vector<1x128xf32> to vector<16x128xf32>
    %405 = arith.mulf %403, %404 : vector<16x128xf32>
    %406 = vector.broadcast %385 : vector<1x128xf32> to vector<16x128xf32>
    %407 = arith.addf %405, %406 : vector<16x128xf32>
    %c0_204 = arith.constant 0 : index
    %c0_205 = arith.constant 0 : index
    %408 = vector.load %arg12[%c0_204, %c0_205] : memref<16x128xf32, #tpu.memory_space<vmem>>, vector<16x128xf32>
    %409 = arith.addf %407, %408 : vector<16x128xf32>
    %410 = vector.shape_cast %409 : vector<16x128xf32> to vector<2x8x128xf32>
    %cst_206 = arith.constant dense<0xFF800000> : vector<2x128xf32>
    %411 = vector.multi_reduction <maximumf>, %410, %cst_206 [1] : vector<2x8x128xf32> to vector<2x128xf32>
    %412 = tpu.concatenate %33, %411 in 1 : vector<2x128xf32>, vector<2x128xf32> -> vector<2x256xf32>
    %c0_207 = arith.constant 0 : index
    %c0_208 = arith.constant 0 : index
    %413 = vector.load %arg25[%c0_207, %c0_208] : memref<256x128xbf16, #tpu.memory_space<vmem>>, vector<256x128xbf16>
    %414 = arith.truncf %412 : vector<2x256xf32> to vector<2x256xbf16>
    %cst_209 = arith.constant dense<0.000000e+00> : vector<2x128xf32>
    %415 = tpu.matmul %414, %413, %cst_209 {dimension_numbers = #tpu.dot_dimension_numbers<[1], [0], [0], [1], [0, 0, 1, 1], [], []>} : vector<2x256xbf16>, vector<256x128xbf16>, vector<2x128xf32> -> vector<2x128xf32>
    %c0_210 = arith.constant 0 : index
    %c0_211 = arith.constant 0 : index
    %416 = vector.load %arg26[%c0_210, %c0_211] : memref<1x128xf32, #tpu.memory_space<vmem>>, vector<1x128xf32>
    %417 = vector.broadcast %416 : vector<1x128xf32> to vector<2x128xf32>
    %418 = arith.addf %415, %417 : vector<2x128xf32>
    %c0_212 = arith.constant 0 : index
    %c0_213 = arith.constant 0 : index
    %419 = vector.load %arg27[%c0_212, %c0_213] : memref<2x128xf32, #tpu.memory_space<vmem>>, vector<2x128xf32>
    tpu.vector_store %arg27[%c0_212, %c0_213], %418 {strides = array<i32>} : memref<2x128xf32, #tpu.memory_space<vmem>>, vector<2x128xf32>,
    return
  }
  func.func @transform_0(%arg0: i32) -> (i32, i32) {
    %c0_i32 = arith.constant 0 : i32
    %c0_i32_0 = arith.constant 0 : i32
    %c0_i32_1 = arith.constant 0 : i32
    return %c0_i32, %c0_i32_0 : i32, i32
  }
  func.func @transform_1(%arg0: i32) -> (i32, i32, i32) {
    %c0_i32 = arith.constant 0 : i32
    %c0_i32_0 = arith.constant 0 : i32
    %c0_i32_1 = arith.constant 0 : i32
    %c0_i32_2 = arith.constant 0 : i32
    return %c0_i32, %c0_i32_0, %c0_i32_1 : i32, i32, i32
  }
  func.func @transform_2(%arg0: i32) -> (i32, i32) {
    %c0_i32 = arith.constant 0 : i32
    %c0_i32_0 = arith.constant 0 : i32
    %c0_i32_1 = arith.constant 0 : i32
    return %c0_i32, %c0_i32_0 : i32, i32
  }
  func.func @transform_3(%arg0: i32) -> (i32, i32) {
    %c0_i32 = arith.constant 0 : i32
    %c0_i32_0 = arith.constant 0 : i32
    %c0_i32_1 = arith.constant 0 : i32
    return %c0_i32, %c0_i32_0 : i32, i32
  }
  func.func @transform_4(%arg0: i32) -> (i32, i32) {
    %c0_i32 = arith.constant 0 : i32
    %c0_i32_0 = arith.constant 0 : i32
    %c0_i32_1 = arith.constant 0 : i32
    return %c0_i32, %c0_i32_0 : i32, i32
  }
  func.func @transform_5(%arg0: i32) -> (i32, i32) {
    %c0_i32 = arith.constant 0 : i32
    %c0_i32_0 = arith.constant 0 : i32
    %c0_i32_1 = arith.constant 0 : i32
    return %c0_i32, %c0_i32_0 : i32, i32
  }
  func.func @transform_6(%arg0: i32) -> (i32, i32) {
    %c0_i32 = arith.constant 0 : i32
    %c0_i32_0 = arith.constant 0 : i32
    %c0_i32_1 = arith.constant 0 : i32
    return %c0_i32, %c0_i32_0 : i32, i32
  }
  func.func @transform_7(%arg0: i32) -> (i32, i32) {
    %c0_i32 = arith.constant 0 : i32
    %c0_i32_0 = arith.constant 0 : i32
    %c0_i32_1 = arith.constant 0 : i32
    return %c0_i32, %c0_i32_0 : i32, i32
  }
  func.func @transform_8(%arg0: i32) -> (i32, i32) {
    %c0_i32 = arith.constant 0 : i32
    %c0_i32_0 = arith.constant 0 : i32
    %c0_i32_1 = arith.constant 0 : i32
    return %c0_i32, %c0_i32_0 : i32, i32
  }
  func.func @transform_9(%arg0: i32) -> (i32, i32) {
    %c0_i32 = arith.constant 0 : i32
    %c0_i32_0 = arith.constant 0 : i32
    %c0_i32_1 = arith.constant 0 : i32
    return %c0_i32, %c0_i32_0 : i32, i32
  }
  func.func @transform_10(%arg0: i32) -> (i32, i32) {
    %c0_i32 = arith.constant 0 : i32
    %c0_i32_0 = arith.constant 0 : i32
    %c0_i32_1 = arith.constant 0 : i32
    return %c0_i32, %c0_i32_0 : i32, i32
  }
  func.func @transform_11(%arg0: i32) -> (i32, i32) {
    %c0_i32 = arith.constant 0 : i32
    %c0_i32_0 = arith.constant 0 : i32
    %c0_i32_1 = arith.constant 0 : i32
    return %c0_i32, %c0_i32_0 : i32, i32
  }
  func.func @transform_12(%arg0: i32) -> (i32, i32, i32) {
    %c0_i32 = arith.constant 0 : i32
    %c0_i32_0 = arith.constant 0 : i32
    %c0_i32_1 = arith.constant 0 : i32
    %c0_i32_2 = arith.constant 0 : i32
    return %c0_i32, %c0_i32_0, %c0_i32_1 : i32, i32, i32
  }
  func.func @transform_13(%arg0: i32) -> (i32, i32, i32) {
    %c0_i32 = arith.constant 0 : i32
    %c0_i32_0 = arith.constant 0 : i32
    %c0_i32_1 = arith.constant 0 : i32
    %c0_i32_2 = arith.constant 0 : i32
    return %c0_i32, %c0_i32_0, %c0_i32_1 : i32, i32, i32
  }
  func.func @transform_14(%arg0: i32) -> (i32, i32, i32) {
    %c0_i32 = arith.constant 0 : i32
    %c0_i32_0 = arith.constant 0 : i32
    %c0_i32_1 = arith.constant 0 : i32
    %c0_i32_2 = arith.constant 0 : i32
    return %c0_i32, %c0_i32_0, %c0_i32_1 : i32, i32, i32
  }
  func.func @transform_15(%arg0: i32) -> (i32, i32, i32) {
    %c0_i32 = arith.constant 0 : i32
    %c0_i32_0 = arith.constant 0 : i32
    %c0_i32_1 = arith.constant 0 : i32
    %c0_i32_2 = arith.constant 0 : i32
    return %c0_i32, %c0_i32_0, %c0_i32_1 : i32, i32, i32
  }
  func.func @transform_16(%arg0: i32) -> (i32, i32, i32) {
    %c0_i32 = arith.constant 0 : i32
    %c0_i32_0 = arith.constant 0 : i32
    %c0_i32_1 = arith.constant 0 : i32
    %c0_i32_2 = arith.constant 0 : i32
    return %c0_i32, %c0_i32_0, %c0_i32_1 : i32, i32, i32
  }
  func.func @transform_17(%arg0: i32) -> (i32, i32, i32) {
    %c0_i32 = arith.constant 0 : i32
    %c0_i32_0 = arith.constant 0 : i32
    %c0_i32_1 = arith.constant 0 : i32
    %c0_i32_2 = arith.constant 0 : i32
    return %c0_i32, %c0_i32_0, %c0_i32_1 : i32, i32, i32
  }
  func.func @transform_18(%arg0: i32) -> (i32, i32, i32) {
    %c0_i32 = arith.constant 0 : i32
    %c0_i32_0 = arith.constant 0 : i32
    %c0_i32_1 = arith.constant 0 : i32
    %c0_i32_2 = arith.constant 0 : i32
    return %c0_i32, %c0_i32_0, %c0_i32_1 : i32, i32, i32
  }
  func.func @transform_19(%arg0: i32) -> (i32, i32, i32) {
    %c0_i32 = arith.constant 0 : i32
    %c0_i32_0 = arith.constant 0 : i32
    %c0_i32_1 = arith.constant 0 : i32
    %c0_i32_2 = arith.constant 0 : i32
    return %c0_i32, %c0_i32_0, %c0_i32_1 : i32, i32, i32
  }
  func.func @transform_20(%arg0: i32) -> (i32, i32, i32) {
    %c0_i32 = arith.constant 0 : i32
    %c0_i32_0 = arith.constant 0 : i32
    %c0_i32_1 = arith.constant 0 : i32
    %c0_i32_2 = arith.constant 0 : i32
    return %c0_i32, %c0_i32_0, %c0_i32_1 : i32, i32, i32
  }
  func.func @transform_21(%arg0: i32) -> (i32, i32, i32) {
    %c0_i32 = arith.constant 0 : i32
    %c0_i32_0 = arith.constant 0 : i32
    %c0_i32_1 = arith.constant 0 : i32
    %c0_i32_2 = arith.constant 0 : i32
    return %c0_i32, %c0_i32_0, %c0_i32_1 : i32, i32, i32
  }
  func.func @transform_22(%arg0: i32) -> (i32, i32, i32) {
    %c0_i32 = arith.constant 0 : i32
    %c0_i32_0 = arith.constant 0 : i32
    %c0_i32_1 = arith.constant 0 : i32
    %c0_i32_2 = arith.constant 0 : i32
    return %c0_i32, %c0_i32_0, %c0_i32_1 : i32, i32, i32
  }
  func.func @transform_23(%arg0: i32) -> (i32, i32, i32) {
    %c0_i32 = arith.constant 0 : i32
    %c0_i32_0 = arith.constant 0 : i32
    %c0_i32_1 = arith.constant 0 : i32
    %c0_i32_2 = arith.constant 0 : i32
    return %c0_i32, %c0_i32_0, %c0_i32_1 : i32, i32, i32
  }
  func.func @transform_24(%arg0: i32) -> (i32, i32) {
    %c0_i32 = arith.constant 0 : i32
    %c0_i32_0 = arith.constant 0 : i32
    %c0_i32_1 = arith.constant 0 : i32
    return %c0_i32, %c0_i32_0 : i32, i32
  }
  func.func @transform_25(%arg0: i32) -> (i32, i32) {
    %c0_i32 = arith.constant 0 : i32
    %c0_i32_0 = arith.constant 0 : i32
    %c0_i32_1 = arith.constant 0 : i32
    return %c0_i32, %c0_i32_0 : i32, i32
  }
  func.func @transform_26(%arg0: i32) -> (i32, i32) {
    %c0_i32 = arith.constant 0 : i32
    %c0_i32_0 = arith.constant 0 : i32
    %c0_i32_1 = arith.constant 0 : i32
    return %c0_i32, %c0_i32_0 : i32, i32
  }
}

</mosaic_0001>

<llo_original>
// kernel: net_forward.1
$region0: #{net_forward.1}
  #allocation0 [shape = 'u32[]', space=smem, size = 0x4, offset = 0x4, fixed_abs, tag = 'smem constant byte address 0x4 - core index']
  #allocation1 [shape = 'u32[144,128]{1,0:T(1,128)}', space=vmem, size = 0x12000, scoped, tag = 'internal scratch']
  %s0 = inlined_call_operand.vmem [shape: f32[32,128], index: 0, kind: input, shape index: {}]
  %s1 = inlined_call_operand.hbm [shape: bf16[4,128,128], index: 1, kind: input, shape index: {}]
  %s2 = inlined_call_operand.hbm [shape: f32[1,128], index: 2, kind: input, shape index: {}]
  %s3 = inlined_call_operand.vmem [shape: f32[32,128], index: 3, kind: input, shape index: {}]
  %s4 = inlined_call_operand.vmem [shape: f32[16,128], index: 4, kind: input, shape index: {}]
  %s5 = inlined_call_operand.vmem [shape: f32[8,8], index: 5, kind: input, shape index: {}]
  %s6 = inlined_call_operand.hbm [shape: bf16[8,128], index: 6, kind: input, shape index: {}]
  %s7 = inlined_call_operand.hbm [shape: f32[1,128], index: 7, kind: input, shape index: {}]
  %s8 = inlined_call_operand.vmem [shape: bf16[16,8], index: 8, kind: input, shape index: {}]
  %s9 = inlined_call_operand.vmem [shape: f32[64,128], index: 9, kind: input, shape index: {}]
  %s10 = inlined_call_operand.vmem [shape: f32[64,16], index: 10, kind: input, shape index: {}]
  %s11 = inlined_call_operand.vmem [shape: f32[16,128], index: 11, kind: input, shape index: {}]
  %s12 = inlined_call_operand.vmem [shape: bf16[3,128,384], index: 12, kind: input, shape index: {}]
  %s13 = inlined_call_operand.hbm [shape: f32[3,1,384], index: 13, kind: input, shape index: {}]
  %s14 = inlined_call_operand.hbm [shape: bf16[3,128,128], index: 14, kind: input, shape index: {}]
  %s15 = inlined_call_operand.hbm [shape: f32[3,1,128], index: 15, kind: input, shape index: {}]
  %s16 = inlined_call_operand.hbm [shape: f32[3,1,128], index: 16, kind: input, shape index: {}]
  %s17 = inlined_call_operand.hbm [shape: f32[3,1,128], index: 17, kind: input, shape index: {}]
  %s18 = inlined_call_operand.hbm [shape: bf16[3,128,128], index: 18, kind: input, shape index: {}]
  %s19 = inlined_call_operand.hbm [shape: f32[3,1,128], index: 19, kind: input, shape index: {}]
  %s20 = inlined_call_operand.hbm [shape: bf16[3,128,128], index: 20, kind: input, shape index: {}]
  %s21 = inlined_call_operand.hbm [shape: f32[3,1,128], index: 21, kind: input, shape index: {}]
  %s22 = inlined_call_operand.hbm [shape: f32[3,1,128], index: 22, kind: input, shape index: {}]
  %s23 = inlined_call_operand.hbm [shape: f32[3,1,128], index: 23, kind: input, shape index: {}]
  %s24 = inlined_call_operand.hbm [shape: bf16[256,128], index: 24, kind: input, shape index: {}]
  %s25 = inlined_call_operand.hbm [shape: f32[1,128], index: 25, kind: input, shape index: {}]
  %s26 = inlined_call_operand.hbm [shape: f32[2,128], index: 26, kind: output, shape index: {}]
  %s27 = sld [smem:[#allocation0]]
  $region182: #{net_forward.1} parent=0
    _
  %s29 = ssub.s32 1, %s27
  %s30 = scalar_select 0, %s29, %s27
  $region1: #{net_forward.1} parent=0
    #allocation2 [shape = 'u8[131072]{0}', space=vmem, size = 0x20000, scoped, tag = 'input window, operand 1, single buffered']
    #allocation3 [shape = 's32[1]{0}', space=sflag, size = 0x4, scoped, tag = 'scoped memory for net_forward.1']
    #allocation4 [shape = 's32[1]{0}', space=sflag, size = 0x4, scoped, tag = 'scoped memory for net_forward.1']
    #allocation5 [shape = 'u8[512]{0}', space=vmem, size = 0x400, scoped, tag = 'input window, operand 2, single buffered']
    #allocation6 [shape = 's32[1]{0}', space=sflag, size = 0x4, scoped, tag = 'scoped memory for net_forward.1']
    #allocation7 [shape = 'u8[2048]{0}', space=vmem, size = 0x800, scoped, tag = 'input window, operand 6, single buffered']
    #allocation8 [shape = 'u8[512]{0}', space=vmem, size = 0x400, scoped, tag = 'input window, operand 7, single buffered']
    #allocation9 [shape = 's32[1]{0}', space=sflag, size = 0x4, scoped, tag = 'scoped memory for net_forward.1']
    #allocation10 [shape = 'u8[4608]{0}', space=vmem, size = 0x1400, scoped, tag = 'input window, operand 13, single buffered']
    #allocation11 [shape = 'u8[98304]{0}', space=vmem, size = 0x18000, scoped, tag = 'input window, operand 14, single buffered']
    #allocation12 [shape = 's32[1]{0}', space=sflag, size = 0x4, scoped, tag = 'scoped memory for net_forward.1']
    #allocation13 [shape = 'u8[1536]{0}', space=vmem, size = 0x800, scoped, tag = 'input window, operand 15, single buffered']
    #allocation14 [shape = 'u8[1536]{0}', space=vmem, size = 0x800, scoped, tag = 'input window, operand 16, single buffered']
    #allocation15 [shape = 's32[1]{0}', space=sflag, size = 0x4, scoped, tag = 'scoped memory for net_forward.1']
    #allocation16 [shape = 'u8[1536]{0}', space=vmem, size = 0x800, scoped, tag = 'input window, operand 17, single buffered']
    #allocation17 [shape = 'u8[98304]{0}', space=vmem, size = 0x18000, scoped, tag = 'input window, operand 18, single buffered']
    #allocation18 [shape = 's32[1]{0}', space=sflag, size = 0x4, scoped, tag = 'scoped memory for net_forward.1']
    #allocation19 [shape = 'u8[1536]{0}', space=vmem, size = 0x800, scoped, tag = 'input window, operand 19, single buffered']
    #allocation20 [shape = 'u8[98304]{0}', space=vmem, size = 0x18000, scoped, tag = 'input window, operand 20, single buffered']
    #allocation21 [shape = 's32[1]{0}', space=sflag, size = 0x4, scoped, tag = 'scoped memory for net_forward.1']
    #allocation22 [shape = 'u8[1536]{0}', space=vmem, size = 0x800, scoped, tag = 'input window, operand 21, single buffered']
    #allocation23 [shape = 'u8[1536]{0}', space=vmem, size = 0x800, scoped, tag = 'input window, operand 22, single buffered']
    #allocation24 [shape = 's32[1]{0}', space=sflag, size = 0x4, scoped, tag = 'scoped memory for net_forward.1']
    #allocation25 [shape = 'u8[1536]{0}', space=vmem, size = 0x800, scoped, tag = 'input window, operand 23, single buffered']
    #allocation26 [shape = 'u8[65536]{0}', space=vmem, size = 0x10000, scoped, tag = 'input window, operand 24, single buffered']
    #allocation27 [shape = 's32[1]{0}', space=sflag, size = 0x4, scoped, tag = 'scoped memory for net_forward.1']
    #allocation28 [shape = 'u8[512]{0}', space=vmem, size = 0x400, scoped, tag = 'input window, operand 25, single buffered']
    #allocation29 [shape = 'u8[1024]{0}', space=vmem, size = 0x400, scoped, tag = 'output window, operand 0, single buffered']
    %31 = vsyncpa [#allocation3], 0
    %32 = vsyncpa [#allocation6], 0
    %33 = vsyncpa [#allocation9], 0
    %34 = vsyncpa [#allocation12], 0
    %35 = vsyncpa [#allocation15], 0
    %36 = vsyncpa [#allocation18], 0
    %37 = vsyncpa [#allocation21], 0
    %38 = vsyncpa [#allocation24], 0
    %39 = vsyncpa [#allocation27], 0
    %40 = vsyncpa [#allocation4], 0
    // Predicated region
    $region2: #{net_forward.1} parent=1 // pred_check
      _
    $region3: #{net_forward.1} parent=1 // pred_check_branch
      %42 = sbr.rel (0) target = $region5
    $region4: #{net_forward.1} parent=1 // pred_region
      _
    $region5: #{net_forward.1} parent=1 // pred_fallthru
      _
    // Predicated region
    $region6: #{net_forward.1} parent=1 // pred_check
      _
    $region7: #{net_forward.1} parent=1 // pred_check_branch
      %44 = sbr.rel (0) target = $region9
    $region8: #{net_forward.1} parent=1 // pred_region
      %s46 = ssub.s32 4096, 4096
      %47 = vsyncadd [#allocation3], %s46
      %s48 = sshll.u32 [#allocation2], 4
      %s49 = int_to_ptr.vmem [resolvable:$true] %s48
      %54 = dma.hbm_to_vmem [thread:$0]  %s1, 4096, %s49, [#allocation3], 64, 64, 4
    $region9: #{net_forward.1} parent=1 // pred_fallthru
      _
    // Predicated region
    $region10: #{net_forward.1} parent=1 // pred_check
      _
    $region11: #{net_forward.1} parent=1 // pred_check_branch
      %56 = sbr.rel (0) target = $region13
    $region12: #{net_forward.1} parent=1 // pred_region
      %s58 = ssub.s32 16, 16
      %59 = vsyncadd [#allocation6], %s58
      %s61 = sshll.u32 [#allocation5], 4
      %s62 = int_to_ptr.vmem [resolvable:$true] %s61
      %64 = dma.hbm_to_vmem [thread:$0]  %s2, 16, %s62, [#allocation6]
    $region13: #{net_forward.1} parent=1 // pred_fallthru
      _
    // Predicated region
    $region14: #{net_forward.1} parent=1 // pred_check
      _
    $region15: #{net_forward.1} parent=1 // pred_check_branch
      %66 = sbr.rel (0) target = $region17
    $region16: #{net_forward.1} parent=1 // pred_region
      _
    $region17: #{net_forward.1} parent=1 // pred_fallthru
      _
    // Predicated region
    $region18: #{net_forward.1} parent=1 // pred_check
      _
    $region19: #{net_forward.1} parent=1 // pred_check_branch
      %68 = sbr.rel (0) target = $region21
    $region20: #{net_forward.1} parent=1 // pred_region
      _
    $region21: #{net_forward.1} parent=1 // pred_fallthru
      _
    // Predicated region
    $region22: #{net_forward.1} parent=1 // pred_check
      _
    $region23: #{net_forward.1} parent=1 // pred_check_branch
      %70 = sbr.rel (0) target = $region25
    $region24: #{net_forward.1} parent=1 // pred_region
      _
    $region25: #{net_forward.1} parent=1 // pred_fallthru
      _
    // Predicated region
    $region26: #{net_forward.1} parent=1 // pred_check
      _
    $region27: #{net_forward.1} parent=1 // pred_check_branch
      %72 = sbr.rel (0) target = $region29
    $region28: #{net_forward.1} parent=1 // pred_region
      %s74 = ssub.s32 64, 64
      %75 = vsyncadd [#allocation6], %s74
      %s77 = sshll.u32 [#allocation7], 4
      %s78 = int_to_ptr.vmem [resolvable:$true] %s77
      %80 = dma.hbm_to_vmem [thread:$0]  %s6, 64, %s78, [#allocation6]
    $region29: #{net_forward.1} parent=1 // pred_fallthru
      _
    // Predicated region
    $region30: #{net_forward.1} parent=1 // pred_check
      _
    $region31: #{net_forward.1} parent=1 // pred_check_branch
      %82 = sbr.rel (0) target = $region33
    $region32: #{net_forward.1} parent=1 // pred_region
      %s84 = ssub.s32 16, 16
      %85 = vsyncadd [#allocation9], %s84
      %s87 = sshll.u32 [#allocation8], 4
      %s88 = int_to_ptr.vmem [resolvable:$true] %s87
      %90 = dma.hbm_to_vmem [thread:$0]  %s7, 16, %s88, [#allocation9]
    $region33: #{net_forward.1} parent=1 // pred_fallthru
      _
    // Predicated region
    $region34: #{net_forward.1} parent=1 // pred_check
      _
    $region35: #{net_forward.1} parent=1 // pred_check_branch
      %92 = sbr.rel (0) target = $region37
    $region36: #{net_forward.1} parent=1 // pred_region
      _
    $region37: #{net_forward.1} parent=1 // pred_fallthru
      _
    // Predicated region
    $region38: #{net_forward.1} parent=1 // pred_check
      _
    $region39: #{net_forward.1} parent=1 // pred_check_branch
      %94 = sbr.rel (0) target = $region41
    $region40: #{net_forward.1} parent=1 // pred_region
      _
    $region41: #{net_forward.1} parent=1 // pred_fallthru
      _
    // Predicated region
    $region42: #{net_forward.1} parent=1 // pred_check
      _
    $region43: #{net_forward.1} parent=1 // pred_check_branch
      %96 = sbr.rel (0) target = $region45
    $region44: #{net_forward.1} parent=1 // pred_region
      _
    $region45: #{net_forward.1} parent=1 // pred_fallthru
      _
    // Predicated region
    $region46: #{net_forward.1} parent=1 // pred_check
      _
    $region47: #{net_forward.1} parent=1 // pred_check_branch
      %98 = sbr.rel (0) target = $region49
    $region48: #{net_forward.1} parent=1 // pred_region
      _
    $region49: #{net_forward.1} parent=1 // pred_fallthru
      _
    // Predicated region
    $region50: #{net_forward.1} parent=1 // pred_check
      _
    $region51: #{net_forward.1} parent=1 // pred_check_branch
      %100 = sbr.rel (0) target = $region53
    $region52: #{net_forward.1} parent=1 // pred_region
      _
    $region53: #{net_forward.1} parent=1 // pred_fallthru
      _
    // Predicated region
    $region54: #{net_forward.1} parent=1 // pred_check
      _
    $region55: #{net_forward.1} parent=1 // pred_check_branch
      %102 = sbr.rel (0) target = $region57
    $region56: #{net_forward.1} parent=1 // pred_region
      %s104 = ssub.s32 144, 144
      %105 = vsyncadd [#allocation9], %s104
      %s106 = sshll.u32 [#allocation10], 4
      %s107 = int_to_ptr.vmem [resolvable:$true] %s106
      %112 = dma.hbm_to_vmem [thread:$0]  %s13, 144, %s107, [#allocation9], 48, 48, 3
    $region57: #{net_forward.1} parent=1 // pred_fallthru
      _
    // Predicated region
    $region58: #{net_forward.1} parent=1 // pred_check
      _
    $region59: #{net_forward.1} parent=1 // pred_check_branch
      %114 = sbr.rel (0) target = $region61
    $region60: #{net_forward.1} parent=1 // pred_region
      %s116 = ssub.s32 3072, 3072
      %117 = vsyncadd [#allocation12], %s116
      %s118 = sshll.u32 [#allocation11], 4
      %s119 = int_to_ptr.vmem [resolvable:$true] %s118
      %124 = dma.hbm_to_vmem [thread:$0]  %s14, 3072, %s119, [#allocation12], 64, 64, 4
    $region61: #{net_forward.1} parent=1 // pred_fallthru
      _
    // Predicated region
    $region62: #{net_forward.1} parent=1 // pred_check
      _
    $region63: #{net_forward.1} parent=1 // pred_check_branch
      %126 = sbr.rel (0) target = $region65
    $region64: #{net_forward.1} parent=1 // pred_region
      %s128 = ssub.s32 48, 48
      %129 = vsyncadd [#allocation12], %s128
      %s130 = sshll.u32 [#allocation13], 4
      %s131 = int_to_ptr.vmem [resolvable:$true] %s130
      %136 = dma.hbm_to_vmem [thread:$0]  %s15, 48, %s131, [#allocation12], 16, 16, 1
    $region65: #{net_forward.1} parent=1 // pred_fallthru
      _
    // Predicated region
    $region66: #{net_forward.1} parent=1 // pred_check
      _
    $region67: #{net_forward.1} parent=1 // pred_check_branch
      %138 = sbr.rel (0) target = $region69
    $region68: #{net_forward.1} parent=1 // pred_region
      %s140 = ssub.s32 48, 48
      %141 = vsyncadd [#allocation15], %s140
      %s142 = sshll.u32 [#allocation14], 4
      %s143 = int_to_ptr.vmem [resolvable:$true] %s142
      %148 = dma.hbm_to_vmem [thread:$0]  %s16, 48, %s143, [#allocation15], 16, 16, 1
    $region69: #{net_forward.1} parent=1 // pred_fallthru
      _
    // Predicated region
    $region70: #{net_forward.1} parent=1 // pred_check
      _
    $region71: #{net_forward.1} parent=1 // pred_check_branch
      %150 = sbr.rel (0) target = $region73
    $region72: #{net_forward.1} parent=1 // pred_region
      %s152 = ssub.s32 48, 48
      %153 = vsyncadd [#allocation15], %s152
      %s154 = sshll.u32 [#allocation16], 4
      %s155 = int_to_ptr.vmem [resolvable:$true] %s154
      %160 = dma.hbm_to_vmem [thread:$0]  %s17, 48, %s155, [#allocation15], 16, 16, 1
    $region73: #{net_forward.1} parent=1 // pred_fallthru
      _
    // Predicated region
    $region74: #{net_forward.1} parent=1 // pred_check
      _
    $region75: #{net_forward.1} parent=1 // pred_check_branch
      %162 = sbr.rel (0) target = $region77
    $region76: #{net_forward.1} parent=1 // pred_region
      %s164 = ssub.s32 3072, 3072
      %165 = vsyncadd [#allocation18], %s164
      %s166 = sshll.u32 [#allocation17], 4
      %s167 = int_to_ptr.vmem [resolvable:$true] %s166
      %172 = dma.hbm_to_vmem [thread:$0]  %s18, 3072, %s167, [#allocation18], 64, 64, 4
    $region77: #{net_forward.1} parent=1 // pred_fallthru
      _
    // Predicated region
    $region78: #{net_forward.1} parent=1 // pred_check
      _
    $region79: #{net_forward.1} parent=1 // pred_check_branch
      %174 = sbr.rel (0) target = $region81
    $region80: #{net_forward.1} parent=1 // pred_region
      %s176 = ssub.s32 48, 48
      %177 = vsyncadd [#allocation18], %s176
      %s178 = sshll.u32 [#allocation19], 4
      %s179 = int_to_ptr.vmem [resolvable:$true] %s178
      %184 = dma.hbm_to_vmem [thread:$0]  %s19, 48, %s179, [#allocation18], 16, 16, 1
    $region81: #{net_forward.1} parent=1 // pred_fallthru
      _
    // Predicated region
    $region82: #{net_forward.1} parent=1 // pred_check
      _
    $region83: #{net_forward.1} parent=1 // pred_check_branch
      %186 = sbr.rel (0) target = $region85
    $region84: #{net_forward.1} parent=1 // pred_region
      %s188 = ssub.s32 3072, 3072
      %189 = vsyncadd [#allocation21], %s188
      %s190 = sshll.u32 [#allocation20], 4
      %s191 = int_to_ptr.vmem [resolvable:$true] %s190
      %196 = dma.hbm_to_vmem [thread:$0]  %s20, 3072, %s191, [#allocation21], 64, 64, 4
    $region85: #{net_forward.1} parent=1 // pred_fallthru
      _
    // Predicated region
    $region86: #{net_forward.1} parent=1 // pred_check
      _
    $region87: #{net_forward.1} parent=1 // pred_check_branch
      %198 = sbr.rel (0) target = $region89
    $region88: #{net_forward.1} parent=1 // pred_region
      %s200 = ssub.s32 48, 48
      %201 = vsyncadd [#allocation21], %s200
      %s202 = sshll.u32 [#allocation22], 4
      %s203 = int_to_ptr.vmem [resolvable:$true] %s202
      %208 = dma.hbm_to_vmem [thread:$0]  %s21, 48, %s203, [#allocation21], 16, 16, 1
    $region89: #{net_forward.1} parent=1 // pred_fallthru
      _
    // Predicated region
    $region90: #{net_forward.1} parent=1 // pred_check
      _
    $region91: #{net_forward.1} parent=1 // pred_check_branch
      %210 = sbr.rel (0) target = $region93
    $region92: #{net_forward.1} parent=1 // pred_region
      %s212 = ssub.s32 48, 48
      %213 = vsyncadd [#allocation24], %s212
      %s214 = sshll.u32 [#allocation23], 4
      %s215 = int_to_ptr.vmem [resolvable:$true] %s214
      %220 = dma.hbm_to_vmem [thread:$0]  %s22, 48, %s215, [#allocation24], 16, 16, 1
    $region93: #{net_forward.1} parent=1 // pred_fallthru
      _
    // Predicated region
    $region94: #{net_forward.1} parent=1 // pred_check
      _
    $region95: #{net_forward.1} parent=1 // pred_check_branch
      %222 = sbr.rel (0) target = $region97
    $region96: #{net_forward.1} parent=1 // pred_region
      %s224 = ssub.s32 48, 48
      %225 = vsyncadd [#allocation24], %s224
      %s226 = sshll.u32 [#allocation25], 4
      %s227 = int_to_ptr.vmem [resolvable:$true] %s226
      %232 = dma.hbm_to_vmem [thread:$0]  %s23, 48, %s227, [#allocation24], 16, 16, 1
    $region97: #{net_forward.1} parent=1 // pred_fallthru
      _
    // Predicated region
    $region98: #{net_forward.1} parent=1 // pred_check
      _
    $region99: #{net_forward.1} parent=1 // pred_check_branch
      %234 = sbr.rel (0) target = $region101
    $region100: #{net_forward.1} parent=1 // pred_region
      %s236 = ssub.s32 2048, 2048
      %237 = vsyncadd [#allocation27], %s236
      %s238 = sshll.u32 [#allocation26], 4
      %s239 = int_to_ptr.vmem [resolvable:$true] %s238
      %244 = dma.hbm_to_vmem [thread:$0]  %s24, 2048, %s239, [#allocation27], 64, 64, 4
    $region101: #{net_forward.1} parent=1 // pred_fallthru
      _
    // Predicated region
    $region102: #{net_forward.1} parent=1 // pred_check
      _
    $region103: #{net_forward.1} parent=1 // pred_check_branch
      %246 = sbr.rel (0) target = $region105
    $region104: #{net_forward.1} parent=1 // pred_region
      %s248 = ssub.s32 16, 16
      %249 = vsyncadd [#allocation27], %s248
      %s251 = sshll.u32 [#allocation28], 4
      %s252 = int_to_ptr.vmem [resolvable:$true] %s251
      %254 = dma.hbm_to_vmem [thread:$0]  %s25, 16, %s252, [#allocation27]
    $region105: #{net_forward.1} parent=1 // pred_fallthru
      _
    // Predicated region
    $region106: #{net_forward.1} parent=1 // pred_check
      _
    $region107: #{net_forward.1} parent=1 // pred_check_branch
      %256 = sbr.rel (0) target = $region109
    $region108: #{net_forward.1} parent=1 // pred_region
      %257 = dma.done [#allocation3], 4096
    $region109: #{net_forward.1} parent=1 // pred_fallthru
      _
    // Predicated region
    $region110: #{net_forward.1} parent=1 // pred_check
      _
    $region111: #{net_forward.1} parent=1 // pred_check_branch
      %259 = sbr.rel (0) target = $region113
    $region112: #{net_forward.1} parent=1 // pred_region
      %260 = dma.done [#allocation6], 16
    $region113: #{net_forward.1} parent=1 // pred_fallthru
      _
    // Predicated region
    $region114: #{net_forward.1} parent=1 // pred_check
      _
    $region115: #{net_forward.1} parent=1 // pred_check_branch
      %262 = sbr.rel (0) target = $region117
    $region116: #{net_forward.1} parent=1 // pred_region
      %263 = dma.done [#allocation6], 64
    $region117: #{net_forward.1} parent=1 // pred_fallthru
      _
    // Predicated region
    $region118: #{net_forward.1} parent=1 // pred_check
      _
    $region119: #{net_forward.1} parent=1 // pred_check_branch
      %265 = sbr.rel (0) target = $region121
    $region120: #{net_forward.1} parent=1 // pred_region
      %266 = dma.done [#allocation9], 16
    $region121: #{net_forward.1} parent=1 // pred_fallthru
      _
    // Predicated region
    $region122: #{net_forward.1} parent=1 // pred_check
      _
    $region123: #{net_forward.1} parent=1 // pred_check_branch
      %268 = sbr.rel (0) target = $region125
    $region124: #{net_forward.1} parent=1 // pred_region
      %269 = dma.done [#allocation9], 144
    $region125: #{net_forward.1} parent=1 // pred_fallthru
      _
    // Predicated region
    $region126: #{net_forward.1} parent=1 // pred_check
      _
    $region127: #{net_forward.1} parent=1 // pred_check_branch
      %271 = sbr.rel (0) target = $region129
    $region128: #{net_forward.1} parent=1 // pred_region
      %272 = dma.done [#allocation12], 3072
    $region129: #{net_forward.1} parent=1 // pred_fallthru
      _
    // Predicated region
    $region130: #{net_forward.1} parent=1 // pred_check
      _
    $region131: #{net_forward.1} parent=1 // pred_check_branch
      %274 = sbr.rel (0) target = $region133
    $region132: #{net_forward.1} parent=1 // pred_region
      %275 = dma.done [#allocation12], 48
    $region133: #{net_forward.1} parent=1 // pred_fallthru
      _
    // Predicated region
    $region134: #{net_forward.1} parent=1 // pred_check
      _
    $region135: #{net_forward.1} parent=1 // pred_check_branch
      %277 = sbr.rel (0) target = $region137
    $region136: #{net_forward.1} parent=1 // pred_region
      %278 = dma.done [#allocation15], 48
    $region137: #{net_forward.1} parent=1 // pred_fallthru
      _
    // Predicated region
    $region138: #{net_forward.1} parent=1 // pred_check
      _
    $region139: #{net_forward.1} parent=1 // pred_check_branch
      %280 = sbr.rel (0) target = $region141
    $region140: #{net_forward.1} parent=1 // pred_region
      %281 = dma.done [#allocation15], 48
    $region141: #{net_forward.1} parent=1 // pred_fallthru
      _
    // Predicated region
    $region142: #{net_forward.1} parent=1 // pred_check
      _
    $region143: #{net_forward.1} parent=1 // pred_check_branch
      %283 = sbr.rel (0) target = $region145
    $region144: #{net_forward.1} parent=1 // pred_region
      %284 = dma.done [#allocation18], 3072
    $region145: #{net_forward.1} parent=1 // pred_fallthru
      _
    // Predicated region
    $region146: #{net_forward.1} parent=1 // pred_check
      _
    $region147: #{net_forward.1} parent=1 // pred_check_branch
      %286 = sbr.rel (0) target = $region149
    $region148: #{net_forward.1} parent=1 // pred_region
      %287 = dma.done [#allocation18], 48
    $region149: #{net_forward.1} parent=1 // pred_fallthru
      _
    // Predicated region
    $region150: #{net_forward.1} parent=1 // pred_check
      _
    $region151: #{net_forward.1} parent=1 // pred_check_branch
      %289 = sbr.rel (0) target = $region153
    $region152: #{net_forward.1} parent=1 // pred_region
      %290 = dma.done [#allocation21], 3072
    $region153: #{net_forward.1} parent=1 // pred_fallthru
      _
    // Predicated region
    $region154: #{net_forward.1} parent=1 // pred_check
      _
    $region155: #{net_forward.1} parent=1 // pred_check_branch
      %292 = sbr.rel (0) target = $region157
    $region156: #{net_forward.1} parent=1 // pred_region
      %293 = dma.done [#allocation21], 48
    $region157: #{net_forward.1} parent=1 // pred_fallthru
      _
    // Predicated region
    $region158: #{net_forward.1} parent=1 // pred_check
      _
    $region159: #{net_forward.1} parent=1 // pred_check_branch
      %295 = sbr.rel (0) target = $region161
    $region160: #{net_forward.1} parent=1 // pred_region
      %296 = dma.done [#allocation24], 48
    $region161: #{net_forward.1} parent=1 // pred_fallthru
      _
    // Predicated region
    $region162: #{net_forward.1} parent=1 // pred_check
      _
    $region163: #{net_forward.1} parent=1 // pred_check_branch
      %298 = sbr.rel (0) target = $region165
    $region164: #{net_forward.1} parent=1 // pred_region
      %299 = dma.done [#allocation24], 48
    $region165: #{net_forward.1} parent=1 // pred_fallthru
      _
    // Predicated region
    $region166: #{net_forward.1} parent=1 // pred_check
      _
    $region167: #{net_forward.1} parent=1 // pred_check_branch
      %301 = sbr.rel (0) target = $region169
    $region168: #{net_forward.1} parent=1 // pred_region
      %302 = dma.done [#allocation27], 2048
    $region169: #{net_forward.1} parent=1 // pred_fallthru
      _
    // Predicated region
    $region170: #{net_forward.1} parent=1 // pred_check
      _
    $region171: #{net_forward.1} parent=1 // pred_check_branch
      %304 = sbr.rel (0) target = $region173
    $region172: #{net_forward.1} parent=1 // pred_region
      %305 = dma.done [#allocation27], 16
    $region173: #{net_forward.1} parent=1 // pred_fallthru
      _
    %v307 = vld [vmem:[%s0] sm:$0xff]
    %v308 = vld [vmem:[%s0 + $0x8] sm:$0xff]
    %v309 = vld [vmem:[%s0 + $0x10] sm:$0xff]
    %v310 = vld [vmem:[%s0 + $0x18] sm:$0xff]
    %v311 = vld [vmem:[#allocation2] sm:$0xf]
    %v312 = vld [vmem:[#allocation2 + $0x4] sm:$0xf]
    %v313 = vld [vmem:[#allocation2 + $0x8] sm:$0xf]
    %v314 = vld [vmem:[#allocation2 + $0xc] sm:$0xf]
    %v315 = vld [vmem:[#allocation2 + $0x10] sm:$0xf]
    %v316 = vld [vmem:[#allocation2 + $0x14] sm:$0xf]
    %v317 = vld [vmem:[#allocation2 + $0x18] sm:$0xf]
    %v318 = vld [vmem:[#allocation2 + $0x1c] sm:$0xf]
    %v319 = vld [vmem:[#allocation2 + $0x20] sm:$0xf]
    %v320 = vld [vmem:[#allocation2 + $0x24] sm:$0xf]
    %v321 = vld [vmem:[#allocation2 + $0x28] sm:$0xf]
    %v322 = vld [vmem:[#allocation2 + $0x2c] sm:$0xf]
    %v323 = vld [vmem:[#allocation2 + $0x30] sm:$0xf]
    %v324 = vld [vmem:[#allocation2 + $0x34] sm:$0xf]
    %v325 = vld [vmem:[#allocation2 + $0x38] sm:$0xf]
    %v326 = vld [vmem:[#allocation2 + $0x3c] sm:$0xf]
    %v327 = vpack.c.bf16 %v308, %v307
    %v328 = vpack.c.bf16 %v310, %v309
    %v329 = vrot.slane %v307, 1
    %v330 = vrot.slane %v308, 1
    %v331 = vrot.slane %v309, 1
    %v332 = vrot.slane %v310, 1
    %v333 = vlaneseq
    %v334 = vshrl.u32 %v333, 7
    %vm335 = vcmp.lt.s32.totalorder %v334, 7
    %v336 = vsel %vm335, %v331, %v332
    %v337 = vsel %vm335, %v330, %v331
    %v338 = vsel %vm335, %v329, %v330
    %v339 = vsel %vm335, %v332, %v329
    %s340 = scalar_lea.vmem [#allocation2], 64
    %v341 = vld [vmem:[%s340] sm:$0xf]
    %v342 = vld [vmem:[%s340 + $0x4] sm:$0xf]
    %v343 = vld [vmem:[%s340 + $0x8] sm:$0xf]
    %v344 = vld [vmem:[%s340 + $0xc] sm:$0xf]
    %v345 = vld [vmem:[%s340 + $0x10] sm:$0xf]
    %v346 = vld [vmem:[%s340 + $0x14] sm:$0xf]
    %v347 = vld [vmem:[%s340 + $0x18] sm:$0xf]
    %v348 = vld [vmem:[%s340 + $0x1c] sm:$0xf]
    %v349 = vld [vmem:[%s340 + $0x20] sm:$0xf]
    %v350 = vld [vmem:[%s340 + $0x24] sm:$0xf]
    %v351 = vld [vmem:[%s340 + $0x28] sm:$0xf]
    %v352 = vld [vmem:[%s340 + $0x2c] sm:$0xf]
    %v353 = vld [vmem:[%s340 + $0x30] sm:$0xf]
    %v354 = vld [vmem:[%s340 + $0x34] sm:$0xf]
    %v355 = vld [vmem:[%s340 + $0x38] sm:$0xf]
    %v356 = vld [vmem:[%s340 + $0x3c] sm:$0xf]
    %v357 = vpack.c.bf16 %v337, %v338
    %v358 = vpack.c.bf16 %v339, %v336
    %v375 = vunpack.c.l.b16 %v341
    %v376 = vunpack.c.l.b16 %v342
    %v377 = vunpack.c.l.b16 %v343
    %v378 = vunpack.c.l.b16 %v344
    %v379 = vunpack.c.l.b16 %v345
    %v380 = vunpack.c.l.b16 %v346
    %v381 = vunpack.c.l.b16 %v347
    %v382 = vunpack.c.l.b16 %v348
    %v383 = vunpack.c.l.b16 %v349
    %v384 = vunpack.c.l.b16 %v350
    %v385 = vunpack.c.l.b16 %v351
    %v386 = vunpack.c.l.b16 %v352
    %v387 = vunpack.c.l.b16 %v353
    %v388 = vunpack.c.l.b16 %v354
    %v389 = vunpack.c.l.b16 %v355
    %v390 = vunpack.c.l.b16 %v356
    %v391 = vpack.c.b16 %v376, %v375
    %v392 = vpack.c.b16 %v378, %v377
    %v393 = vpack.c.b16 %v380, %v379
    %v394 = vpack.c.b16 %v382, %v381
    %v395 = vpack.c.b16 %v384, %v383
    %v396 = vpack.c.b16 %v386, %v385
    %v397 = vpack.c.b16 %v388, %v387
    %v398 = vpack.c.b16 %v390, %v389
    %407 = vmatprep.subr.bf16.mxu0 0
    %408 = vmatpush1.bf16.msra.mxu0 %v391
    %409 = vmatprep.subr.bf16.mxu0 0
    %410 = vmatpush1.bf16.msra.mxu0 %v392
    %411 = vmatprep.subr.bf16.mxu0 0
    %412 = vmatpush1.bf16.msra.mxu0 %v393
    %413 = vmatprep.subr.bf16.mxu0 0
    %414 = vmatpush1.bf16.msra.mxu0 %v394
    %415 = vmatprep.subr.bf16.mxu0 0
    %416 = vmatpush1.bf16.msra.mxu0 %v395
    %417 = vmatprep.subr.bf16.mxu0 0
    %418 = vmatpush1.bf16.msra.mxu0 %v396
    %419 = vmatprep.subr.bf16.mxu0 0
    %420 = vmatpush1.bf16.msra.mxu0 %v397
    %421 = vmatprep.subr.bf16.mxu0 0
    %422 = vmatpush1.bf16.msra.mxu0 %v398
    %423 = vmatprep.subr.bf16.mxu0 0
    %424 = vmatpush1.bf16.msra.mxu0 0
    %425 = vmatprep.subr.bf16.mxu0 0
    %426 = vmatpush1.bf16.msra.mxu0 0
    %427 = vmatprep.subr.bf16.mxu0 0
    %428 = vmatpush1.bf16.msra.mxu0 0
    %429 = vmatprep.subr.bf16.mxu0 0
    %430 = vmatpush1.bf16.msra.mxu0 0
    %431 = vmatprep.subr.bf16.mxu0 0
    %432 = vmatpush1.bf16.msra.mxu0 0
    %433 = vmatprep.subr.bf16.mxu0 0
    %434 = vmatpush1.bf16.msra.mxu0 0
    %435 = vmatprep.subr.bf16.mxu0 0
    %436 = vmatpush1.bf16.msra.mxu0 0
    %437 = vmatprep.subr.bf16.mxu0 0
    %438 = vmatpush1.bf16.msra.mxu0 0
    %439 = vmatprep.mubr.bf16.mxu0 0
    %440 = vmatmul.mubr.bf16.gmra.mrb[0].mxu0 %v357
    %v441 = vpop.f32.mrb[0].mxu0
    %v442 = vadd.f32 0.0, %v441
    %v443 = vpop.f32.mrb[0].mxu0
    %v444 = vpop.f32.mrb[0].mxu0
    %v445 = vadd.f32 0.0, %v444
    %v446 = vpop.f32.mrb[0].mxu0
    %447 = vmatprep.mubr.bf16.mxu0 0
    %448 = vmatmul.mubr.bf16.gmra.mrb[0].mxu0 %v358
    %v449 = vpop.f32.mrb[0].mxu0
    %v450 = vadd.f32 0.0, %v449
    %v451 = vpop.f32.mrb[0].mxu0
    %v452 = vpop.f32.mrb[0].mxu0
    %v453 = vadd.f32 0.0, %v452
    %v454 = vpop.f32.mrb[0].mxu0
    %455 = vdwg.mxu0
    %v472 = vunpack.c.l.b16 %v311
    %v473 = vunpack.c.l.b16 %v312
    %v474 = vunpack.c.l.b16 %v313
    %v475 = vunpack.c.l.b16 %v314
    %v476 = vunpack.c.l.b16 %v315
    %v477 = vunpack.c.l.b16 %v316
    %v478 = vunpack.c.l.b16 %v317
    %v479 = vunpack.c.l.b16 %v318
    %v480 = vunpack.c.l.b16 %v319
    %v481 = vunpack.c.l.b16 %v320
    %v482 = vunpack.c.l.b16 %v321
    %v483 = vunpack.c.l.b16 %v322
    %v484 = vunpack.c.l.b16 %v323
    %v485 = vunpack.c.l.b16 %v324
    %v486 = vunpack.c.l.b16 %v325
    %v487 = vunpack.c.l.b16 %v326
    %v488 = vpack.c.b16 %v473, %v472
    %v489 = vpack.c.b16 %v475, %v474
    %v490 = vpack.c.b16 %v477, %v476
    %v491 = vpack.c.b16 %v479, %v478
    %v492 = vpack.c.b16 %v481, %v480
    %v493 = vpack.c.b16 %v483, %v482
    %v494 = vpack.c.b16 %v485, %v484
    %v495 = vpack.c.b16 %v487, %v486
    %504 = vmatprep.subr.bf16.mxu0 0
    %505 = vmatpush1.bf16.msra.mxu0 %v488
    %506 = vmatprep.subr.bf16.mxu0 0
    %507 = vmatpush1.bf16.msra.mxu0 %v489
    %508 = vmatprep.subr.bf16.mxu0 0
    %509 = vmatpush1.bf16.msra.mxu0 %v490
    %510 = vmatprep.subr.bf16.mxu0 0
    %511 = vmatpush1.bf16.msra.mxu0 %v491
    %512 = vmatprep.subr.bf16.mxu0 0
    %513 = vmatpush1.bf16.msra.mxu0 %v492
    %514 = vmatprep.subr.bf16.mxu0 0
    %515 = vmatpush1.bf16.msra.mxu0 %v493
    %516 = vmatprep.subr.bf16.mxu0 0
    %517 = vmatpush1.bf16.msra.mxu0 %v494
    %518 = vmatprep.subr.bf16.mxu0 0
    %519 = vmatpush1.bf16.msra.mxu0 %v495
    %520 = vmatprep.subr.bf16.mxu0 0
    %521 = vmatpush1.bf16.msra.mxu0 0
    %522 = vmatprep.subr.bf16.mxu0 0
    %523 = vmatpush1.bf16.msra.mxu0 0
    %524 = vmatprep.subr.bf16.mxu0 0
    %525 = vmatpush1.bf16.msra.mxu0 0
    %526 = vmatprep.subr.bf16.mxu0 0
    %527 = vmatpush1.bf16.msra.mxu0 0
    %528 = vmatprep.subr.bf16.mxu0 0
    %529 = vmatpush1.bf16.msra.mxu0 0
    %530 = vmatprep.subr.bf16.mxu0 0
    %531 = vmatpush1.bf16.msra.mxu0 0
    %532 = vmatprep.subr.bf16.mxu0 0
    %533 = vmatpush1.bf16.msra.mxu0 0
    %534 = vmatprep.subr.bf16.mxu0 0
    %535 = vmatpush1.bf16.msra.mxu0 0
    %536 = vmatprep.mubr.bf16.mxu0 0
    %537 = vmatmul.mubr.bf16.gmra.mrb[0].mxu0 %v327
    %v538 = vpop.f32.mrb[0].mxu0
    %v539 = vadd.f32 %v442, %v538
    %v540 = vpop.f32.mrb[0].mxu0
    %v541 = vpop.f32.mrb[0].mxu0
    %v542 = vadd.f32 %v445, %v541
    %v543 = vpop.f32.mrb[0].mxu0
    %544 = vmatprep.mubr.bf16.mxu0 0
    %545 = vmatmul.mubr.bf16.gmra.mrb[0].mxu0 %v328
    %v546 = vpop.f32.mrb[0].mxu0
    %v547 = vadd.f32 %v450, %v546
    %v548 = vpop.f32.mrb[0].mxu0
    %v549 = vpop.f32.mrb[0].mxu0
    %v550 = vadd.f32 %v453, %v549
    %v551 = vpop.f32.mrb[0].mxu0
    %552 = vdwg.mxu0
    %v553 = vrot.slane %v307, 2
    %v554 = vrot.slane %v308, 2
    %v555 = vrot.slane %v309, 2
    %v556 = vrot.slane %v310, 2
    %vm557 = vcmp.lt.s32.totalorder %v334, 6
    %v558 = vsel %vm557, %v555, %v556
    %v559 = vsel %vm557, %v554, %v555
    %v560 = vsel %vm557, %v553, %v554
    %v561 = vsel %vm557, %v556, %v553
    %s562 = scalar_lea.vmem [#allocation2], 128
    %v563 = vld [vmem:[%s562] sm:$0xf]
    %v564 = vld [vmem:[%s562 + $0x4] sm:$0xf]
    %v565 = vld [vmem:[%s562 + $0x8] sm:$0xf]
    %v566 = vld [vmem:[%s562 + $0xc] sm:$0xf]
    %v567 = vld [vmem:[%s562 + $0x10] sm:$0xf]
    %v568 = vld [vmem:[%s562 + $0x14] sm:$0xf]
    %v569 = vld [vmem:[%s562 + $0x18] sm:$0xf]
    %v570 = vld [vmem:[%s562 + $0x1c] sm:$0xf]
    %v571 = vld [vmem:[%s562 + $0x20] sm:$0xf]
    %v572 = vld [vmem:[%s562 + $0x24] sm:$0xf]
    %v573 = vld [vmem:[%s562 + $0x28] sm:$0xf]
    %v574 = vld [vmem:[%s562 + $0x2c] sm:$0xf]
    %v575 = vld [vmem:[%s562 + $0x30] sm:$0xf]
    %v576 = vld [vmem:[%s562 + $0x34] sm:$0xf]
    %v577 = vld [vmem:[%s562 + $0x38] sm:$0xf]
    %v578 = vld [vmem:[%s562 + $0x3c] sm:$0xf]
    %v579 = vpack.c.bf16 %v559, %v560
    %v580 = vpack.c.bf16 %v561, %v558
    %v597 = vunpack.c.l.b16 %v563
    %v598 = vunpack.c.l.b16 %v564
    %v599 = vunpack.c.l.b16 %v565
    %v600 = vunpack.c.l.b16 %v566
    %v601 = vunpack.c.l.b16 %v567
    %v602 = vunpack.c.l.b16 %v568
    %v603 = vunpack.c.l.b16 %v569
    %v604 = vunpack.c.l.b16 %v570
    %v605 = vunpack.c.l.b16 %v571
    %v606 = vunpack.c.l.b16 %v572
    %v607 = vunpack.c.l.b16 %v573
    %v608 = vunpack.c.l.b16 %v574
    %v609 = vunpack.c.l.b16 %v575
    %v610 = vunpack.c.l.b16 %v576
    %v611 = vunpack.c.l.b16 %v577
    %v612 = vunpack.c.l.b16 %v578
    %v613 = vpack.c.b16 %v598, %v597
    %v614 = vpack.c.b16 %v600, %v599
    %v615 = vpack.c.b16 %v602, %v601
    %v616 = vpack.c.b16 %v604, %v603
    %v617 = vpack.c.b16 %v606, %v605
    %v618 = vpack.c.b16 %v608, %v607
    %v619 = vpack.c.b16 %v610, %v609
    %v620 = vpack.c.b16 %v612, %v611
    %629 = vmatprep.subr.bf16.mxu0 0
    %630 = vmatpush1.bf16.msra.mxu0 %v613
    %631 = vmatprep.subr.bf16.mxu0 0
    %632 = vmatpush1.bf16.msra.mxu0 %v614
    %633 = vmatprep.subr.bf16.mxu0 0
    %634 = vmatpush1.bf16.msra.mxu0 %v615
    %635 = vmatprep.subr.bf16.mxu0 0
    %636 = vmatpush1.bf16.msra.mxu0 %v616
    %637 = vmatprep.subr.bf16.mxu0 0
    %638 = vmatpush1.bf16.msra.mxu0 %v617
    %639 = vmatprep.subr.bf16.mxu0 0
    %640 = vmatpush1.bf16.msra.mxu0 %v618
    %641 = vmatprep.subr.bf16.mxu0 0
    %642 = vmatpush1.bf16.msra.mxu0 %v619
    %643 = vmatprep.subr.bf16.mxu0 0
    %644 = vmatpush1.bf16.msra.mxu0 %v620
    %645 = vmatprep.subr.bf16.mxu0 0
    %646 = vmatpush1.bf16.msra.mxu0 0
    %647 = vmatprep.subr.bf16.mxu0 0
    %648 = vmatpush1.bf16.msra.mxu0 0
    %649 = vmatprep.subr.bf16.mxu0 0
    %650 = vmatpush1.bf16.msra.mxu0 0
    %651 = vmatprep.subr.bf16.mxu0 0
    %652 = vmatpush1.bf16.msra.mxu0 0
    %653 = vmatprep.subr.bf16.mxu0 0
    %654 = vmatpush1.bf16.msra.mxu0 0
    %655 = vmatprep.subr.bf16.mxu0 0
    %656 = vmatpush1.bf16.msra.mxu0 0
    %657 = vmatprep.subr.bf16.mxu0 0
    %658 = vmatpush1.bf16.msra.mxu0 0
    %659 = vmatprep.subr.bf16.mxu0 0
    %660 = vmatpush1.bf16.msra.mxu0 0
    %661 = vmatprep.mubr.bf16.mxu0 0
    %662 = vmatmul.mubr.bf16.gmra.mrb[0].mxu0 %v579
    %v663 = vpop.f32.mrb[0].mxu0
    %v664 = vadd.f32 0.0, %v663
    %v665 = vpop.f32.mrb[0].mxu0
    %v666 = vpop.f32.mrb[0].mxu0
    %v667 = vadd.f32 0.0, %v666
    %v668 = vpop.f32.mrb[0].mxu0
    %669 = vmatprep.mubr.bf16.mxu0 0
    %670 = vmatmul.mubr.bf16.gmra.mrb[0].mxu0 %v580
    %v671 = vpop.f32.mrb[0].mxu0
    %v672 = vadd.f32 0.0, %v671
    %v673 = vpop.f32.mrb[0].mxu0
    %v674 = vpop.f32.mrb[0].mxu0
    %v675 = vadd.f32 0.0, %v674
    %v676 = vpop.f32.mrb[0].mxu0
    %677 = vdwg.mxu0
    %v678 = vadd.f32 %v539, %v664
    %v679 = vadd.f32 %v542, %v667
    %v680 = vadd.f32 %v547, %v672
    %v681 = vadd.f32 %v550, %v675
    %v682 = vrot.slane %v307, 3
    %v683 = vrot.slane %v308, 3
    %v684 = vrot.slane %v309, 3
    %v685 = vrot.slane %v310, 3
    %vm686 = vcmp.lt.s32.totalorder %v334, 5
    %v687 = vsel %vm686, %v684, %v685
    %v688 = vsel %vm686, %v683, %v684
    %v689 = vsel %vm686, %v682, %v683
    %v690 = vsel %vm686, %v685, %v682
    %s691 = scalar_lea.vmem [#allocation2], 192
    %v692 = vld [vmem:[%s691] sm:$0xf]
    %v693 = vld [vmem:[%s691 + $0x4] sm:$0xf]
    %v694 = vld [vmem:[%s691 + $0x8] sm:$0xf]
    %v695 = vld [vmem:[%s691 + $0xc] sm:$0xf]
    %v696 = vld [vmem:[%s691 + $0x10] sm:$0xf]
    %v697 = vld [vmem:[%s691 + $0x14] sm:$0xf]
    %v698 = vld [vmem:[%s691 + $0x18] sm:$0xf]
    %v699 = vld [vmem:[%s691 + $0x1c] sm:$0xf]
    %v700 = vld [vmem:[%s691 + $0x20] sm:$0xf]
    %v701 = vld [vmem:[%s691 + $0x24] sm:$0xf]
    %v702 = vld [vmem:[%s691 + $0x28] sm:$0xf]
    %v703 = vld [vmem:[%s691 + $0x2c] sm:$0xf]
    %v704 = vld [vmem:[%s691 + $0x30] sm:$0xf]
    %v705 = vld [vmem:[%s691 + $0x34] sm:$0xf]
    %v706 = vld [vmem:[%s691 + $0x38] sm:$0xf]
    %v707 = vld [vmem:[%s691 + $0x3c] sm:$0xf]
    %v708 = vpack.c.bf16 %v688, %v689
    %v709 = vpack.c.bf16 %v690, %v687
    %v726 = vunpack.c.l.b16 %v692
    %v727 = vunpack.c.l.b16 %v693
    %v728 = vunpack.c.l.b16 %v694
    %v729 = vunpack.c.l.b16 %v695
    %v730 = vunpack.c.l.b16 %v696
    %v731 = vunpack.c.l.b16 %v697
    %v732 = vunpack.c.l.b16 %v698
    %v733 = vunpack.c.l.b16 %v699
    %v734 = vunpack.c.l.b16 %v700
    %v735 = vunpack.c.l.b16 %v701
    %v736 = vunpack.c.l.b16 %v702
    %v737 = vunpack.c.l.b16 %v703
    %v738 = vunpack.c.l.b16 %v704
    %v739 = vunpack.c.l.b16 %v705
    %v740 = vunpack.c.l.b16 %v706
    %v741 = vunpack.c.l.b16 %v707
    %v742 = vpack.c.b16 %v727, %v726
    %v743 = vpack.c.b16 %v729, %v728
    %v744 = vpack.c.b16 %v731, %v730
    %v745 = vpack.c.b16 %v733, %v732
    %v746 = vpack.c.b16 %v735, %v734
    %v747 = vpack.c.b16 %v737, %v736
    %v748 = vpack.c.b16 %v739, %v738
    %v749 = vpack.c.b16 %v741, %v740
    %758 = vmatprep.subr.bf16.mxu0 0
    %759 = vmatpush1.bf16.msra.mxu0 %v742
    %760 = vmatprep.subr.bf16.mxu0 0
    %761 = vmatpush1.bf16.msra.mxu0 %v743
    %762 = vmatprep.subr.bf16.mxu0 0
    %763 = vmatpush1.bf16.msra.mxu0 %v744
    %764 = vmatprep.subr.bf16.mxu0 0
    %765 = vmatpush1.bf16.msra.mxu0 %v745
    %766 = vmatprep.subr.bf16.mxu0 0
    %767 = vmatpush1.bf16.msra.mxu0 %v746
    %768 = vmatprep.subr.bf16.mxu0 0
    %769 = vmatpush1.bf16.msra.mxu0 %v747
    %770 = vmatprep.subr.bf16.mxu0 0
    %771 = vmatpush1.bf16.msra.mxu0 %v748
    %772 = vmatprep.subr.bf16.mxu0 0
    %773 = vmatpush1.bf16.msra.mxu0 %v749
    %774 = vmatprep.subr.bf16.mxu0 0
    %775 = vmatpush1.bf16.msra.mxu0 0
    %776 = vmatprep.subr.bf16.mxu0 0
    %777 = vmatpush1.bf16.msra.mxu0 0
    %778 = vmatprep.subr.bf16.mxu0 0
    %779 = vmatpush1.bf16.msra.mxu0 0
    %780 = vmatprep.subr.bf16.mxu0 0
    %781 = vmatpush1.bf16.msra.mxu0 0
    %782 = vmatprep.subr.bf16.mxu0 0
    %783 = vmatpush1.bf16.msra.mxu0 0
    %784 = vmatprep.subr.bf16.mxu0 0
    %785 = vmatpush1.bf16.msra.mxu0 0
    %786 = vmatprep.subr.bf16.mxu0 0
    %787 = vmatpush1.bf16.msra.mxu0 0
    %788 = vmatprep.subr.bf16.mxu0 0
    %789 = vmatpush1.bf16.msra.mxu0 0
    %790 = vmatprep.mubr.bf16.mxu0 0
    %791 = vmatmul.mubr.bf16.gmra.mrb[0].mxu0 %v708
    %v792 = vpop.f32.mrb[0].mxu0
    %v793 = vadd.f32 0.0, %v792
    %v794 = vpop.f32.mrb[0].mxu0
    %v795 = vpop.f32.mrb[0].mxu0
    %v796 = vadd.f32 0.0, %v795
    %v797 = vpop.f32.mrb[0].mxu0
    %798 = vmatprep.mubr.bf16.mxu0 0
    %799 = vmatmul.mubr.bf16.gmra.mrb[0].mxu0 %v709
    %v800 = vpop.f32.mrb[0].mxu0
    %v801 = vadd.f32 0.0, %v800
    %v802 = vpop.f32.mrb[0].mxu0
    %v803 = vpop.f32.mrb[0].mxu0
    %v804 = vadd.f32 0.0, %v803
    %v805 = vpop.f32.mrb[0].mxu0
    %806 = vdwg.mxu0
    %v807 = vadd.f32 %v678, %v793
    %v808 = vadd.f32 %v679, %v796
    %v809 = vadd.f32 %v680, %v801
    %v810 = vadd.f32 %v681, %v804
    %v811 = vld [vmem:[#allocation5] sm:$0x1]
    %v813 = vlaneseq
    %v814 = vshrl.u32 %v813, 7
    %v815 = vsub.s32 0, %v814
    %v816 = vrot.slane %v811, %v815
    %v818 = vadd.f32 %v807, %v816
    %v819 = vadd.f32 %v808, %v816
    %v820 = vadd.f32 %v809, %v816
    %v821 = vadd.f32 %v810, %v816
    %v822 = vmax.f32 %v818, 0.0
    %v823 = vmax.f32 %v819, 0.0
    %v824 = vmax.f32 %v820, 0.0
    %v825 = vmax.f32 %v821, 0.0
    %v826 = vld [vmem:[%s3] sm:$0xff]
    %v827 = vld [vmem:[%s3 + $0x8] sm:$0xff]
    %v828 = vld [vmem:[%s3 + $0x10] sm:$0xff]
    %v829 = vld [vmem:[%s3 + $0x18] sm:$0xff]
    %v830 = vmul.f32 %v822, %v826
    %v831 = vmul.f32 %v823, %v827
    %v832 = vmul.f32 %v824, %v828
    %v833 = vmul.f32 %v825, %v829
    %v834 = vmax.f32 %v830, %v831
    %v835 = vrot.slane %v834, 4
    %v836 = vmax.f32 %v834, %v835
    %v837 = vrot.slane %v836, 2
    %v838 = vmax.f32 %v836, %v837
    %v839 = vrot.slane %v838, 1
    %v840 = vmax.f32 %v838, %v839
    %v841 = vmax.f32 %v832, %v833
    %v842 = vrot.slane %v841, 4
    %v843 = vmax.f32 %v841, %v842
    %v844 = vrot.slane %v843, 2
    %v845 = vmax.f32 %v843, %v844
    %v846 = vrot.slane %v845, 1
    %v847 = vmax.f32 %v845, %v846
    %v848 = vld [vmem:[%s4] sm:$0xff]
    %v849 = vld [vmem:[%s4 + $0x8] sm:$0xff]
    %v850 = vld [vmem:[%s5] sm:$0xff]
    %v851 = vld [vmem:[#allocation7] sm:$0xf]
    %v852 = vpack.c.bf16 %v850, %v850
    %v853 = vld [vmem:[#allocation8] sm:$0x1]
    %v855 = vlaneseq
    %v856 = vshrl.u32 %v855, 7
    %v857 = vsub.s32 0, %v856
    %v858 = vrot.slane %v853, %v857
    %vm860 = vcmask 64512
    %v862 = vsel %vm860, %v852, 0
    %vm864 = vcmask 1043456
    %v866 = vsel %vm864, %v851, 0
    %868 = vmatprep.subr.bf16.mxu0 0
    %869 = vmatpush1.bf16.msra.mxu0 %v866
    %870 = vmatprep.subr.bf16.mxu0 0
    %871 = vmatpush1.bf16.msra.mxu0 0
    %872 = vmatprep.subr.bf16.mxu0 0
    %873 = vmatpush1.bf16.msra.mxu0 0
    %874 = vmatprep.subr.bf16.mxu0 0
    %875 = vmatpush1.bf16.msra.mxu0 0
    %876 = vmatprep.subr.bf16.mxu0 0
    %877 = vmatpush1.bf16.msra.mxu0 0
    %878 = vmatprep.subr.bf16.mxu0 0
    %879 = vmatpush1.bf16.msra.mxu0 0
    %880 = vmatprep.subr.bf16.mxu0 0
    %881 = vmatpush1.bf16.msra.mxu0 0
    %882 = vmatprep.subr.bf16.mxu0 0
    %883 = vmatpush1.bf16.msra.mxu0 0
    %884 = vmatprep.subr.bf16.mxu0 0
    %885 = vmatpush1.bf16.msra.mxu0 0
    %886 = vmatprep.subr.bf16.mxu0 0
    %887 = vmatpush1.bf16.msra.mxu0 0
    %888 = vmatprep.subr.bf16.mxu0 0
    %889 = vmatpush1.bf16.msra.mxu0 0
    %890 = vmatprep.subr.bf16.mxu0 0
    %891 = vmatpush1.bf16.msra.mxu0 0
    %892 = vmatprep.subr.bf16.mxu0 0
    %893 = vmatpush1.bf16.msra.mxu0 0
    %894 = vmatprep.subr.bf16.mxu0 0
    %895 = vmatpush1.bf16.msra.mxu0 0
    %896 = vmatprep.subr.bf16.mxu0 0
    %897 = vmatpush1.bf16.msra.mxu0 0
    %898 = vmatprep.subr.bf16.mxu0 0
    %899 = vmatpush1.bf16.msra.mxu0 0
    %900 = vmatprep.mubr.bf16.mxu0 0
    %901 = vmatmul.mubr.bf16.gmra.mrb[0].mxu0 %v862
    %v902 = vpop.f32.mrb[0].mxu0
    %v903 = vadd.f32 %v858, %v902
    %v904 = vpop.f32.mrb[0].mxu0
    %v905 = vpop.f32.mrb[0].mxu0
    %v906 = vpop.f32.mrb[0].mxu0
    %907 = vdwg.mxu0
    %v908 = vld [vmem:[%s8] sm:$0xf]
    %v909 = vld [vmem:[%s8 + $0x4] sm:$0xf]
    %v910 = vpack.c.bf16 %v903, %v903
    %v913 = vunpack.c.l.b16 %v908
    %v914 = vunpack.c.l.b16 %v909
    %v915 = vpack.c.b16 %v914, %v913
    %v917 = vsel %vm860, %v915, 0
    %v920 = vsel %vm864, %v910, 0
    %922 = vmatprep.subr.bf16.mxu0 0
    %923 = vmatpush1.bf16.msra.mxu0 %v920
    %924 = vmatprep.subr.bf16.mxu0 0
    %925 = vmatpush1.bf16.msra.mxu0 0
    %926 = vmatprep.subr.bf16.mxu0 0
    %927 = vmatpush1.bf16.msra.mxu0 0
    %928 = vmatprep.subr.bf16.mxu0 0
    %929 = vmatpush1.bf16.msra.mxu0 0
    %930 = vmatprep.subr.bf16.mxu0 0
    %931 = vmatpush1.bf16.msra.mxu0 0
    %932 = vmatprep.subr.bf16.mxu0 0
    %933 = vmatpush1.bf16.msra.mxu0 0
    %934 = vmatprep.subr.bf16.mxu0 0
    %935 = vmatpush1.bf16.msra.mxu0 0
    %936 = vmatprep.subr.bf16.mxu0 0
    %937 = vmatpush1.bf16.msra.mxu0 0
    %938 = vmatprep.subr.bf16.mxu0 0
    %939 = vmatpush1.bf16.msra.mxu0 0
    %940 = vmatprep.subr.bf16.mxu0 0
    %941 = vmatpush1.bf16.msra.mxu0 0
    %942 = vmatprep.subr.bf16.mxu0 0
    %943 = vmatpush1.bf16.msra.mxu0 0
    %944 = vmatprep.subr.bf16.mxu0 0
    %945 = vmatpush1.bf16.msra.mxu0 0
    %946 = vmatprep.subr.bf16.mxu0 0
    %947 = vmatpush1.bf16.msra.mxu0 0
    %948 = vmatprep.subr.bf16.mxu0 0
    %949 = vmatpush1.bf16.msra.mxu0 0
    %950 = vmatprep.subr.bf16.mxu0 0
    %951 = vmatpush1.bf16.msra.mxu0 0
    %952 = vmatprep.subr.bf16.mxu0 0
    %953 = vmatpush1.bf16.msra.mxu0 0
    %954 = vmatprep.mubr.bf16.mxu0 0
    %955 = vmatmul.mubr.bf16.gmra.mrb[0].mxu0 %v917
    %v956 = vpop.f32.mrb[0].mxu0
    %v957 = vadd.f32 0.0, %v956
    %v958 = vpop.f32.mrb[0].mxu0
    %v959 = vpop.f32.mrb[0].mxu0
    %v960 = vadd.f32 0.0, %v959
    %v961 = vpop.f32.mrb[0].mxu0
    %962 = vdwg.mxu0
    %v963 = vadd.f32 %v848, %v957
    %v964 = vadd.f32 %v849, %v960
    %v965 = vld [vmem:[%s9] sm:$0xff]
    %v966 = vld [vmem:[%s9 + $0x8] sm:$0xff]
    %v967 = vld [vmem:[%s9 + $0x10] sm:$0xff]
    %v968 = vld [vmem:[%s9 + $0x18] sm:$0xff]
    %v969 = vld [vmem:[%s9 + $0x20] sm:$0xff]
    %v970 = vld [vmem:[%s9 + $0x28] sm:$0xff]
    %v971 = vld [vmem:[%s9 + $0x30] sm:$0xff]
    %v972 = vld [vmem:[%s9 + $0x38] sm:$0xff]
    %v973 = vld [vmem:[%s10] sm:$0xff]
    %v974 = vld [vmem:[%s10 + $0x8] sm:$0xff]
    %v975 = vld [vmem:[%s10 + $0x10] sm:$0xff]
    %v976 = vld [vmem:[%s10 + $0x18] sm:$0xff]
    %v977 = vld [vmem:[%s10 + $0x20] sm:$0xff]
    %v978 = vld [vmem:[%s10 + $0x28] sm:$0xff]
    %v979 = vld [vmem:[%s10 + $0x30] sm:$0xff]
    %v980 = vld [vmem:[%s10 + $0x38] sm:$0xff]
    %v981 = vld [vmem:[%s12] sm:$0xff]
    %v982 = vld [vmem:[%s12 + $0x8] sm:$0xf]
    %v983 = vld [vmem:[%s12 + $0xc] sm:$0xff]
    %v984 = vld [vmem:[%s12 + $0x14] sm:$0xf]
    %v985 = vld [vmem:[%s12 + $0x18] sm:$0xff]
    %v986 = vld [vmem:[%s12 + $0x20] sm:$0xf]
    %v987 = vld [vmem:[%s12 + $0x24] sm:$0xff]
    %v988 = vld [vmem:[%s12 + $0x2c] sm:$0xf]
    %v989 = vld [vmem:[%s12 + $0x30] sm:$0xff]
    %v990 = vld [vmem:[%s12 + $0x38] sm:$0xf]
    %v991 = vld [vmem:[%s12 + $0x3c] sm:$0xff]
    %v992 = vld [vmem:[%s12 + $0x44] sm:$0xf]
    %v993 = vld [vmem:[%s12 + $0x48] sm:$0xff]
    %v994 = vld [vmem:[%s12 + $0x50] sm:$0xf]
    %v995 = vld [vmem:[%s12 + $0x54] sm:$0xff]
    %v996 = vld [vmem:[%s12 + $0x5c] sm:$0xf]
    %v997 = vld [vmem:[%s12 + $0x60] sm:$0xff]
    %v998 = vld [vmem:[%s12 + $0x68] sm:$0xf]
    %v999 = vld [vmem:[%s12 + $0x6c] sm:$0xff]
    %v1000 = vld [vmem:[%s12 + $0x74] sm:$0xf]
    %v1001 = vld [vmem:[%s12 + $0x78] sm:$0xff]
    %v1002 = vld [vmem:[%s12 + $0x80] sm:$0xf]
    %v1003 = vld [vmem:[%s12 + $0x84] sm:$0xff]
    %v1004 = vld [vmem:[%s12 + $0x8c] sm:$0xf]
    %v1005 = vld [vmem:[%s12 + $0x90] sm:$0xff]
    %v1006 = vld [vmem:[%s12 + $0x98] sm:$0xf]
    %v1007 = vld [vmem:[%s12 + $0x9c] sm:$0xff]
    %v1008 = vld [vmem:[%s12 + $0xa4] sm:$0xf]
    %v1009 = vld [vmem:[%s12 + $0xa8] sm:$0xff]
    %v1010 = vld [vmem:[%s12 + $0xb0] sm:$0xf]
    %v1011 = vld [vmem:[%s12 + $0xb4] sm:$0xff]
    %v1012 = vld [vmem:[%s12 + $0xbc] sm:$0xf]
    %v1013 = vpack.c.bf16 %v964, %v963
    %v1014 = vld [vmem:[#allocation10] sm:$0x7]
    %v1016 = vlaneseq
    %v1017 = vshrl.u32 %v1016, 7
    %v1018 = vsub.s32 0, %v1017
    %v1019 = vrot.slane %v1014, %v1018
    %v1020 = vlaneseq
    %v1021 = vshrl.u32 %v1020, 7
    %v1022 = vsub.s32 1, %v1021
    %v1023 = vrot.slane %v1014, %v1022
    %v1024 = vlaneseq
    %v1025 = vshrl.u32 %v1024, 7
    %v1026 = vsub.s32 2, %v1025
    %v1027 = vrot.slane %v1014, %v1026
    %v1063 = vunpack.c.l.b16 %v981
    %v1064 = vunpack.c.h.b16 %v981
    %v1065 = vunpack.c.l.b16 %v982
    %v1066 = vunpack.c.l.b16 %v983
    %v1067 = vunpack.c.h.b16 %v983
    %v1068 = vunpack.c.l.b16 %v984
    %v1069 = vunpack.c.l.b16 %v985
    %v1070 = vunpack.c.h.b16 %v985
    %v1071 = vunpack.c.l.b16 %v986
    %v1072 = vunpack.c.l.b16 %v987
    %v1073 = vunpack.c.h.b16 %v987
    %v1074 = vunpack.c.l.b16 %v988
    %v1075 = vunpack.c.l.b16 %v989
    %v1076 = vunpack.c.h.b16 %v989
    %v1077 = vunpack.c.l.b16 %v990
    %v1078 = vunpack.c.l.b16 %v991
    %v1079 = vunpack.c.h.b16 %v991
    %v1080 = vunpack.c.l.b16 %v992
    %v1081 = vunpack.c.l.b16 %v993
    %v1082 = vunpack.c.h.b16 %v993
    %v1083 = vunpack.c.l.b16 %v994
    %v1084 = vunpack.c.l.b16 %v995
    %v1085 = vunpack.c.h.b16 %v995
    %v1086 = vunpack.c.l.b16 %v996
    %v1087 = vunpack.c.l.b16 %v997
    %v1088 = vunpack.c.h.b16 %v997
    %v1089 = vunpack.c.l.b16 %v998
    %v1090 = vunpack.c.l.b16 %v999
    %v1091 = vunpack.c.h.b16 %v999
    %v1092 = vunpack.c.l.b16 %v1000
    %v1093 = vunpack.c.l.b16 %v1001
    %v1094 = vunpack.c.h.b16 %v1001
    %v1095 = vunpack.c.l.b16 %v1002
    %v1096 = vunpack.c.l.b16 %v1003
    %v1097 = vunpack.c.h.b16 %v1003
    %v1098 = vunpack.c.l.b16 %v1004
    %v1099 = vunpack.c.l.b16 %v1005
    %v1100 = vunpack.c.h.b16 %v1005
    %v1101 = vunpack.c.l.b16 %v1006
    %v1102 = vunpack.c.l.b16 %v1007
    %v1103 = vunpack.c.h.b16 %v1007
    %v1104 = vunpack.c.l.b16 %v1008
    %v1105 = vunpack.c.l.b16 %v1009
    %v1106 = vunpack.c.h.b16 %v1009
    %v1107 = vunpack.c.l.b16 %v1010
    %v1108 = vunpack.c.l.b16 %v1011
    %v1109 = vunpack.c.h.b16 %v1011
    %v1110 = vunpack.c.l.b16 %v1012
    %v1111 = vpack.c.b16 %v1066, %v1063
    %v1112 = vpack.c.b16 %v1067, %v1064
    %v1113 = vpack.c.b16 %v1068, %v1065
    %v1114 = vpack.c.b16 %v1072, %v1069
    %v1115 = vpack.c.b16 %v1073, %v1070
    %v1116 = vpack.c.b16 %v1074, %v1071
    %v1117 = vpack.c.b16 %v1078, %v1075
    %v1118 = vpack.c.b16 %v1079, %v1076
    %v1119 = vpack.c.b16 %v1080, %v1077
    %v1120 = vpack.c.b16 %v1084, %v1081
    %v1121 = vpack.c.b16 %v1085, %v1082
    %v1122 = vpack.c.b16 %v1086, %v1083
    %v1123 = vpack.c.b16 %v1090, %v1087
    %v1124 = vpack.c.b16 %v1091, %v1088
    %v1125 = vpack.c.b16 %v1092, %v1089
    %v1126 = vpack.c.b16 %v1096, %v1093
    %v1127 = vpack.c.b16 %v1097, %v1094
    %v1128 = vpack.c.b16 %v1098, %v1095
    %v1129 = vpack.c.b16 %v1102, %v1099
    %v1130 = vpack.c.b16 %v1103, %v1100
    %v1131 = vpack.c.b16 %v1104, %v1101
    %v1132 = vpack.c.b16 %v1108, %v1105
    %v1133 = vpack.c.b16 %v1109, %v1106
    %v1134 = vpack.c.b16 %v1110, %v1107
    %1159 = vmatprep.subr.bf16.mxu0 %v1112
    %1160 = vmatpush1.bf16.msra.mxu0 %v1111
    %1161 = vmatprep.subr.bf16.mxu0 %v1115
    %1162 = vmatpush1.bf16.msra.mxu0 %v1114
    %1163 = vmatprep.subr.bf16.mxu0 %v1118
    %1164 = vmatpush1.bf16.msra.mxu0 %v1117
    %1165 = vmatprep.subr.bf16.mxu0 %v1121
    %1166 = vmatpush1.bf16.msra.mxu0 %v1120
    %1167 = vmatprep.subr.bf16.mxu0 %v1124
    %1168 = vmatpush1.bf16.msra.mxu0 %v1123
    %1169 = vmatprep.subr.bf16.mxu0 %v1127
    %1170 = vmatpush1.bf16.msra.mxu0 %v1126
    %1171 = vmatprep.subr.bf16.mxu0 %v1130
    %1172 = vmatpush1.bf16.msra.mxu0 %v1129
    %1173 = vmatprep.subr.bf16.mxu0 %v1133
    %1174 = vmatpush1.bf16.msra.mxu0 %v1132
    %1175 = vmatprep.subr.bf16.mxu0 0
    %1176 = vmatpush1.bf16.msra.mxu0 0
    %1177 = vmatprep.subr.bf16.mxu0 0
    %1178 = vmatpush1.bf16.msra.mxu0 0
    %1179 = vmatprep.subr.bf16.mxu0 0
    %1180 = vmatpush1.bf16.msra.mxu0 0
    %1181 = vmatprep.subr.bf16.mxu0 0
    %1182 = vmatpush1.bf16.msra.mxu0 0
    %1183 = vmatprep.subr.bf16.mxu0 0
    %1184 = vmatpush1.bf16.msra.mxu0 0
    %1185 = vmatprep.subr.bf16.mxu0 0
    %1186 = vmatpush1.bf16.msra.mxu0 0
    %1187 = vmatprep.subr.bf16.mxu0 0
    %1188 = vmatpush1.bf16.msra.mxu0 0
    %1189 = vmatprep.subr.bf16.mxu0 0
    %1190 = vmatpush1.bf16.msra.mxu0 0
    %1191 = vmatprep.mubr.bf16.mxu0 0
    %1192 = vmatmul.mubr.bf16.gmra.mrb[0].mxu0 %v1013
    %v1193 = vpop.f32.mrb[0].mxu0
    %v1194 = vadd.f32 %v1019, %v1193
    %v1195 = vpop.f32.mrb[0].mxu0
    %v1196 = vadd.f32 %v1023, %v1195
    %v1197 = vpop.f32.mrb[0].mxu0
    %v1198 = vadd.f32 %v1019, %v1197
    %v1199 = vpop.f32.mrb[0].mxu0
    %v1200 = vadd.f32 %v1023, %v1199
    %1201 = vdwg.mxu0
    %1202 = vmatprep.subr.bf16.mxu0 0
    %1203 = vmatpush1.bf16.msra.mxu0 %v1113
    %1204 = vmatprep.subr.bf16.mxu0 0
    %1205 = vmatpush1.bf16.msra.mxu0 %v1116
    %1206 = vmatprep.subr.bf16.mxu0 0
    %1207 = vmatpush1.bf16.msra.mxu0 %v1119
    %1208 = vmatprep.subr.bf16.mxu0 0
    %1209 = vmatpush1.bf16.msra.mxu0 %v1122
    %1210 = vmatprep.subr.bf16.mxu0 0
    %1211 = vmatpush1.bf16.msra.mxu0 %v1125
    %1212 = vmatprep.subr.bf16.mxu0 0
    %1213 = vmatpush1.bf16.msra.mxu0 %v1128
    %1214 = vmatprep.subr.bf16.mxu0 0
    %1215 = vmatpush1.bf16.msra.mxu0 %v1131
    %1216 = vmatprep.subr.bf16.mxu0 0
    %1217 = vmatpush1.bf16.msra.mxu0 %v1134
    %1218 = vmatprep.subr.bf16.mxu0 0
    %1219 = vmatpush1.bf16.msra.mxu0 0
    %1220 = vmatprep.subr.bf16.mxu0 0
    %1221 = vmatpush1.bf16.msra.mxu0 0
    %1222 = vmatprep.subr.bf16.mxu0 0
    %1223 = vmatpush1.bf16.msra.mxu0 0
    %1224 = vmatprep.subr.bf16.mxu0 0
    %1225 = vmatpush1.bf16.msra.mxu0 0
    %1226 = vmatprep.subr.bf16.mxu0 0
    %1227 = vmatpush1.bf16.msra.mxu0 0
    %1228 = vmatprep.subr.bf16.mxu0 0
    %1229 = vmatpush1.bf16.msra.mxu0 0
    %1230 = vmatprep.subr.bf16.mxu0 0
    %1231 = vmatpush1.bf16.msra.mxu0 0
    %1232 = vmatprep.subr.bf16.mxu0 0
    %1233 = vmatpush1.bf16.msra.mxu0 0
    %1234 = vmatprep.mubr.bf16.mxu0 0
    %1235 = vmatmul.mubr.bf16.gmra.mrb[0].mxu0 %v1013
    %v1236 = vpop.f32.mrb[0].mxu0
    %v1237 = vadd.f32 %v1027, %v1236
    %v1238 = vpop.f32.mrb[0].mxu0
    %v1239 = vpop.f32.mrb[0].mxu0
    %v1240 = vadd.f32 %v1027, %v1239
    %v1241 = vpop.f32.mrb[0].mxu0
    %1242 = vdwg.mxu0
    %v1243 = vmul.f32 %v1194, %v965
    %v1244 = vmul.f32 %v1198, %v966
    %v1245 = vmul.f32 %v1194, %v967
    %v1246 = vmul.f32 %v1198, %v968
    %v1247 = vmul.f32 %v1194, %v969
    %v1248 = vmul.f32 %v1198, %v970
    %v1249 = vmul.f32 %v1194, %v971
    %v1250 = vmul.f32 %v1198, %v972
    %v1251 = vpack.c.bf16 %v1244, %v1243
    %v1252 = vpack.c.bf16 %v1246, %v1245
    %v1253 = vpack.c.bf16 %v1248, %v1247
    %v1254 = vpack.c.bf16 %v1250, %v1249
    %v1255 = vpack.c.bf16 %v1200, %v1196
    %1256 = vmatprep.subr.bf16.mxu0 0
    %1257 = vmatpush1.bf16.xpose.msra.mxu0 %v1255
    %1258 = vmatprep.subr.bf16.mxu0 0
    %1259 = vmatpush1.bf16.xpose.msra.mxu0 0
    %1260 = vmatprep.subr.bf16.mxu0 0
    %1261 = vmatpush1.bf16.xpose.msra.mxu0 0
    %1262 = vmatprep.subr.bf16.mxu0 0
    %1263 = vmatpush1.bf16.xpose.msra.mxu0 0
    %1264 = vmatprep.subr.bf16.mxu0 0
    %1265 = vmatpush1.bf16.xpose.msra.mxu0 0
    %1266 = vmatprep.subr.bf16.mxu0 0
    %1267 = vmatpush1.bf16.xpose.msra.mxu0 0
    %1268 = vmatprep.subr.bf16.mxu0 0
    %1269 = vmatpush1.bf16.xpose.msra.mxu0 0
    %1270 = vmatprep.subr.bf16.mxu0 0
    %1271 = vmatpush1.bf16.xpose.msra.mxu0 0
    %1272 = vmatprep.subr.bf16.mxu0 0
    %1273 = vmatpush1.bf16.xpose.msra.mxu0 0
    %1274 = vmatprep.subr.bf16.mxu0 0
    %1275 = vmatpush1.bf16.xpose.msra.mxu0 0
    %1276 = vmatprep.subr.bf16.mxu0 0
    %1277 = vmatpush1.bf16.xpose.msra.mxu0 0
    %1278 = vmatprep.subr.bf16.mxu0 0
    %1279 = vmatpush1.bf16.xpose.msra.mxu0 0
    %1280 = vmatprep.subr.bf16.mxu0 0
    %1281 = vmatpush1.bf16.xpose.msra.mxu0 0
    %1282 = vmatprep.subr.bf16.mxu0 0
    %1283 = vmatpush1.bf16.xpose.msra.mxu0 0
    %1284 = vmatprep.subr.bf16.mxu0 0
    %1285 = vmatpush1.bf16.xpose.msra.mxu0 0
    %1286 = vmatprep.subr.bf16.mxu0 0
    %1287 = vmatpush1.bf16.xpose.msra.mxu0 0
    %1288 = vmatprep.mubr.bf16.mxu0 0
    %1289 = vmatmul.mubr.bf16.gmra.mrb[0].mxu0 %v1251
    %v1290 = vpop.f32.mrb[0].mxu0
    %v1291 = vadd.f32 0.0, %v1290
    %v1292 = vpop.f32.mrb[0].mxu0
    %v1293 = vpop.f32.mrb[0].mxu0
    %v1294 = vadd.f32 0.0, %v1293
    %v1295 = vpop.f32.mrb[0].mxu0
    %1296 = vmatprep.mubr.bf16.mxu0 0
    %1297 = vmatmul.mubr.bf16.gmra.mrb[0].mxu0 %v1252
    %v1298 = vpop.f32.mrb[0].mxu0
    %v1299 = vadd.f32 0.0, %v1298
    %v1300 = vpop.f32.mrb[0].mxu0
    %v1301 = vpop.f32.mrb[0].mxu0
    %v1302 = vadd.f32 0.0, %v1301
    %v1303 = vpop.f32.mrb[0].mxu0
    %1304 = vmatprep.mubr.bf16.mxu0 0
    %1305 = vmatmul.mubr.bf16.gmra.mrb[0].mxu0 %v1253
    %v1306 = vpop.f32.mrb[0].mxu0
    %v1307 = vadd.f32 0.0, %v1306
    %v1308 = vpop.f32.mrb[0].mxu0
    %v1309 = vpop.f32.mrb[0].mxu0
    %v1310 = vadd.f32 0.0, %v1309
    %v1311 = vpop.f32.mrb[0].mxu0
    %1312 = vmatprep.mubr.bf16.mxu0 0
    %1313 = vmatmul.mubr.bf16.gmra.mrb[0].mxu0 %v1254
    %v1314 = vpop.f32.mrb[0].mxu0
    %v1315 = vadd.f32 0.0, %v1314
    %v1316 = vpop.f32.mrb[0].mxu0
    %v1317 = vpop.f32.mrb[0].mxu0
    %v1318 = vadd.f32 0.0, %v1317
    %v1319 = vpop.f32.mrb[0].mxu0
    %1320 = vdwg.mxu0
    %v1321 = vmul.f32 %v1291, 0.17677669
    %v1322 = vmul.f32 %v1294, 0.17677669
    %v1323 = vmul.f32 %v1299, 0.17677669
    %v1324 = vmul.f32 %v1302, 0.17677669
    %v1325 = vmul.f32 %v1307, 0.17677669
    %v1326 = vmul.f32 %v1310, 0.17677669
    %v1327 = vmul.f32 %v1315, 0.17677669
    %v1328 = vmul.f32 %v1318, 0.17677669
    %v1329 = vadd.f32 %v1321, %v973
    %v1330 = vadd.f32 %v1322, %v974
    %v1331 = vadd.f32 %v1323, %v975
    %v1332 = vadd.f32 %v1324, %v976
    %v1333 = vadd.f32 %v1325, %v977
    %v1334 = vadd.f32 %v1326, %v978
    %v1335 = vadd.f32 %v1327, %v979
    %v1336 = vadd.f32 %v1328, %v980
    %vm1337 = vcmask 130048
    %v1338 = vsel %vm1337, %v1329, -inf
    %1339 = vmax.xlane.f32.xlu0 %v1338
    %v1340 = vpop.xlane.xlu0 %1339
    %v1341 = vsel %vm1337, %v1330, -inf
    %1342 = vmax.xlane.f32.xlu0 %v1341
    %v1343 = vpop.xlane.xlu0 %1342
    %v1344 = vsel %vm1337, %v1331, -inf
    %1345 = vmax.xlane.f32.xlu0 %v1344
    %v1346 = vpop.xlane.xlu0 %1345
    %v1347 = vsel %vm1337, %v1332, -inf
    %1348 = vmax.xlane.f32.xlu0 %v1347
    %v1349 = vpop.xlane.xlu0 %1348
    %v1350 = vsel %vm1337, %v1333, -inf
    %1351 = vmax.xlane.f32.xlu0 %v1350
    %v1352 = vpop.xlane.xlu0 %1351
    %v1353 = vsel %vm1337, %v1334, -inf
    %1354 = vmax.xlane.f32.xlu0 %v1353
    %v1355 = vpop.xlane.xlu0 %1354
    %v1356 = vsel %vm1337, %v1335, -inf
    %1357 = vmax.xlane.f32.xlu0 %v1356
    %v1358 = vpop.xlane.xlu0 %1357
    %v1359 = vsel %vm1337, %v1336, -inf
    %1360 = vmax.xlane.f32.xlu0 %v1359
    %v1361 = vpop.xlane.xlu0 %1360
    %v1362 = vsub.f32 %v1329, %v1340
    %v1363 = vsub.f32 %v1330, %v1343
    %v1364 = vsub.f32 %v1331, %v1346
    %v1365 = vsub.f32 %v1332, %v1349
    %v1366 = vsub.f32 %v1333, %v1352
    %v1367 = vsub.f32 %v1334, %v1355
    %v1368 = vsub.f32 %v1335, %v1358
    %v1369 = vsub.f32 %v1336, %v1361
    %v1370 = vmul.f32 %v1362, 1.442695
    %v1371 = vpow.pop %v1370
    %v1372 = vmul.f32 %v1363, 1.442695
    %v1373 = vpow.pop %v1372
    %v1374 = vmul.f32 %v1364, 1.442695
    %v1375 = vpow.pop %v1374
    %v1376 = vmul.f32 %v1365, 1.442695
    %v1377 = vpow.pop %v1376
    %v1378 = vmul.f32 %v1366, 1.442695
    %v1379 = vpow.pop %v1378
    %v1380 = vmul.f32 %v1367, 1.442695
    %v1381 = vpow.pop %v1380
    %v1382 = vmul.f32 %v1368, 1.442695
    %v1383 = vpow.pop %v1382
    %v1384 = vmul.f32 %v1369, 1.442695
    %v1385 = vpow.pop %v1384
    %v1386 = vsel %vm1337, %v1371, 0.0
    %1387 = vadd.xlane.f32.xlu0 %v1386
    %v1388 = vpop.xlane.xlu0 %1387
    %v1389 = vsel %vm1337, %v1373, 0.0
    %1390 = vadd.xlane.f32.xlu0 %v1389
    %v1391 = vpop.xlane.xlu0 %1390
    %v1392 = vsel %vm1337, %v1375, 0.0
    %1393 = vadd.xlane.f32.xlu0 %v1392
    %v1394 = vpop.xlane.xlu0 %1393
    %v1395 = vsel %vm1337, %v1377, 0.0
    %1396 = vadd.xlane.f32.xlu0 %v1395
    %v1397 = vpop.xlane.xlu0 %1396
    %v1398 = vsel %vm1337, %v1379, 0.0
    %1399 = vadd.xlane.f32.xlu0 %v1398
    %v1400 = vpop.xlane.xlu0 %1399
    %v1401 = vsel %vm1337, %v1381, 0.0
    %1402 = vadd.xlane.f32.xlu0 %v1401
    %v1403 = vpop.xlane.xlu0 %1402
    %v1404 = vsel %vm1337, %v1383, 0.0
    %1405 = vadd.xlane.f32.xlu0 %v1404
    %v1406 = vpop.xlane.xlu0 %1405
    %v1407 = vsel %vm1337, %v1385, 0.0
    %1408 = vadd.xlane.f32.xlu0 %v1407
    %v1409 = vpop.xlane.xlu0 %1408
    %v1410 = vrcp.pop %v1388
    %v1411 = vrcp.pop %v1391
    %v1412 = vrcp.pop %v1394
    %v1413 = vrcp.pop %v1397
    %v1414 = vrcp.pop %v1400
    %v1415 = vrcp.pop %v1403
    %v1416 = vrcp.pop %v1406
    %v1417 = vrcp.pop %v1409
    %v1418 = vmul.f32 %v1371, %v1410
    %v1419 = vmul.f32 %v1373, %v1411
    %v1420 = vmul.f32 %v1375, %v1412
    %v1421 = vmul.f32 %v1377, %v1413
    %v1422 = vmul.f32 %v1379, %v1414
    %v1423 = vmul.f32 %v1381, %v1415
    %v1424 = vmul.f32 %v1383, %v1416
    %v1425 = vmul.f32 %v1385, %v1417
    %v1426 = vpack.c.bf16 %v1419, %v1418
    %v1427 = vpack.c.bf16 %v1421, %v1420
    %v1428 = vpack.c.bf16 %v1423, %v1422
    %v1429 = vpack.c.bf16 %v1425, %v1424
    %v1430 = vpack.c.bf16 %v1240, %v1237
    %v1432 = vsel %vm1337, %v1426, 0
    %v1435 = vsel %vm1337, %v1427, 0
    %v1438 = vsel %vm1337, %v1428, 0
    %v1441 = vsel %vm1337, %v1429, 0
    %1443 = vmatprep.subr.bf16.mxu0 0
    %1444 = vmatpush1.bf16.msra.mxu0 %v1430
    %1445 = vmatprep.subr.bf16.mxu0 0
    %1446 = vmatpush1.bf16.msra.mxu0 0
    %1447 = vmatprep.subr.bf16.mxu0 0
    %1448 = vmatpush1.bf16.msra.mxu0 0
    %1449 = vmatprep.subr.bf16.mxu0 0
    %1450 = vmatpush1.bf16.msra.mxu0 0
    %1451 = vmatprep.subr.bf16.mxu0 0
    %1452 = vmatpush1.bf16.msra.mxu0 0
    %1453 = vmatprep.subr.bf16.mxu0 0
    %1454 = vmatpush1.bf16.msra.mxu0 0
    %1455 = vmatprep.subr.bf16.mxu0 0
    %1456 = vmatpush1.bf16.msra.mxu0 0
    %1457 = vmatprep.subr.bf16.mxu0 0
    %1458 = vmatpush1.bf16.msra.mxu0 0
    %1459 = vmatprep.subr.bf16.mxu0 0
    %1460 = vmatpush1.bf16.msra.mxu0 0
    %1461 = vmatprep.subr.bf16.mxu0 0
    %1462 = vmatpush1.bf16.msra.mxu0 0
    %1463 = vmatprep.subr.bf16.mxu0 0
    %1464 = vmatpush1.bf16.msra.mxu0 0
    %1465 = vmatprep.subr.bf16.mxu0 0
    %1466 = vmatpush1.bf16.msra.mxu0 0
    %1467 = vmatprep.subr.bf16.mxu0 0
    %1468 = vmatpush1.bf16.msra.mxu0 0
    %1469 = vmatprep.subr.bf16.mxu0 0
    %1470 = vmatpush1.bf16.msra.mxu0 0
    %1471 = vmatprep.subr.bf16.mxu0 0
    %1472 = vmatpush1.bf16.msra.mxu0 0
    %1473 = vmatprep.subr.bf16.mxu0 0
    %1474 = vmatpush1.bf16.msra.mxu0 0
    %1475 = vmatprep.mubr.bf16.mxu0 0
    %1476 = vmatmul.mubr.bf16.gmra.mrb[0].mxu0 %v1432
    %v1477 = vpop.f32.mrb[0].mxu0
    %v1478 = vadd.f32 0.0, %v1477
    %v1479 = vpop.f32.mrb[0].mxu0
    %v1480 = vpop.f32.mrb[0].mxu0
    %v1481 = vadd.f32 0.0, %v1480
    %v1482 = vpop.f32.mrb[0].mxu0
    %1483 = vmatprep.mubr.bf16.mxu0 0
    %1484 = vmatmul.mubr.bf16.gmra.mrb[0].mxu0 %v1435
    %v1485 = vpop.f32.mrb[0].mxu0
    %v1486 = vadd.f32 0.0, %v1485
    %v1487 = vpop.f32.mrb[0].mxu0
    %v1488 = vpop.f32.mrb[0].mxu0
    %v1489 = vadd.f32 0.0, %v1488
    %v1490 = vpop.f32.mrb[0].mxu0
    %1491 = vmatprep.mubr.bf16.mxu0 0
    %1492 = vmatmul.mubr.bf16.gmra.mrb[0].mxu0 %v1438
    %v1493 = vpop.f32.mrb[0].mxu0
    %v1494 = vadd.f32 0.0, %v1493
    %v1495 = vpop.f32.mrb[0].mxu0
    %v1496 = vpop.f32.mrb[0].mxu0
    %v1497 = vadd.f32 0.0, %v1496
    %v1498 = vpop.f32.mrb[0].mxu0
    %1499 = vmatprep.mubr.bf16.mxu0 0
    %1500 = vmatmul.mubr.bf16.gmra.mrb[0].mxu0 %v1441
    %v1501 = vpop.f32.mrb[0].mxu0
    %v1502 = vadd.f32 0.0, %v1501
    %v1503 = vpop.f32.mrb[0].mxu0
    %v1504 = vpop.f32.mrb[0].mxu0
    %v1505 = vadd.f32 0.0, %v1504
    %v1506 = vpop.f32.mrb[0].mxu0
    %1507 = vdwg.mxu0
    %v1508 = vmul.f32 %v1478, %v965
    %v1509 = vmul.f32 %v1481, %v966
    %v1510 = vmul.f32 %v1486, %v967
    %v1511 = vmul.f32 %v1489, %v968
    %v1512 = vmul.f32 %v1494, %v969
    %v1513 = vmul.f32 %v1497, %v970
    %v1514 = vmul.f32 %v1502, %v971
    %v1515 = vmul.f32 %v1505, %v972
    %v1516 = vadd.f32 %v1508, %v1510
    %v1517 = vadd.f32 %v1509, %v1511
    %v1518 = vadd.f32 %v1516, %v1512
    %v1519 = vadd.f32 %v1517, %v1513
    %v1520 = vadd.f32 %v1518, %v1514
    %v1521 = vadd.f32 %v1519, %v1515
    %v1522 = vld [vmem:[#allocation11] sm:$0xf]
    %v1523 = vld [vmem:[#allocation11 + $0x4] sm:$0xf]
    %v1524 = vld [vmem:[#allocation11 + $0x8] sm:$0xf]
    %v1525 = vld [vmem:[#allocation11 + $0xc] sm:$0xf]
    %v1526 = vld [vmem:[#allocation11 + $0x10] sm:$0xf]
    %v1527 = vld [vmem:[#allocation11 + $0x14] sm:$0xf]
    %v1528 = vld [vmem:[#allocation11 + $0x18] sm:$0xf]
    %v1529 = vld [vmem:[#allocation11 + $0x1c] sm:$0xf]
    %v1530 = vld [vmem:[#allocation11 + $0x20] sm:$0xf]
    %v1531 = vld [vmem:[#allocation11 + $0x24] sm:$0xf]
    %v1532 = vld [vmem:[#allocation11 + $0x28] sm:$0xf]
    %v1533 = vld [vmem:[#allocation11 + $0x2c] sm:$0xf]
    %v1534 = vld [vmem:[#allocation11 + $0x30] sm:$0xf]
    %v1535 = vld [vmem:[#allocation11 + $0x34] sm:$0xf]
    %v1536 = vld [vmem:[#allocation11 + $0x38] sm:$0xf]
    %v1537 = vld [vmem:[#allocation11 + $0x3c] sm:$0xf]
    %v1538 = vpack.c.bf16 %v1521, %v1520
    %v1539 = vld [vmem:[#allocation13] sm:$0x1]
    %v1541 = vlaneseq
    %v1542 = vshrl.u32 %v1541, 7
    %v1543 = vsub.s32 0, %v1542
    %v1544 = vrot.slane %v1539, %v1543
    %v1562 = vunpack.c.l.b16 %v1522
    %v1563 = vunpack.c.l.b16 %v1523
    %v1564 = vunpack.c.l.b16 %v1524
    %v1565 = vunpack.c.l.b16 %v1525
    %v1566 = vunpack.c.l.b16 %v1526
    %v1567 = vunpack.c.l.b16 %v1527
    %v1568 = vunpack.c.l.b16 %v1528
    %v1569 = vunpack.c.l.b16 %v1529
    %v1570 = vunpack.c.l.b16 %v1530
    %v1571 = vunpack.c.l.b16 %v1531
    %v1572 = vunpack.c.l.b16 %v1532
    %v1573 = vunpack.c.l.b16 %v1533
    %v1574 = vunpack.c.l.b16 %v1534
    %v1575 = vunpack.c.l.b16 %v1535
    %v1576 = vunpack.c.l.b16 %v1536
    %v1577 = vunpack.c.l.b16 %v1537
    %v1578 = vpack.c.b16 %v1563, %v1562
    %v1579 = vpack.c.b16 %v1565, %v1564
    %v1580 = vpack.c.b16 %v1567, %v1566
    %v1581 = vpack.c.b16 %v1569, %v1568
    %v1582 = vpack.c.b16 %v1571, %v1570
    %v1583 = vpack.c.b16 %v1573, %v1572
    %v1584 = vpack.c.b16 %v1575, %v1574
    %v1585 = vpack.c.b16 %v1577, %v1576
    %1594 = vmatprep.subr.bf16.mxu0 0
    %1595 = vmatpush1.bf16.msra.mxu0 %v1578
    %1596 = vmatprep.subr.bf16.mxu0 0
    %1597 = vmatpush1.bf16.msra.mxu0 %v1579
    %1598 = vmatprep.subr.bf16.mxu0 0
    %1599 = vmatpush1.bf16.msra.mxu0 %v1580
    %1600 = vmatprep.subr.bf16.mxu0 0
    %1601 = vmatpush1.bf16.msra.mxu0 %v1581
    %1602 = vmatprep.subr.bf16.mxu0 0
    %1603 = vmatpush1.bf16.msra.mxu0 %v1582
    %1604 = vmatprep.subr.bf16.mxu0 0
    %1605 = vmatpush1.bf16.msra.mxu0 %v1583
    %1606 = vmatprep.subr.bf16.mxu0 0
    %1607 = vmatpush1.bf16.msra.mxu0 %v1584
    %1608 = vmatprep.subr.bf16.mxu0 0
    %1609 = vmatpush1.bf16.msra.mxu0 %v1585
    %1610 = vmatprep.subr.bf16.mxu0 0
    %1611 = vmatpush1.bf16.msra.mxu0 0
    %1612 = vmatprep.subr.bf16.mxu0 0
    %1613 = vmatpush1.bf16.msra.mxu0 0
    %1614 = vmatprep.subr.bf16.mxu0 0
    %1615 = vmatpush1.bf16.msra.mxu0 0
    %1616 = vmatprep.subr.bf16.mxu0 0
    %1617 = vmatpush1.bf16.msra.mxu0 0
    %1618 = vmatprep.subr.bf16.mxu0 0
    %1619 = vmatpush1.bf16.msra.mxu0 0
    %1620 = vmatprep.subr.bf16.mxu0 0
    %1621 = vmatpush1.bf16.msra.mxu0 0
    %1622 = vmatprep.subr.bf16.mxu0 0
    %1623 = vmatpush1.bf16.msra.mxu0 0
    %1624 = vmatprep.subr.bf16.mxu0 0
    %1625 = vmatpush1.bf16.msra.mxu0 0
    %1626 = vmatprep.mubr.bf16.mxu0 0
    %1627 = vmatmul.mubr.bf16.gmra.mrb[0].mxu0 %v1538
    %v1628 = vpop.f32.mrb[0].mxu0
    %v1629 = vadd.f32 %v1544, %v1628
    %v1630 = vpop.f32.mrb[0].mxu0
    %v1631 = vpop.f32.mrb[0].mxu0
    %v1632 = vadd.f32 %v1544, %v1631
    %v1633 = vpop.f32.mrb[0].mxu0
    %1634 = vdwg.mxu0
    %v1635 = vadd.f32 %v963, %v1629
    %v1636 = vadd.f32 %v964, %v1632
    %v1637 = vld [vmem:[#allocation14] sm:$0x1]
    %v1638 = vld [vmem:[#allocation16] sm:$0x1]
    %1639 = vadd.xlane.f32.xlu0 %v1635
    %v1640 = vpop.xlane.xlu0 %1639
    %1641 = vadd.xlane.f32.xlu0 %v1636
    %v1642 = vpop.xlane.xlu0 %1641
    %v1643 = vrcp.pop 128.0
    %v1644 = vmul.f32 %v1640, %v1643
    %v1645 = vmul.f32 %v1642, %v1643
    %v1646 = vsub.f32 %v1635, %v1644
    %v1647 = vsub.f32 %v1636, %v1645
    %v1648 = vmul.f32 %v1646, %v1646
    %v1649 = vmul.f32 %v1647, %v1647
    %1650 = vadd.xlane.f32.xlu0 %v1648
    %v1651 = vpop.xlane.xlu0 %1650
    %1652 = vadd.xlane.f32.xlu0 %v1649
    %v1653 = vpop.xlane.xlu0 %1652
    %v1654 = vmul.f32 %v1651, %v1643
    %v1655 = vmul.f32 %v1653, %v1643
    %v1656 = vadd.f32 %v1654, 1e-05
    %v1657 = vadd.f32 %v1655, 1e-05
    %v1658 = vrsqrt.pop %v1656
    %v1659 = vrsqrt.pop %v1657
    %v1660 = vmul.f32 %v1646, %v1658
    %v1661 = vmul.f32 %v1647, %v1659
    %v1663 = vlaneseq
    %v1664 = vshrl.u32 %v1663, 7
    %v1665 = vsub.s32 0, %v1664
    %v1666 = vrot.slane %v1637, %v1665
    %v1668 = vmul.f32 %v1660, %v1666
    %v1669 = vmul.f32 %v1661, %v1666
    %v1671 = vlaneseq
    %v1672 = vshrl.u32 %v1671, 7
    %v1673 = vsub.s32 0, %v1672
    %v1674 = vrot.slane %v1638, %v1673
    %v1676 = vadd.f32 %v1668, %v1674
    %v1677 = vadd.f32 %v1669, %v1674
    %v1678 = vld [vmem:[#allocation17] sm:$0xf]
    %v1679 = vld [vmem:[#allocation17 + $0x4] sm:$0xf]
    %v1680 = vld [vmem:[#allocation17 + $0x8] sm:$0xf]
    %v1681 = vld [vmem:[#allocation17 + $0xc] sm:$0xf]
    %v1682 = vld [vmem:[#allocation17 + $0x10] sm:$0xf]
    %v1683 = vld [vmem:[#allocation17 + $0x14] sm:$0xf]
    %v1684 = vld [vmem:[#allocation17 + $0x18] sm:$0xf]
    %v1685 = vld [vmem:[#allocation17 + $0x1c] sm:$0xf]
    %v1686 = vld [vmem:[#allocation17 + $0x20] sm:$0xf]
    %v1687 = vld [vmem:[#allocation17 + $0x24] sm:$0xf]
    %v1688 = vld [vmem:[#allocation17 + $0x28] sm:$0xf]
    %v1689 = vld [vmem:[#allocation17 + $0x2c] sm:$0xf]
    %v1690 = vld [vmem:[#allocation17 + $0x30] sm:$0xf]
    %v1691 = vld [vmem:[#allocation17 + $0x34] sm:$0xf]
    %v1692 = vld [vmem:[#allocation17 + $0x38] sm:$0xf]
    %v1693 = vld [vmem:[#allocation17 + $0x3c] sm:$0xf]
    %v1694 = vpack.c.bf16 %v1677, %v1676
    %v1695 = vld [vmem:[#allocation19] sm:$0x1]
    %v1697 = vlaneseq
    %v1698 = vshrl.u32 %v1697, 7
    %v1699 = vsub.s32 0, %v1698
    %v1700 = vrot.slane %v1695, %v1699
    %v1718 = vunpack.c.l.b16 %v1678
    %v1719 = vunpack.c.l.b16 %v1679
    %v1720 = vunpack.c.l.b16 %v1680
    %v1721 = vunpack.c.l.b16 %v1681
    %v1722 = vunpack.c.l.b16 %v1682
    %v1723 = vunpack.c.l.b16 %v1683
    %v1724 = vunpack.c.l.b16 %v1684
    %v1725 = vunpack.c.l.b16 %v1685
    %v1726 = vunpack.c.l.b16 %v1686
    %v1727 = vunpack.c.l.b16 %v1687
    %v1728 = vunpack.c.l.b16 %v1688
    %v1729 = vunpack.c.l.b16 %v1689
    %v1730 = vunpack.c.l.b16 %v1690
    %v1731 = vunpack.c.l.b16 %v1691
    %v1732 = vunpack.c.l.b16 %v1692
    %v1733 = vunpack.c.l.b16 %v1693
    %v1734 = vpack.c.b16 %v1719, %v1718
    %v1735 = vpack.c.b16 %v1721, %v1720
    %v1736 = vpack.c.b16 %v1723, %v1722
    %v1737 = vpack.c.b16 %v1725, %v1724
    %v1738 = vpack.c.b16 %v1727, %v1726
    %v1739 = vpack.c.b16 %v1729, %v1728
    %v1740 = vpack.c.b16 %v1731, %v1730
    %v1741 = vpack.c.b16 %v1733, %v1732
    %1750 = vmatprep.subr.bf16.mxu0 0
    %1751 = vmatpush1.bf16.msra.mxu0 %v1734
    %1752 = vmatprep.subr.bf16.mxu0 0
    %1753 = vmatpush1.bf16.msra.mxu0 %v1735
    %1754 = vmatprep.subr.bf16.mxu0 0
    %1755 = vmatpush1.bf16.msra.mxu0 %v1736
    %1756 = vmatprep.subr.bf16.mxu0 0
    %1757 = vmatpush1.bf16.msra.mxu0 %v1737
    %1758 = vmatprep.subr.bf16.mxu0 0
    %1759 = vmatpush1.bf16.msra.mxu0 %v1738
    %1760 = vmatprep.subr.bf16.mxu0 0
    %1761 = vmatpush1.bf16.msra.mxu0 %v1739
    %1762 = vmatprep.subr.bf16.mxu0 0
    %1763 = vmatpush1.bf16.msra.mxu0 %v1740
    %1764 = vmatprep.subr.bf16.mxu0 0
    %1765 = vmatpush1.bf16.msra.mxu0 %v1741
    %1766 = vmatprep.subr.bf16.mxu0 0
    %1767 = vmatpush1.bf16.msra.mxu0 0
    %1768 = vmatprep.subr.bf16.mxu0 0
    %1769 = vmatpush1.bf16.msra.mxu0 0
    %1770 = vmatprep.subr.bf16.mxu0 0
    %1771 = vmatpush1.bf16.msra.mxu0 0
    %1772 = vmatprep.subr.bf16.mxu0 0
    %1773 = vmatpush1.bf16.msra.mxu0 0
    %1774 = vmatprep.subr.bf16.mxu0 0
    %1775 = vmatpush1.bf16.msra.mxu0 0
    %1776 = vmatprep.subr.bf16.mxu0 0
    %1777 = vmatpush1.bf16.msra.mxu0 0
    %1778 = vmatprep.subr.bf16.mxu0 0
    %1779 = vmatpush1.bf16.msra.mxu0 0
    %1780 = vmatprep.subr.bf16.mxu0 0
    %1781 = vmatpush1.bf16.msra.mxu0 0
    %1782 = vmatprep.mubr.bf16.mxu0 0
    %1783 = vmatmul.mubr.bf16.gmra.mrb[0].mxu0 %v1694
    %v1784 = vpop.f32.mrb[0].mxu0
    %v1785 = vadd.f32 %v1700, %v1784
    %v1786 = vpop.f32.mrb[0].mxu0
    %v1787 = vpop.f32.mrb[0].mxu0
    %v1788 = vadd.f32 %v1700, %v1787
    %v1789 = vpop.f32.mrb[0].mxu0
    %1790 = vdwg.mxu0
    %v1791 = vmax.f32 %v1785, 0.0
    %v1792 = vmax.f32 %v1788, 0.0
    %v1793 = vld [vmem:[#allocation20] sm:$0xf]
    %v1794 = vld [vmem:[#allocation20 + $0x4] sm:$0xf]
    %v1795 = vld [vmem:[#allocation20 + $0x8] sm:$0xf]
    %v1796 = vld [vmem:[#allocation20 + $0xc] sm:$0xf]
    %v1797 = vld [vmem:[#allocation20 + $0x10] sm:$0xf]
    %v1798 = vld [vmem:[#allocation20 + $0x14] sm:$0xf]
    %v1799 = vld [vmem:[#allocation20 + $0x18] sm:$0xf]
    %v1800 = vld [vmem:[#allocation20 + $0x1c] sm:$0xf]
    %v1801 = vld [vmem:[#allocation20 + $0x20] sm:$0xf]
    %v1802 = vld [vmem:[#allocation20 + $0x24] sm:$0xf]
    %v1803 = vld [vmem:[#allocation20 + $0x28] sm:$0xf]
    %v1804 = vld [vmem:[#allocation20 + $0x2c] sm:$0xf]
    %v1805 = vld [vmem:[#allocation20 + $0x30] sm:$0xf]
    %v1806 = vld [vmem:[#allocation20 + $0x34] sm:$0xf]
    %v1807 = vld [vmem:[#allocation20 + $0x38] sm:$0xf]
    %v1808 = vld [vmem:[#allocation20 + $0x3c] sm:$0xf]
    %v1809 = vpack.c.bf16 %v1792, %v1791
    %v1810 = vld [vmem:[#allocation22] sm:$0x1]
    %v1812 = vlaneseq
    %v1813 = vshrl.u32 %v1812, 7
    %v1814 = vsub.s32 0, %v1813
    %v1815 = vrot.slane %v1810, %v1814
    %v1833 = vunpack.c.l.b16 %v1793
    %v1834 = vunpack.c.l.b16 %v1794
    %v1835 = vunpack.c.l.b16 %v1795
    %v1836 = vunpack.c.l.b16 %v1796
    %v1837 = vunpack.c.l.b16 %v1797
    %v1838 = vunpack.c.l.b16 %v1798
    %v1839 = vunpack.c.l.b16 %v1799
    %v1840 = vunpack.c.l.b16 %v1800
    %v1841 = vunpack.c.l.b16 %v1801
    %v1842 = vunpack.c.l.b16 %v1802
    %v1843 = vunpack.c.l.b16 %v1803
    %v1844 = vunpack.c.l.b16 %v1804
    %v1845 = vunpack.c.l.b16 %v1805
    %v1846 = vunpack.c.l.b16 %v1806
    %v1847 = vunpack.c.l.b16 %v1807
    %v1848 = vunpack.c.l.b16 %v1808
    %v1849 = vpack.c.b16 %v1834, %v1833
    %v1850 = vpack.c.b16 %v1836, %v1835
    %v1851 = vpack.c.b16 %v1838, %v1837
    %v1852 = vpack.c.b16 %v1840, %v1839
    %v1853 = vpack.c.b16 %v1842, %v1841
    %v1854 = vpack.c.b16 %v1844, %v1843
    %v1855 = vpack.c.b16 %v1846, %v1845
    %v1856 = vpack.c.b16 %v1848, %v1847
    %1865 = vmatprep.subr.bf16.mxu0 0
    %1866 = vmatpush1.bf16.msra.mxu0 %v1849
    %1867 = vmatprep.subr.bf16.mxu0 0
    %1868 = vmatpush1.bf16.msra.mxu0 %v1850
    %1869 = vmatprep.subr.bf16.mxu0 0
    %1870 = vmatpush1.bf16.msra.mxu0 %v1851
    %1871 = vmatprep.subr.bf16.mxu0 0
    %1872 = vmatpush1.bf16.msra.mxu0 %v1852
    %1873 = vmatprep.subr.bf16.mxu0 0
    %1874 = vmatpush1.bf16.msra.mxu0 %v1853
    %1875 = vmatprep.subr.bf16.mxu0 0
    %1876 = vmatpush1.bf16.msra.mxu0 %v1854
    %1877 = vmatprep.subr.bf16.mxu0 0
    %1878 = vmatpush1.bf16.msra.mxu0 %v1855
    %1879 = vmatprep.subr.bf16.mxu0 0
    %1880 = vmatpush1.bf16.msra.mxu0 %v1856
    %1881 = vmatprep.subr.bf16.mxu0 0
    %1882 = vmatpush1.bf16.msra.mxu0 0
    %1883 = vmatprep.subr.bf16.mxu0 0
    %1884 = vmatpush1.bf16.msra.mxu0 0
    %1885 = vmatprep.subr.bf16.mxu0 0
    %1886 = vmatpush1.bf16.msra.mxu0 0
    %1887 = vmatprep.subr.bf16.mxu0 0
    %1888 = vmatpush1.bf16.msra.mxu0 0
    %1889 = vmatprep.subr.bf16.mxu0 0
    %1890 = vmatpush1.bf16.msra.mxu0 0
    %1891 = vmatprep.subr.bf16.mxu0 0
    %1892 = vmatpush1.bf16.msra.mxu0 0
    %1893 = vmatprep.subr.bf16.mxu0 0
    %1894 = vmatpush1.bf16.msra.mxu0 0
    %1895 = vmatprep.subr.bf16.mxu0 0
    %1896 = vmatpush1.bf16.msra.mxu0 0
    %1897 = vmatprep.mubr.bf16.mxu0 0
    %1898 = vmatmul.mubr.bf16.gmra.mrb[0].mxu0 %v1809
    %v1899 = vpop.f32.mrb[0].mxu0
    %v1900 = vadd.f32 %v1815, %v1899
    %v1901 = vpop.f32.mrb[0].mxu0
    %v1902 = vpop.f32.mrb[0].mxu0
    %v1903 = vadd.f32 %v1815, %v1902
    %v1904 = vpop.f32.mrb[0].mxu0
    %1905 = vdwg.mxu0
    %v1906 = vadd.f32 %v1676, %v1900
    %v1907 = vadd.f32 %v1677, %v1903
    %v1908 = vld [vmem:[#allocation23] sm:$0x1]
    %v1909 = vld [vmem:[#allocation25] sm:$0x1]
    %1910 = vadd.xlane.f32.xlu0 %v1906
    %v1911 = vpop.xlane.xlu0 %1910
    %1912 = vadd.xlane.f32.xlu0 %v1907
    %v1913 = vpop.xlane.xlu0 %1912
    %v1914 = vmul.f32 %v1911, %v1643
    %v1915 = vmul.f32 %v1913, %v1643
    %v1916 = vsub.f32 %v1906, %v1914
    %v1917 = vsub.f32 %v1907, %v1915
    %v1918 = vmul.f32 %v1916, %v1916
    %v1919 = vmul.f32 %v1917, %v1917
    %1920 = vadd.xlane.f32.xlu0 %v1918
    %v1921 = vpop.xlane.xlu0 %1920
    %1922 = vadd.xlane.f32.xlu0 %v1919
    %v1923 = vpop.xlane.xlu0 %1922
    %v1924 = vmul.f32 %v1921, %v1643
    %v1925 = vmul.f32 %v1923, %v1643
    %v1926 = vadd.f32 %v1924, 1e-05
    %v1927 = vadd.f32 %v1925, 1e-05
    %v1928 = vrsqrt.pop %v1926
    %v1929 = vrsqrt.pop %v1927
    %v1930 = vmul.f32 %v1916, %v1928
    %v1931 = vmul.f32 %v1917, %v1929
    %v1933 = vlaneseq
    %v1934 = vshrl.u32 %v1933, 7
    %v1935 = vsub.s32 0, %v1934
    %v1936 = vrot.slane %v1908, %v1935
    %v1938 = vmul.f32 %v1930, %v1936
    %v1939 = vmul.f32 %v1931, %v1936
    %v1941 = vlaneseq
    %v1942 = vshrl.u32 %v1941, 7
    %v1943 = vsub.s32 0, %v1942
    %v1944 = vrot.slane %v1909, %v1943
    %v1946 = vadd.f32 %v1938, %v1944
    %v1947 = vadd.f32 %v1939, %v1944
    %s1948 = scalar_lea.vmem %s12, 192
    %v1949 = vld [vmem:[%s1948] sm:$0xff]
    %v1950 = vld [vmem:[%s1948 + $0x8] sm:$0xf]
    %v1951 = vld [vmem:[%s1948 + $0xc] sm:$0xff]
    %v1952 = vld [vmem:[%s1948 + $0x14] sm:$0xf]
    %v1953 = vld [vmem:[%s1948 + $0x18] sm:$0xff]
    %v1954 = vld [vmem:[%s1948 + $0x20] sm:$0xf]
    %v1955 = vld [vmem:[%s1948 + $0x24] sm:$0xff]
    %v1956 = vld [vmem:[%s1948 + $0x2c] sm:$0xf]
    %v1957 = vld [vmem:[%s1948 + $0x30] sm:$0xff]
    %v1958 = vld [vmem:[%s1948 + $0x38] sm:$0xf]
    %v1959 = vld [vmem:[%s1948 + $0x3c] sm:$0xff]
    %v1960 = vld [vmem:[%s1948 + $0x44] sm:$0xf]
    %v1961 = vld [vmem:[%s1948 + $0x48] sm:$0xff]
    %v1962 = vld [vmem:[%s1948 + $0x50] sm:$0xf]
    %v1963 = vld [vmem:[%s1948 + $0x54] sm:$0xff]
    %v1964 = vld [vmem:[%s1948 + $0x5c] sm:$0xf]
    %v1965 = vld [vmem:[%s1948 + $0x60] sm:$0xff]
    %v1966 = vld [vmem:[%s1948 + $0x68] sm:$0xf]
    %v1967 = vld [vmem:[%s1948 + $0x6c] sm:$0xff]
    %v1968 = vld [vmem:[%s1948 + $0x74] sm:$0xf]
    %v1969 = vld [vmem:[%s1948 + $0x78] sm:$0xff]
    %v1970 = vld [vmem:[%s1948 + $0x80] sm:$0xf]
    %v1971 = vld [vmem:[%s1948 + $0x84] sm:$0xff]
    %v1972 = vld [vmem:[%s1948 + $0x8c] sm:$0xf]
    %v1973 = vld [vmem:[%s1948 + $0x90] sm:$0xff]
    %v1974 = vld [vmem:[%s1948 + $0x98] sm:$0xf]
    %v1975 = vld [vmem:[%s1948 + $0x9c] sm:$0xff]
    %v1976 = vld [vmem:[%s1948 + $0xa4] sm:$0xf]
    %v1977 = vld [vmem:[%s1948 + $0xa8] sm:$0xff]
    %v1978 = vld [vmem:[%s1948 + $0xb0] sm:$0xf]
    %v1979 = vld [vmem:[%s1948 + $0xb4] sm:$0xff]
    %v1980 = vld [vmem:[%s1948 + $0xbc] sm:$0xf]
    %v1981 = vpack.c.bf16 %v1947, %v1946
    %s1982 = scalar_lea.vmem [#allocation10], 3
    %v1983 = vld [vmem:[%s1982] sm:$0x7]
    %v1985 = vlaneseq
    %v1986 = vshrl.u32 %v1985, 7
    %v1987 = vsub.s32 0, %v1986
    %v1988 = vrot.slane %v1983, %v1987
    %v1989 = vlaneseq
    %v1990 = vshrl.u32 %v1989, 7
    %v1991 = vsub.s32 1, %v1990
    %v1992 = vrot.slane %v1983, %v1991
    %v1993 = vlaneseq
    %v1994 = vshrl.u32 %v1993, 7
    %v1995 = vsub.s32 2, %v1994
    %v1996 = vrot.slane %v1983, %v1995
    %v2032 = vunpack.c.l.b16 %v1949
    %v2033 = vunpack.c.h.b16 %v1949
    %v2034 = vunpack.c.l.b16 %v1950
    %v2035 = vunpack.c.l.b16 %v1951
    %v2036 = vunpack.c.h.b16 %v1951
    %v2037 = vunpack.c.l.b16 %v1952
    %v2038 = vunpack.c.l.b16 %v1953
    %v2039 = vunpack.c.h.b16 %v1953
    %v2040 = vunpack.c.l.b16 %v1954
    %v2041 = vunpack.c.l.b16 %v1955
    %v2042 = vunpack.c.h.b16 %v1955
    %v2043 = vunpack.c.l.b16 %v1956
    %v2044 = vunpack.c.l.b16 %v1957
    %v2045 = vunpack.c.h.b16 %v1957
    %v2046 = vunpack.c.l.b16 %v1958
    %v2047 = vunpack.c.l.b16 %v1959
    %v2048 = vunpack.c.h.b16 %v1959
    %v2049 = vunpack.c.l.b16 %v1960
    %v2050 = vunpack.c.l.b16 %v1961
    %v2051 = vunpack.c.h.b16 %v1961
    %v2052 = vunpack.c.l.b16 %v1962
    %v2053 = vunpack.c.l.b16 %v1963
    %v2054 = vunpack.c.h.b16 %v1963
    %v2055 = vunpack.c.l.b16 %v1964
    %v2056 = vunpack.c.l.b16 %v1965
    %v2057 = vunpack.c.h.b16 %v1965
    %v2058 = vunpack.c.l.b16 %v1966
    %v2059 = vunpack.c.l.b16 %v1967
    %v2060 = vunpack.c.h.b16 %v1967
    %v2061 = vunpack.c.l.b16 %v1968
    %v2062 = vunpack.c.l.b16 %v1969
    %v2063 = vunpack.c.h.b16 %v1969
    %v2064 = vunpack.c.l.b16 %v1970
    %v2065 = vunpack.c.l.b16 %v1971
    %v2066 = vunpack.c.h.b16 %v1971
    %v2067 = vunpack.c.l.b16 %v1972
    %v2068 = vunpack.c.l.b16 %v1973
    %v2069 = vunpack.c.h.b16 %v1973
    %v2070 = vunpack.c.l.b16 %v1974
    %v2071 = vunpack.c.l.b16 %v1975
    %v2072 = vunpack.c.h.b16 %v1975
    %v2073 = vunpack.c.l.b16 %v1976
    %v2074 = vunpack.c.l.b16 %v1977
    %v2075 = vunpack.c.h.b16 %v1977
    %v2076 = vunpack.c.l.b16 %v1978
    %v2077 = vunpack.c.l.b16 %v1979
    %v2078 = vunpack.c.h.b16 %v1979
    %v2079 = vunpack.c.l.b16 %v1980
    %v2080 = vpack.c.b16 %v2035, %v2032
    %v2081 = vpack.c.b16 %v2036, %v2033
    %v2082 = vpack.c.b16 %v2037, %v2034
    %v2083 = vpack.c.b16 %v2041, %v2038
    %v2084 = vpack.c.b16 %v2042, %v2039
    %v2085 = vpack.c.b16 %v2043, %v2040
    %v2086 = vpack.c.b16 %v2047, %v2044
    %v2087 = vpack.c.b16 %v2048, %v2045
    %v2088 = vpack.c.b16 %v2049, %v2046
    %v2089 = vpack.c.b16 %v2053, %v2050
    %v2090 = vpack.c.b16 %v2054, %v2051
    %v2091 = vpack.c.b16 %v2055, %v2052
    %v2092 = vpack.c.b16 %v2059, %v2056
    %v2093 = vpack.c.b16 %v2060, %v2057
    %v2094 = vpack.c.b16 %v2061, %v2058
    %v2095 = vpack.c.b16 %v2065, %v2062
    %v2096 = vpack.c.b16 %v2066, %v2063
    %v2097 = vpack.c.b16 %v2067, %v2064
    %v2098 = vpack.c.b16 %v2071, %v2068
    %v2099 = vpack.c.b16 %v2072, %v2069
    %v2100 = vpack.c.b16 %v2073, %v2070
    %v2101 = vpack.c.b16 %v2077, %v2074
    %v2102 = vpack.c.b16 %v2078, %v2075
    %v2103 = vpack.c.b16 %v2079, %v2076
    %2128 = vmatprep.subr.bf16.mxu0 %v2081
    %2129 = vmatpush1.bf16.msra.mxu0 %v2080
    %2130 = vmatprep.subr.bf16.mxu0 %v2084
    %2131 = vmatpush1.bf16.msra.mxu0 %v2083
    %2132 = vmatprep.subr.bf16.mxu0 %v2087
    %2133 = vmatpush1.bf16.msra.mxu0 %v2086
    %2134 = vmatprep.subr.bf16.mxu0 %v2090
    %2135 = vmatpush1.bf16.msra.mxu0 %v2089
    %2136 = vmatprep.subr.bf16.mxu0 %v2093
    %2137 = vmatpush1.bf16.msra.mxu0 %v2092
    %2138 = vmatprep.subr.bf16.mxu0 %v2096
    %2139 = vmatpush1.bf16.msra.mxu0 %v2095
    %2140 = vmatprep.subr.bf16.mxu0 %v2099
    %2141 = vmatpush1.bf16.msra.mxu0 %v2098
    %2142 = vmatprep.subr.bf16.mxu0 %v2102
    %2143 = vmatpush1.bf16.msra.mxu0 %v2101
    %2144 = vmatprep.subr.bf16.mxu0 0
    %2145 = vmatpush1.bf16.msra.mxu0 0
    %2146 = vmatprep.subr.bf16.mxu0 0
    %2147 = vmatpush1.bf16.msra.mxu0 0
    %2148 = vmatprep.subr.bf16.mxu0 0
    %2149 = vmatpush1.bf16.msra.mxu0 0
    %2150 = vmatprep.subr.bf16.mxu0 0
    %2151 = vmatpush1.bf16.msra.mxu0 0
    %2152 = vmatprep.subr.bf16.mxu0 0
    %2153 = vmatpush1.bf16.msra.mxu0 0
    %2154 = vmatprep.subr.bf16.mxu0 0
    %2155 = vmatpush1.bf16.msra.mxu0 0
    %2156 = vmatprep.subr.bf16.mxu0 0
    %2157 = vmatpush1.bf16.msra.mxu0 0
    %2158 = vmatprep.subr.bf16.mxu0 0
    %2159 = vmatpush1.bf16.msra.mxu0 0
    %2160 = vmatprep.mubr.bf16.mxu0 0
    %2161 = vmatmul.mubr.bf16.gmra.mrb[0].mxu0 %v1981
    %v2162 = vpop.f32.mrb[0].mxu0
    %v2163 = vadd.f32 %v1988, %v2162
    %v2164 = vpop.f32.mrb[0].mxu0
    %v2165 = vadd.f32 %v1992, %v2164
    %v2166 = vpop.f32.mrb[0].mxu0
    %v2167 = vadd.f32 %v1988, %v2166
    %v2168 = vpop.f32.mrb[0].mxu0
    %v2169 = vadd.f32 %v1992, %v2168
    %2170 = vdwg.mxu0
    %2171 = vmatprep.subr.bf16.mxu0 0
    %2172 = vmatpush1.bf16.msra.mxu0 %v2082
    %2173 = vmatprep.subr.bf16.mxu0 0
    %2174 = vmatpush1.bf16.msra.mxu0 %v2085
    %2175 = vmatprep.subr.bf16.mxu0 0
    %2176 = vmatpush1.bf16.msra.mxu0 %v2088
    %2177 = vmatprep.subr.bf16.mxu0 0
    %2178 = vmatpush1.bf16.msra.mxu0 %v2091
    %2179 = vmatprep.subr.bf16.mxu0 0
    %2180 = vmatpush1.bf16.msra.mxu0 %v2094
    %2181 = vmatprep.subr.bf16.mxu0 0
    %2182 = vmatpush1.bf16.msra.mxu0 %v2097
    %2183 = vmatprep.subr.bf16.mxu0 0
    %2184 = vmatpush1.bf16.msra.mxu0 %v2100
    %2185 = vmatprep.subr.bf16.mxu0 0
    %2186 = vmatpush1.bf16.msra.mxu0 %v2103
    %2187 = vmatprep.subr.bf16.mxu0 0
    %2188 = vmatpush1.bf16.msra.mxu0 0
    %2189 = vmatprep.subr.bf16.mxu0 0
    %2190 = vmatpush1.bf16.msra.mxu0 0
    %2191 = vmatprep.subr.bf16.mxu0 0
    %2192 = vmatpush1.bf16.msra.mxu0 0
    %2193 = vmatprep.subr.bf16.mxu0 0
    %2194 = vmatpush1.bf16.msra.mxu0 0
    %2195 = vmatprep.subr.bf16.mxu0 0
    %2196 = vmatpush1.bf16.msra.mxu0 0
    %2197 = vmatprep.subr.bf16.mxu0 0
    %2198 = vmatpush1.bf16.msra.mxu0 0
    %2199 = vmatprep.subr.bf16.mxu0 0
    %2200 = vmatpush1.bf16.msra.mxu0 0
    %2201 = vmatprep.subr.bf16.mxu0 0
    %2202 = vmatpush1.bf16.msra.mxu0 0
    %2203 = vmatprep.mubr.bf16.mxu0 0
    %2204 = vmatmul.mubr.bf16.gmra.mrb[0].mxu0 %v1981
    %v2205 = vpop.f32.mrb[0].mxu0
    %v2206 = vadd.f32 %v1996, %v2205
    %v2207 = vpop.f32.mrb[0].mxu0
    %v2208 = vpop.f32.mrb[0].mxu0
    %v2209 = vadd.f32 %v1996, %v2208
    %v2210 = vpop.f32.mrb[0].mxu0
    %2211 = vdwg.mxu0
    %v2212 = vmul.f32 %v2163, %v965
    %v2213 = vmul.f32 %v2167, %v966
    %v2214 = vmul.f32 %v2163, %v967
    %v2215 = vmul.f32 %v2167, %v968
    %v2216 = vmul.f32 %v2163, %v969
    %v2217 = vmul.f32 %v2167, %v970
    %v2218 = vmul.f32 %v2163, %v971
    %v2219 = vmul.f32 %v2167, %v972
    %v2220 = vpack.c.bf16 %v2213, %v2212
    %v2221 = vpack.c.bf16 %v2215, %v2214
    %v2222 = vpack.c.bf16 %v2217, %v2216
    %v2223 = vpack.c.bf16 %v2219, %v2218
    %v2224 = vpack.c.bf16 %v2169, %v2165
    %2225 = vmatprep.subr.bf16.mxu0 0
    %2226 = vmatpush1.bf16.xpose.msra.mxu0 %v2224
    %2227 = vmatprep.subr.bf16.mxu0 0
    %2228 = vmatpush1.bf16.xpose.msra.mxu0 0
    %2229 = vmatprep.subr.bf16.mxu0 0
    %2230 = vmatpush1.bf16.xpose.msra.mxu0 0
    %2231 = vmatprep.subr.bf16.mxu0 0
    %2232 = vmatpush1.bf16.xpose.msra.mxu0 0
    %2233 = vmatprep.subr.bf16.mxu0 0
    %2234 = vmatpush1.bf16.xpose.msra.mxu0 0
    %2235 = vmatprep.subr.bf16.mxu0 0
    %2236 = vmatpush1.bf16.xpose.msra.mxu0 0
    %2237 = vmatprep.subr.bf16.mxu0 0
    %2238 = vmatpush1.bf16.xpose.msra.mxu0 0
    %2239 = vmatprep.subr.bf16.mxu0 0
    %2240 = vmatpush1.bf16.xpose.msra.mxu0 0
    %2241 = vmatprep.subr.bf16.mxu0 0
    %2242 = vmatpush1.bf16.xpose.msra.mxu0 0
    %2243 = vmatprep.subr.bf16.mxu0 0
    %2244 = vmatpush1.bf16.xpose.msra.mxu0 0
    %2245 = vmatprep.subr.bf16.mxu0 0
    %2246 = vmatpush1.bf16.xpose.msra.mxu0 0
    %2247 = vmatprep.subr.bf16.mxu0 0
    %2248 = vmatpush1.bf16.xpose.msra.mxu0 0
    %2249 = vmatprep.subr.bf16.mxu0 0
    %2250 = vmatpush1.bf16.xpose.msra.mxu0 0
    %2251 = vmatprep.subr.bf16.mxu0 0
    %2252 = vmatpush1.bf16.xpose.msra.mxu0 0
    %2253 = vmatprep.subr.bf16.mxu0 0
    %2254 = vmatpush1.bf16.xpose.msra.mxu0 0
    %2255 = vmatprep.subr.bf16.mxu0 0
    %2256 = vmatpush1.bf16.xpose.msra.mxu0 0
    %2257 = vmatprep.mubr.bf16.mxu0 0
    %2258 = vmatmul.mubr.bf16.gmra.mrb[0].mxu0 %v2220
    %v2259 = vpop.f32.mrb[0].mxu0
    %v2260 = vadd.f32 0.0, %v2259
    %v2261 = vpop.f32.mrb[0].mxu0
    %v2262 = vpop.f32.mrb[0].mxu0
    %v2263 = vadd.f32 0.0, %v2262
    %v2264 = vpop.f32.mrb[0].mxu0
    %2265 = vmatprep.mubr.bf16.mxu0 0
    %2266 = vmatmul.mubr.bf16.gmra.mrb[0].mxu0 %v2221
    %v2267 = vpop.f32.mrb[0].mxu0
    %v2268 = vadd.f32 0.0, %v2267
    %v2269 = vpop.f32.mrb[0].mxu0
    %v2270 = vpop.f32.mrb[0].mxu0
    %v2271 = vadd.f32 0.0, %v2270
    %v2272 = vpop.f32.mrb[0].mxu0
    %2273 = vmatprep.mubr.bf16.mxu0 0
    %2274 = vmatmul.mubr.bf16.gmra.mrb[0].mxu0 %v2222
    %v2275 = vpop.f32.mrb[0].mxu0
    %v2276 = vadd.f32 0.0, %v2275
    %v2277 = vpop.f32.mrb[0].mxu0
    %v2278 = vpop.f32.mrb[0].mxu0
    %v2279 = vadd.f32 0.0, %v2278
    %v2280 = vpop.f32.mrb[0].mxu0
    %2281 = vmatprep.mubr.bf16.mxu0 0
    %2282 = vmatmul.mubr.bf16.gmra.mrb[0].mxu0 %v2223
    %v2283 = vpop.f32.mrb[0].mxu0
    %v2284 = vadd.f32 0.0, %v2283
    %v2285 = vpop.f32.mrb[0].mxu0
    %v2286 = vpop.f32.mrb[0].mxu0
    %v2287 = vadd.f32 0.0, %v2286
    %v2288 = vpop.f32.mrb[0].mxu0
    %2289 = vdwg.mxu0
    %v2290 = vmul.f32 %v2260, 0.17677669
    %v2291 = vmul.f32 %v2263, 0.17677669
    %v2292 = vmul.f32 %v2268, 0.17677669
    %v2293 = vmul.f32 %v2271, 0.17677669
    %v2294 = vmul.f32 %v2276, 0.17677669
    %v2295 = vmul.f32 %v2279, 0.17677669
    %v2296 = vmul.f32 %v2284, 0.17677669
    %v2297 = vmul.f32 %v2287, 0.17677669
    %v2298 = vadd.f32 %v2290, %v973
    %v2299 = vadd.f32 %v2291, %v974
    %v2300 = vadd.f32 %v2292, %v975
    %v2301 = vadd.f32 %v2293, %v976
    %v2302 = vadd.f32 %v2294, %v977
    %v2303 = vadd.f32 %v2295, %v978
    %v2304 = vadd.f32 %v2296, %v979
    %v2305 = vadd.f32 %v2297, %v980
    %v2306 = vsel %vm1337, %v2298, -inf
    %2307 = vmax.xlane.f32.xlu0 %v2306
    %v2308 = vpop.xlane.xlu0 %2307
    %v2309 = vsel %vm1337, %v2299, -inf
    %2310 = vmax.xlane.f32.xlu0 %v2309
    %v2311 = vpop.xlane.xlu0 %2310
    %v2312 = vsel %vm1337, %v2300, -inf
    %2313 = vmax.xlane.f32.xlu0 %v2312
    %v2314 = vpop.xlane.xlu0 %2313
    %v2315 = vsel %vm1337, %v2301, -inf
    %2316 = vmax.xlane.f32.xlu0 %v2315
    %v2317 = vpop.xlane.xlu0 %2316
    %v2318 = vsel %vm1337, %v2302, -inf
    %2319 = vmax.xlane.f32.xlu0 %v2318
    %v2320 = vpop.xlane.xlu0 %2319
    %v2321 = vsel %vm1337, %v2303, -inf
    %2322 = vmax.xlane.f32.xlu0 %v2321
    %v2323 = vpop.xlane.xlu0 %2322
    %v2324 = vsel %vm1337, %v2304, -inf
    %2325 = vmax.xlane.f32.xlu0 %v2324
    %v2326 = vpop.xlane.xlu0 %2325
    %v2327 = vsel %vm1337, %v2305, -inf
    %2328 = vmax.xlane.f32.xlu0 %v2327
    %v2329 = vpop.xlane.xlu0 %2328
    %v2330 = vsub.f32 %v2298, %v2308
    %v2331 = vsub.f32 %v2299, %v2311
    %v2332 = vsub.f32 %v2300, %v2314
    %v2333 = vsub.f32 %v2301, %v2317
    %v2334 = vsub.f32 %v2302, %v2320
    %v2335 = vsub.f32 %v2303, %v2323
    %v2336 = vsub.f32 %v2304, %v2326
    %v2337 = vsub.f32 %v2305, %v2329
    %v2338 = vmul.f32 %v2330, 1.442695
    %v2339 = vpow.pop %v2338
    %v2340 = vmul.f32 %v2331, 1.442695
    %v2341 = vpow.pop %v2340
    %v2342 = vmul.f32 %v2332, 1.442695
    %v2343 = vpow.pop %v2342
    %v2344 = vmul.f32 %v2333, 1.442695
    %v2345 = vpow.pop %v2344
    %v2346 = vmul.f32 %v2334, 1.442695
    %v2347 = vpow.pop %v2346
    %v2348 = vmul.f32 %v2335, 1.442695
    %v2349 = vpow.pop %v2348
    %v2350 = vmul.f32 %v2336, 1.442695
    %v2351 = vpow.pop %v2350
    %v2352 = vmul.f32 %v2337, 1.442695
    %v2353 = vpow.pop %v2352
    %v2354 = vsel %vm1337, %v2339, 0.0
    %2355 = vadd.xlane.f32.xlu0 %v2354
    %v2356 = vpop.xlane.xlu0 %2355
    %v2357 = vsel %vm1337, %v2341, 0.0
    %2358 = vadd.xlane.f32.xlu0 %v2357
    %v2359 = vpop.xlane.xlu0 %2358
    %v2360 = vsel %vm1337, %v2343, 0.0
    %2361 = vadd.xlane.f32.xlu0 %v2360
    %v2362 = vpop.xlane.xlu0 %2361
    %v2363 = vsel %vm1337, %v2345, 0.0
    %2364 = vadd.xlane.f32.xlu0 %v2363
    %v2365 = vpop.xlane.xlu0 %2364
    %v2366 = vsel %vm1337, %v2347, 0.0
    %2367 = vadd.xlane.f32.xlu0 %v2366
    %v2368 = vpop.xlane.xlu0 %2367
    %v2369 = vsel %vm1337, %v2349, 0.0
    %2370 = vadd.xlane.f32.xlu0 %v2369
    %v2371 = vpop.xlane.xlu0 %2370
    %v2372 = vsel %vm1337, %v2351, 0.0
    %2373 = vadd.xlane.f32.xlu0 %v2372
    %v2374 = vpop.xlane.xlu0 %2373
    %v2375 = vsel %vm1337, %v2353, 0.0
    %2376 = vadd.xlane.f32.xlu0 %v2375
    %v2377 = vpop.xlane.xlu0 %2376
    %v2378 = vrcp.pop %v2356
    %v2379 = vrcp.pop %v2359
    %v2380 = vrcp.pop %v2362
    %v2381 = vrcp.pop %v2365
    %v2382 = vrcp.pop %v2368
    %v2383 = vrcp.pop %v2371
    %v2384 = vrcp.pop %v2374
    %v2385 = vrcp.pop %v2377
    %v2386 = vmul.f32 %v2339, %v2378
    %v2387 = vmul.f32 %v2341, %v2379
    %v2388 = vmul.f32 %v2343, %v2380
    %v2389 = vmul.f32 %v2345, %v2381
    %v2390 = vmul.f32 %v2347, %v2382
    %v2391 = vmul.f32 %v2349, %v2383
    %v2392 = vmul.f32 %v2351, %v2384
    %v2393 = vmul.f32 %v2353, %v2385
    %v2394 = vpack.c.bf16 %v2387, %v2386
    %v2395 = vpack.c.bf16 %v2389, %v2388
    %v2396 = vpack.c.bf16 %v2391, %v2390
    %v2397 = vpack.c.bf16 %v2393, %v2392
    %v2398 = vpack.c.bf16 %v2209, %v2206
    %v2400 = vsel %vm1337, %v2394, 0
    %v2403 = vsel %vm1337, %v2395, 0
    %v2406 = vsel %vm1337, %v2396, 0
    %v2409 = vsel %vm1337, %v2397, 0
    %2411 = vmatprep.subr.bf16.mxu0 0
    %2412 = vmatpush1.bf16.msra.mxu0 %v2398
    %2413 = vmatprep.subr.bf16.mxu0 0
    %2414 = vmatpush1.bf16.msra.mxu0 0
    %2415 = vmatprep.subr.bf16.mxu0 0
    %2416 = vmatpush1.bf16.msra.mxu0 0
    %2417 = vmatprep.subr.bf16.mxu0 0
    %2418 = vmatpush1.bf16.msra.mxu0 0
    %2419 = vmatprep.subr.bf16.mxu0 0
    %2420 = vmatpush1.bf16.msra.mxu0 0
    %2421 = vmatprep.subr.bf16.mxu0 0
    %2422 = vmatpush1.bf16.msra.mxu0 0
    %2423 = vmatprep.subr.bf16.mxu0 0
    %2424 = vmatpush1.bf16.msra.mxu0 0
    %2425 = vmatprep.subr.bf16.mxu0 0
    %2426 = vmatpush1.bf16.msra.mxu0 0
    %2427 = vmatprep.subr.bf16.mxu0 0
    %2428 = vmatpush1.bf16.msra.mxu0 0
    %2429 = vmatprep.subr.bf16.mxu0 0
    %2430 = vmatpush1.bf16.msra.mxu0 0
    %2431 = vmatprep.subr.bf16.mxu0 0
    %2432 = vmatpush1.bf16.msra.mxu0 0
    %2433 = vmatprep.subr.bf16.mxu0 0
    %2434 = vmatpush1.bf16.msra.mxu0 0
    %2435 = vmatprep.subr.bf16.mxu0 0
    %2436 = vmatpush1.bf16.msra.mxu0 0
    %2437 = vmatprep.subr.bf16.mxu0 0
    %2438 = vmatpush1.bf16.msra.mxu0 0
    %2439 = vmatprep.subr.bf16.mxu0 0
    %2440 = vmatpush1.bf16.msra.mxu0 0
    %2441 = vmatprep.subr.bf16.mxu0 0
    %2442 = vmatpush1.bf16.msra.mxu0 0
    %2443 = vmatprep.mubr.bf16.mxu0 0
    %2444 = vmatmul.mubr.bf16.gmra.mrb[0].mxu0 %v2400
    %v2445 = vpop.f32.mrb[0].mxu0
    %v2446 = vadd.f32 0.0, %v2445
    %v2447 = vpop.f32.mrb[0].mxu0
    %v2448 = vpop.f32.mrb[0].mxu0
    %v2449 = vadd.f32 0.0, %v2448
    %v2450 = vpop.f32.mrb[0].mxu0
    %2451 = vmatprep.mubr.bf16.mxu0 0
    %2452 = vmatmul.mubr.bf16.gmra.mrb[0].mxu0 %v2403
    %v2453 = vpop.f32.mrb[0].mxu0
    %v2454 = vadd.f32 0.0, %v2453
    %v2455 = vpop.f32.mrb[0].mxu0
    %v2456 = vpop.f32.mrb[0].mxu0
    %v2457 = vadd.f32 0.0, %v2456
    %v2458 = vpop.f32.mrb[0].mxu0
    %2459 = vmatprep.mubr.bf16.mxu0 0
    %2460 = vmatmul.mubr.bf16.gmra.mrb[0].mxu0 %v2406
    %v2461 = vpop.f32.mrb[0].mxu0
    %v2462 = vadd.f32 0.0, %v2461
    %v2463 = vpop.f32.mrb[0].mxu0
    %v2464 = vpop.f32.mrb[0].mxu0
    %v2465 = vadd.f32 0.0, %v2464
    %v2466 = vpop.f32.mrb[0].mxu0
    %2467 = vmatprep.mubr.bf16.mxu0 0
    %2468 = vmatmul.mubr.bf16.gmra.mrb[0].mxu0 %v2409
    %v2469 = vpop.f32.mrb[0].mxu0
    %v2470 = vadd.f32 0.0, %v2469
    %v2471 = vpop.f32.mrb[0].mxu0
    %v2472 = vpop.f32.mrb[0].mxu0
    %v2473 = vadd.f32 0.0, %v2472
    %v2474 = vpop.f32.mrb[0].mxu0
    %2475 = vdwg.mxu0
    %v2476 = vmul.f32 %v2446, %v965
    %v2477 = vmul.f32 %v2449, %v966
    %v2478 = vmul.f32 %v2454, %v967
    %v2479 = vmul.f32 %v2457, %v968
    %v2480 = vmul.f32 %v2462, %v969
    %v2481 = vmul.f32 %v2465, %v970
    %v2482 = vmul.f32 %v2470, %v971
    %v2483 = vmul.f32 %v2473, %v972
    %v2484 = vadd.f32 %v2476, %v2478
    %v2485 = vadd.f32 %v2477, %v2479
    %v2486 = vadd.f32 %v2484, %v2480
    %v2487 = vadd.f32 %v2485, %v2481
    %v2488 = vadd.f32 %v2486, %v2482
    %v2489 = vadd.f32 %v2487, %v2483
    %s2490 = scalar_lea.vmem [#allocation11], 64
    %v2491 = vld [vmem:[%s2490] sm:$0xf]
    %v2492 = vld [vmem:[%s2490 + $0x4] sm:$0xf]
    %v2493 = vld [vmem:[%s2490 + $0x8] sm:$0xf]
    %v2494 = vld [vmem:[%s2490 + $0xc] sm:$0xf]
    %v2495 = vld [vmem:[%s2490 + $0x10] sm:$0xf]
    %v2496 = vld [vmem:[%s2490 + $0x14] sm:$0xf]
    %v2497 = vld [vmem:[%s2490 + $0x18] sm:$0xf]
    %v2498 = vld [vmem:[%s2490 + $0x1c] sm:$0xf]
    %v2499 = vld [vmem:[%s2490 + $0x20] sm:$0xf]
    %v2500 = vld [vmem:[%s2490 + $0x24] sm:$0xf]
    %v2501 = vld [vmem:[%s2490 + $0x28] sm:$0xf]
    %v2502 = vld [vmem:[%s2490 + $0x2c] sm:$0xf]
    %v2503 = vld [vmem:[%s2490 + $0x30] sm:$0xf]
    %v2504 = vld [vmem:[%s2490 + $0x34] sm:$0xf]
    %v2505 = vld [vmem:[%s2490 + $0x38] sm:$0xf]
    %v2506 = vld [vmem:[%s2490 + $0x3c] sm:$0xf]
    %v2507 = vpack.c.bf16 %v2489, %v2488
    %s2508 = scalar_lea.vmem [#allocation13], 1
    %v2509 = vld [vmem:[%s2508] sm:$0x1]
    %v2511 = vlaneseq
    %v2512 = vshrl.u32 %v2511, 7
    %v2513 = vsub.s32 0, %v2512
    %v2514 = vrot.slane %v2509, %v2513
    %v2532 = vunpack.c.l.b16 %v2491
    %v2533 = vunpack.c.l.b16 %v2492
    %v2534 = vunpack.c.l.b16 %v2493
    %v2535 = vunpack.c.l.b16 %v2494
    %v2536 = vunpack.c.l.b16 %v2495
    %v2537 = vunpack.c.l.b16 %v2496
    %v2538 = vunpack.c.l.b16 %v2497
    %v2539 = vunpack.c.l.b16 %v2498
    %v2540 = vunpack.c.l.b16 %v2499
    %v2541 = vunpack.c.l.b16 %v2500
    %v2542 = vunpack.c.l.b16 %v2501
    %v2543 = vunpack.c.l.b16 %v2502
    %v2544 = vunpack.c.l.b16 %v2503
    %v2545 = vunpack.c.l.b16 %v2504
    %v2546 = vunpack.c.l.b16 %v2505
    %v2547 = vunpack.c.l.b16 %v2506
    %v2548 = vpack.c.b16 %v2533, %v2532
    %v2549 = vpack.c.b16 %v2535, %v2534
    %v2550 = vpack.c.b16 %v2537, %v2536
    %v2551 = vpack.c.b16 %v2539, %v2538
    %v2552 = vpack.c.b16 %v2541, %v2540
    %v2553 = vpack.c.b16 %v2543, %v2542
    %v2554 = vpack.c.b16 %v2545, %v2544
    %v2555 = vpack.c.b16 %v2547, %v2546
    %2564 = vmatprep.subr.bf16.mxu0 0
    %2565 = vmatpush1.bf16.msra.mxu0 %v2548
    %2566 = vmatprep.subr.bf16.mxu0 0
    %2567 = vmatpush1.bf16.msra.mxu0 %v2549
    %2568 = vmatprep.subr.bf16.mxu0 0
    %2569 = vmatpush1.bf16.msra.mxu0 %v2550
    %2570 = vmatprep.subr.bf16.mxu0 0
    %2571 = vmatpush1.bf16.msra.mxu0 %v2551
    %2572 = vmatprep.subr.bf16.mxu0 0
    %2573 = vmatpush1.bf16.msra.mxu0 %v2552
    %2574 = vmatprep.subr.bf16.mxu0 0
    %2575 = vmatpush1.bf16.msra.mxu0 %v2553
    %2576 = vmatprep.subr.bf16.mxu0 0
    %2577 = vmatpush1.bf16.msra.mxu0 %v2554
    %2578 = vmatprep.subr.bf16.mxu0 0
    %2579 = vmatpush1.bf16.msra.mxu0 %v2555
    %2580 = vmatprep.subr.bf16.mxu0 0
    %2581 = vmatpush1.bf16.msra.mxu0 0
    %2582 = vmatprep.subr.bf16.mxu0 0
    %2583 = vmatpush1.bf16.msra.mxu0 0
    %2584 = vmatprep.subr.bf16.mxu0 0
    %2585 = vmatpush1.bf16.msra.mxu0 0
    %2586 = vmatprep.subr.bf16.mxu0 0
    %2587 = vmatpush1.bf16.msra.mxu0 0
    %2588 = vmatprep.subr.bf16.mxu0 0
    %2589 = vmatpush1.bf16.msra.mxu0 0
    %2590 = vmatprep.subr.bf16.mxu0 0
    %2591 = vmatpush1.bf16.msra.mxu0 0
    %2592 = vmatprep.subr.bf16.mxu0 0
    %2593 = vmatpush1.bf16.msra.mxu0 0
    %2594 = vmatprep.subr.bf16.mxu0 0
    %2595 = vmatpush1.bf16.msra.mxu0 0
    %2596 = vmatprep.mubr.bf16.mxu0 0
    %2597 = vmatmul.mubr.bf16.gmra.mrb[0].mxu0 %v2507
    %v2598 = vpop.f32.mrb[0].mxu0
    %v2599 = vadd.f32 %v2514, %v2598
    %v2600 = vpop.f32.mrb[0].mxu0
    %v2601 = vpop.f32.mrb[0].mxu0
    %v2602 = vadd.f32 %v2514, %v2601
    %v2603 = vpop.f32.mrb[0].mxu0
    %2604 = vdwg.mxu0
    %v2605 = vadd.f32 %v1946, %v2599
    %v2606 = vadd.f32 %v1947, %v2602
    %s2607 = scalar_lea.vmem [#allocation14], 1
    %v2608 = vld [vmem:[%s2607] sm:$0x1]
    %s2609 = scalar_lea.vmem [#allocation16], 1
    %v2610 = vld [vmem:[%s2609] sm:$0x1]
    %2611 = vadd.xlane.f32.xlu0 %v2605
    %v2612 = vpop.xlane.xlu0 %2611
    %2613 = vadd.xlane.f32.xlu0 %v2606
    %v2614 = vpop.xlane.xlu0 %2613
    %v2615 = vmul.f32 %v2612, %v1643
    %v2616 = vmul.f32 %v2614, %v1643
    %v2617 = vsub.f32 %v2605, %v2615
    %v2618 = vsub.f32 %v2606, %v2616
    %v2619 = vmul.f32 %v2617, %v2617
    %v2620 = vmul.f32 %v2618, %v2618
    %2621 = vadd.xlane.f32.xlu0 %v2619
    %v2622 = vpop.xlane.xlu0 %2621
    %2623 = vadd.xlane.f32.xlu0 %v2620
    %v2624 = vpop.xlane.xlu0 %2623
    %v2625 = vmul.f32 %v2622, %v1643
    %v2626 = vmul.f32 %v2624, %v1643
    %v2627 = vadd.f32 %v2625, 1e-05
    %v2628 = vadd.f32 %v2626, 1e-05
    %v2629 = vrsqrt.pop %v2627
    %v2630 = vrsqrt.pop %v2628
    %v2631 = vmul.f32 %v2617, %v2629
    %v2632 = vmul.f32 %v2618, %v2630
    %v2634 = vlaneseq
    %v2635 = vshrl.u32 %v2634, 7
    %v2636 = vsub.s32 0, %v2635
    %v2637 = vrot.slane %v2608, %v2636
    %v2639 = vmul.f32 %v2631, %v2637
    %v2640 = vmul.f32 %v2632, %v2637
    %v2642 = vlaneseq
    %v2643 = vshrl.u32 %v2642, 7
    %v2644 = vsub.s32 0, %v2643
    %v2645 = vrot.slane %v2610, %v2644
    %v2647 = vadd.f32 %v2639, %v2645
    %v2648 = vadd.f32 %v2640, %v2645
    %s2649 = scalar_lea.vmem [#allocation17], 64
    %v2650 = vld [vmem:[%s2649] sm:$0xf]
    %v2651 = vld [vmem:[%s2649 + $0x4] sm:$0xf]
    %v2652 = vld [vmem:[%s2649 + $0x8] sm:$0xf]
    %v2653 = vld [vmem:[%s2649 + $0xc] sm:$0xf]
    %v2654 = vld [vmem:[%s2649 + $0x10] sm:$0xf]
    %v2655 = vld [vmem:[%s2649 + $0x14] sm:$0xf]
    %v2656 = vld [vmem:[%s2649 + $0x18] sm:$0xf]
    %v2657 = vld [vmem:[%s2649 + $0x1c] sm:$0xf]
    %v2658 = vld [vmem:[%s2649 + $0x20] sm:$0xf]
    %v2659 = vld [vmem:[%s2649 + $0x24] sm:$0xf]
    %v2660 = vld [vmem:[%s2649 + $0x28] sm:$0xf]
    %v2661 = vld [vmem:[%s2649 + $0x2c] sm:$0xf]
    %v2662 = vld [vmem:[%s2649 + $0x30] sm:$0xf]
    %v2663 = vld [vmem:[%s2649 + $0x34] sm:$0xf]
    %v2664 = vld [vmem:[%s2649 + $0x38] sm:$0xf]
    %v2665 = vld [vmem:[%s2649 + $0x3c] sm:$0xf]
    %v2666 = vpack.c.bf16 %v2648, %v2647
    %s2667 = scalar_lea.vmem [#allocation19], 1
    %v2668 = vld [vmem:[%s2667] sm:$0x1]
    %v2670 = vlaneseq
    %v2671 = vshrl.u32 %v2670, 7
    %v2672 = vsub.s32 0, %v2671
    %v2673 = vrot.slane %v2668, %v2672
    %v2691 = vunpack.c.l.b16 %v2650
    %v2692 = vunpack.c.l.b16 %v2651
    %v2693 = vunpack.c.l.b16 %v2652
    %v2694 = vunpack.c.l.b16 %v2653
    %v2695 = vunpack.c.l.b16 %v2654
    %v2696 = vunpack.c.l.b16 %v2655
    %v2697 = vunpack.c.l.b16 %v2656
    %v2698 = vunpack.c.l.b16 %v2657
    %v2699 = vunpack.c.l.b16 %v2658
    %v2700 = vunpack.c.l.b16 %v2659
    %v2701 = vunpack.c.l.b16 %v2660
    %v2702 = vunpack.c.l.b16 %v2661
    %v2703 = vunpack.c.l.b16 %v2662
    %v2704 = vunpack.c.l.b16 %v2663
    %v2705 = vunpack.c.l.b16 %v2664
    %v2706 = vunpack.c.l.b16 %v2665
    %v2707 = vpack.c.b16 %v2692, %v2691
    %v2708 = vpack.c.b16 %v2694, %v2693
    %v2709 = vpack.c.b16 %v2696, %v2695
    %v2710 = vpack.c.b16 %v2698, %v2697
    %v2711 = vpack.c.b16 %v2700, %v2699
    %v2712 = vpack.c.b16 %v2702, %v2701
    %v2713 = vpack.c.b16 %v2704, %v2703
    %v2714 = vpack.c.b16 %v2706, %v2705
    %2723 = vmatprep.subr.bf16.mxu0 0
    %2724 = vmatpush1.bf16.msra.mxu0 %v2707
    %2725 = vmatprep.subr.bf16.mxu0 0
    %2726 = vmatpush1.bf16.msra.mxu0 %v2708
    %2727 = vmatprep.subr.bf16.mxu0 0
    %2728 = vmatpush1.bf16.msra.mxu0 %v2709
    %2729 = vmatprep.subr.bf16.mxu0 0
    %2730 = vmatpush1.bf16.msra.mxu0 %v2710
    %2731 = vmatprep.subr.bf16.mxu0 0
    %2732 = vmatpush1.bf16.msra.mxu0 %v2711
    %2733 = vmatprep.subr.bf16.mxu0 0
    %2734 = vmatpush1.bf16.msra.mxu0 %v2712
    %2735 = vmatprep.subr.bf16.mxu0 0
    %2736 = vmatpush1.bf16.msra.mxu0 %v2713
    %2737 = vmatprep.subr.bf16.mxu0 0
    %2738 = vmatpush1.bf16.msra.mxu0 %v2714
    %2739 = vmatprep.subr.bf16.mxu0 0
    %2740 = vmatpush1.bf16.msra.mxu0 0
    %2741 = vmatprep.subr.bf16.mxu0 0
    %2742 = vmatpush1.bf16.msra.mxu0 0
    %2743 = vmatprep.subr.bf16.mxu0 0
    %2744 = vmatpush1.bf16.msra.mxu0 0
    %2745 = vmatprep.subr.bf16.mxu0 0
    %2746 = vmatpush1.bf16.msra.mxu0 0
    %2747 = vmatprep.subr.bf16.mxu0 0
    %2748 = vmatpush1.bf16.msra.mxu0 0
    %2749 = vmatprep.subr.bf16.mxu0 0
    %2750 = vmatpush1.bf16.msra.mxu0 0
    %2751 = vmatprep.subr.bf16.mxu0 0
    %2752 = vmatpush1.bf16.msra.mxu0 0
    %2753 = vmatprep.subr.bf16.mxu0 0
    %2754 = vmatpush1.bf16.msra.mxu0 0
    %2755 = vmatprep.mubr.bf16.mxu0 0
    %2756 = vmatmul.mubr.bf16.gmra.mrb[0].mxu0 %v2666
    %v2757 = vpop.f32.mrb[0].mxu0
    %v2758 = vadd.f32 %v2673, %v2757
    %v2759 = vpop.f32.mrb[0].mxu0
    %v2760 = vpop.f32.mrb[0].mxu0
    %v2761 = vadd.f32 %v2673, %v2760
    %v2762 = vpop.f32.mrb[0].mxu0
    %2763 = vdwg.mxu0
    %v2764 = vmax.f32 %v2758, 0.0
    %v2765 = vmax.f32 %v2761, 0.0
    %s2766 = scalar_lea.vmem [#allocation20], 64
    %v2767 = vld [vmem:[%s2766] sm:$0xf]
    %v2768 = vld [vmem:[%s2766 + $0x4] sm:$0xf]
    %v2769 = vld [vmem:[%s2766 + $0x8] sm:$0xf]
    %v2770 = vld [vmem:[%s2766 + $0xc] sm:$0xf]
    %v2771 = vld [vmem:[%s2766 + $0x10] sm:$0xf]
    %v2772 = vld [vmem:[%s2766 + $0x14] sm:$0xf]
    %v2773 = vld [vmem:[%s2766 + $0x18] sm:$0xf]
    %v2774 = vld [vmem:[%s2766 + $0x1c] sm:$0xf]
    %v2775 = vld [vmem:[%s2766 + $0x20] sm:$0xf]
    %v2776 = vld [vmem:[%s2766 + $0x24] sm:$0xf]
    %v2777 = vld [vmem:[%s2766 + $0x28] sm:$0xf]
    %v2778 = vld [vmem:[%s2766 + $0x2c] sm:$0xf]
    %v2779 = vld [vmem:[%s2766 + $0x30] sm:$0xf]
    %v2780 = vld [vmem:[%s2766 + $0x34] sm:$0xf]
    %v2781 = vld [vmem:[%s2766 + $0x38] sm:$0xf]
    %v2782 = vld [vmem:[%s2766 + $0x3c] sm:$0xf]
    %v2783 = vpack.c.bf16 %v2765, %v2764
    %s2784 = scalar_lea.vmem [#allocation22], 1
    %v2785 = vld [vmem:[%s2784] sm:$0x1]
    %v2787 = vlaneseq
    %v2788 = vshrl.u32 %v2787, 7
    %v2789 = vsub.s32 0, %v2788
    %v2790 = vrot.slane %v2785, %v2789
    %v2808 = vunpack.c.l.b16 %v2767
    %v2809 = vunpack.c.l.b16 %v2768
    %v2810 = vunpack.c.l.b16 %v2769
    %v2811 = vunpack.c.l.b16 %v2770
    %v2812 = vunpack.c.l.b16 %v2771
    %v2813 = vunpack.c.l.b16 %v2772
    %v2814 = vunpack.c.l.b16 %v2773
    %v2815 = vunpack.c.l.b16 %v2774
    %v2816 = vunpack.c.l.b16 %v2775
    %v2817 = vunpack.c.l.b16 %v2776
    %v2818 = vunpack.c.l.b16 %v2777
    %v2819 = vunpack.c.l.b16 %v2778
    %v2820 = vunpack.c.l.b16 %v2779
    %v2821 = vunpack.c.l.b16 %v2780
    %v2822 = vunpack.c.l.b16 %v2781
    %v2823 = vunpack.c.l.b16 %v2782
    %v2824 = vpack.c.b16 %v2809, %v2808
    %v2825 = vpack.c.b16 %v2811, %v2810
    %v2826 = vpack.c.b16 %v2813, %v2812
    %v2827 = vpack.c.b16 %v2815, %v2814
    %v2828 = vpack.c.b16 %v2817, %v2816
    %v2829 = vpack.c.b16 %v2819, %v2818
    %v2830 = vpack.c.b16 %v2821, %v2820
    %v2831 = vpack.c.b16 %v2823, %v2822
    %2840 = vmatprep.subr.bf16.mxu0 0
    %2841 = vmatpush1.bf16.msra.mxu0 %v2824
    %2842 = vmatprep.subr.bf16.mxu0 0
    %2843 = vmatpush1.bf16.msra.mxu0 %v2825
    %2844 = vmatprep.subr.bf16.mxu0 0
    %2845 = vmatpush1.bf16.msra.mxu0 %v2826
    %2846 = vmatprep.subr.bf16.mxu0 0
    %2847 = vmatpush1.bf16.msra.mxu0 %v2827
    %2848 = vmatprep.subr.bf16.mxu0 0
    %2849 = vmatpush1.bf16.msra.mxu0 %v2828
    %2850 = vmatprep.subr.bf16.mxu0 0
    %2851 = vmatpush1.bf16.msra.mxu0 %v2829
    %2852 = vmatprep.subr.bf16.mxu0 0
    %2853 = vmatpush1.bf16.msra.mxu0 %v2830
    %2854 = vmatprep.subr.bf16.mxu0 0
    %2855 = vmatpush1.bf16.msra.mxu0 %v2831
    %2856 = vmatprep.subr.bf16.mxu0 0
    %2857 = vmatpush1.bf16.msra.mxu0 0
    %2858 = vmatprep.subr.bf16.mxu0 0
    %2859 = vmatpush1.bf16.msra.mxu0 0
    %2860 = vmatprep.subr.bf16.mxu0 0
    %2861 = vmatpush1.bf16.msra.mxu0 0
    %2862 = vmatprep.subr.bf16.mxu0 0
    %2863 = vmatpush1.bf16.msra.mxu0 0
    %2864 = vmatprep.subr.bf16.mxu0 0
    %2865 = vmatpush1.bf16.msra.mxu0 0
    %2866 = vmatprep.subr.bf16.mxu0 0
    %2867 = vmatpush1.bf16.msra.mxu0 0
    %2868 = vmatprep.subr.bf16.mxu0 0
    %2869 = vmatpush1.bf16.msra.mxu0 0
    %2870 = vmatprep.subr.bf16.mxu0 0
    %2871 = vmatpush1.bf16.msra.mxu0 0
    %2872 = vmatprep.mubr.bf16.mxu0 0
    %2873 = vmatmul.mubr.bf16.gmra.mrb[0].mxu0 %v2783
    %v2874 = vpop.f32.mrb[0].mxu0
    %v2875 = vadd.f32 %v2790, %v2874
    %v2876 = vpop.f32.mrb[0].mxu0
    %v2877 = vpop.f32.mrb[0].mxu0
    %v2878 = vadd.f32 %v2790, %v2877
    %v2879 = vpop.f32.mrb[0].mxu0
    %2880 = vdwg.mxu0
    %v2881 = vadd.f32 %v2647, %v2875
    %v2882 = vadd.f32 %v2648, %v2878
    %s2883 = scalar_lea.vmem [#allocation23], 1
    %v2884 = vld [vmem:[%s2883] sm:$0x1]
    %s2885 = scalar_lea.vmem [#allocation25], 1
    %v2886 = vld [vmem:[%s2885] sm:$0x1]
    %2887 = vadd.xlane.f32.xlu0 %v2881
    %v2888 = vpop.xlane.xlu0 %2887
    %2889 = vadd.xlane.f32.xlu0 %v2882
    %v2890 = vpop.xlane.xlu0 %2889
    %v2891 = vmul.f32 %v2888, %v1643
    %v2892 = vmul.f32 %v2890, %v1643
    %v2893 = vsub.f32 %v2881, %v2891
    %v2894 = vsub.f32 %v2882, %v2892
    %v2895 = vmul.f32 %v2893, %v2893
    %v2896 = vmul.f32 %v2894, %v2894
    %2897 = vadd.xlane.f32.xlu0 %v2895
    %v2898 = vpop.xlane.xlu0 %2897
    %2899 = vadd.xlane.f32.xlu0 %v2896
    %v2900 = vpop.xlane.xlu0 %2899
    %v2901 = vmul.f32 %v2898, %v1643
    %v2902 = vmul.f32 %v2900, %v1643
    %v2903 = vadd.f32 %v2901, 1e-05
    %v2904 = vadd.f32 %v2902, 1e-05
    %v2905 = vrsqrt.pop %v2903
    %v2906 = vrsqrt.pop %v2904
    %v2907 = vmul.f32 %v2893, %v2905
    %v2908 = vmul.f32 %v2894, %v2906
    %v2910 = vlaneseq
    %v2911 = vshrl.u32 %v2910, 7
    %v2912 = vsub.s32 0, %v2911
    %v2913 = vrot.slane %v2884, %v2912
    %v2915 = vmul.f32 %v2907, %v2913
    %v2916 = vmul.f32 %v2908, %v2913
    %v2918 = vlaneseq
    %v2919 = vshrl.u32 %v2918, 7
    %v2920 = vsub.s32 0, %v2919
    %v2921 = vrot.slane %v2886, %v2920
    %v2923 = vadd.f32 %v2915, %v2921
    %v2924 = vadd.f32 %v2916, %v2921
    %s2925 = scalar_lea.vmem %s12, 384
    %v2926 = vld [vmem:[%s2925] sm:$0xff]
    %v2927 = vld [vmem:[%s2925 + $0x8] sm:$0xf]
    %v2928 = vld [vmem:[%s2925 + $0xc] sm:$0xff]
    %v2929 = vld [vmem:[%s2925 + $0x14] sm:$0xf]
    %v2930 = vld [vmem:[%s2925 + $0x18] sm:$0xff]
    %v2931 = vld [vmem:[%s2925 + $0x20] sm:$0xf]
    %v2932 = vld [vmem:[%s2925 + $0x24] sm:$0xff]
    %v2933 = vld [vmem:[%s2925 + $0x2c] sm:$0xf]
    %v2934 = vld [vmem:[%s2925 + $0x30] sm:$0xff]
    %v2935 = vld [vmem:[%s2925 + $0x38] sm:$0xf]
    %v2936 = vld [vmem:[%s2925 + $0x3c] sm:$0xff]
    %v2937 = vld [vmem:[%s2925 + $0x44] sm:$0xf]
    %v2938 = vld [vmem:[%s2925 + $0x48] sm:$0xff]
    %v2939 = vld [vmem:[%s2925 + $0x50] sm:$0xf]
    %v2940 = vld [vmem:[%s2925 + $0x54] sm:$0xff]
    %v2941 = vld [vmem:[%s2925 + $0x5c] sm:$0xf]
    %v2942 = vld [vmem:[%s2925 + $0x60] sm:$0xff]
    %v2943 = vld [vmem:[%s2925 + $0x68] sm:$0xf]
    %v2944 = vld [vmem:[%s2925 + $0x6c] sm:$0xff]
    %v2945 = vld [vmem:[%s2925 + $0x74] sm:$0xf]
    %v2946 = vld [vmem:[%s2925 + $0x78] sm:$0xff]
    %v2947 = vld [vmem:[%s2925 + $0x80] sm:$0xf]
    %v2948 = vld [vmem:[%s2925 + $0x84] sm:$0xff]
    %v2949 = vld [vmem:[%s2925 + $0x8c] sm:$0xf]
    %v2950 = vld [vmem:[%s2925 + $0x90] sm:$0xff]
    %v2951 = vld [vmem:[%s2925 + $0x98] sm:$0xf]
    %v2952 = vld [vmem:[%s2925 + $0x9c] sm:$0xff]
    %v2953 = vld [vmem:[%s2925 + $0xa4] sm:$0xf]
    %v2954 = vld [vmem:[%s2925 + $0xa8] sm:$0xff]
    %v2955 = vld [vmem:[%s2925 + $0xb0] sm:$0xf]
    %v2956 = vld [vmem:[%s2925 + $0xb4] sm:$0xff]
    %v2957 = vld [vmem:[%s2925 + $0xbc] sm:$0xf]
    %v2958 = vpack.c.bf16 %v2924, %v2923
    %s2959 = scalar_lea.vmem [#allocation10], 6
    %v2960 = vld [vmem:[%s2959] sm:$0x7]
    %v2962 = vlaneseq
    %v2963 = vshrl.u32 %v2962, 7
    %v2964 = vsub.s32 0, %v2963
    %v2965 = vrot.slane %v2960, %v2964
    %v2966 = vlaneseq
    %v2967 = vshrl.u32 %v2966, 7
    %v2968 = vsub.s32 1, %v2967
    %v2969 = vrot.slane %v2960, %v2968
    %v2970 = vlaneseq
    %v2971 = vshrl.u32 %v2970, 7
    %v2972 = vsub.s32 2, %v2971
    %v2973 = vrot.slane %v2960, %v2972
    %v3009 = vunpack.c.l.b16 %v2926
    %v3010 = vunpack.c.h.b16 %v2926
    %v3011 = vunpack.c.l.b16 %v2927
    %v3012 = vunpack.c.l.b16 %v2928
    %v3013 = vunpack.c.h.b16 %v2928
    %v3014 = vunpack.c.l.b16 %v2929
    %v3015 = vunpack.c.l.b16 %v2930
    %v3016 = vunpack.c.h.b16 %v2930
    %v3017 = vunpack.c.l.b16 %v2931
    %v3018 = vunpack.c.l.b16 %v2932
    %v3019 = vunpack.c.h.b16 %v2932
    %v3020 = vunpack.c.l.b16 %v2933
    %v3021 = vunpack.c.l.b16 %v2934
    %v3022 = vunpack.c.h.b16 %v2934
    %v3023 = vunpack.c.l.b16 %v2935
    %v3024 = vunpack.c.l.b16 %v2936
    %v3025 = vunpack.c.h.b16 %v2936
    %v3026 = vunpack.c.l.b16 %v2937
    %v3027 = vunpack.c.l.b16 %v2938
    %v3028 = vunpack.c.h.b16 %v2938
    %v3029 = vunpack.c.l.b16 %v2939
    %v3030 = vunpack.c.l.b16 %v2940
    %v3031 = vunpack.c.h.b16 %v2940
    %v3032 = vunpack.c.l.b16 %v2941
    %v3033 = vunpack.c.l.b16 %v2942
    %v3034 = vunpack.c.h.b16 %v2942
    %v3035 = vunpack.c.l.b16 %v2943
    %v3036 = vunpack.c.l.b16 %v2944
    %v3037 = vunpack.c.h.b16 %v2944
    %v3038 = vunpack.c.l.b16 %v2945
    %v3039 = vunpack.c.l.b16 %v2946
    %v3040 = vunpack.c.h.b16 %v2946
    %v3041 = vunpack.c.l.b16 %v2947
    %v3042 = vunpack.c.l.b16 %v2948
    %v3043 = vunpack.c.h.b16 %v2948
    %v3044 = vunpack.c.l.b16 %v2949
    %v3045 = vunpack.c.l.b16 %v2950
    %v3046 = vunpack.c.h.b16 %v2950
    %v3047 = vunpack.c.l.b16 %v2951
    %v3048 = vunpack.c.l.b16 %v2952
    %v3049 = vunpack.c.h.b16 %v2952
    %v3050 = vunpack.c.l.b16 %v2953
    %v3051 = vunpack.c.l.b16 %v2954
    %v3052 = vunpack.c.h.b16 %v2954
    %v3053 = vunpack.c.l.b16 %v2955
    %v3054 = vunpack.c.l.b16 %v2956
    %v3055 = vunpack.c.h.b16 %v2956
    %v3056 = vunpack.c.l.b16 %v2957
    %v3057 = vpack.c.b16 %v3012, %v3009
    %v3058 = vpack.c.b16 %v3013, %v3010
    %v3059 = vpack.c.b16 %v3014, %v3011
    %v3060 = vpack.c.b16 %v3018, %v3015
    %v3061 = vpack.c.b16 %v3019, %v3016
    %v3062 = vpack.c.b16 %v3020, %v3017
    %v3063 = vpack.c.b16 %v3024, %v3021
    %v3064 = vpack.c.b16 %v3025, %v3022
    %v3065 = vpack.c.b16 %v3026, %v3023
    %v3066 = vpack.c.b16 %v3030, %v3027
    %v3067 = vpack.c.b16 %v3031, %v3028
    %v3068 = vpack.c.b16 %v3032, %v3029
    %v3069 = vpack.c.b16 %v3036, %v3033
    %v3070 = vpack.c.b16 %v3037, %v3034
    %v3071 = vpack.c.b16 %v3038, %v3035
    %v3072 = vpack.c.b16 %v3042, %v3039
    %v3073 = vpack.c.b16 %v3043, %v3040
    %v3074 = vpack.c.b16 %v3044, %v3041
    %v3075 = vpack.c.b16 %v3048, %v3045
    %v3076 = vpack.c.b16 %v3049, %v3046
    %v3077 = vpack.c.b16 %v3050, %v3047
    %v3078 = vpack.c.b16 %v3054, %v3051
    %v3079 = vpack.c.b16 %v3055, %v3052
    %v3080 = vpack.c.b16 %v3056, %v3053
    %3105 = vmatprep.subr.bf16.mxu0 %v3058
    %3106 = vmatpush1.bf16.msra.mxu0 %v3057
    %3107 = vmatprep.subr.bf16.mxu0 %v3061
    %3108 = vmatpush1.bf16.msra.mxu0 %v3060
    %3109 = vmatprep.subr.bf16.mxu0 %v3064
    %3110 = vmatpush1.bf16.msra.mxu0 %v3063
    %3111 = vmatprep.subr.bf16.mxu0 %v3067
    %3112 = vmatpush1.bf16.msra.mxu0 %v3066
    %3113 = vmatprep.subr.bf16.mxu0 %v3070
    %3114 = vmatpush1.bf16.msra.mxu0 %v3069
    %3115 = vmatprep.subr.bf16.mxu0 %v3073
    %3116 = vmatpush1.bf16.msra.mxu0 %v3072
    %3117 = vmatprep.subr.bf16.mxu0 %v3076
    %3118 = vmatpush1.bf16.msra.mxu0 %v3075
    %3119 = vmatprep.subr.bf16.mxu0 %v3079
    %3120 = vmatpush1.bf16.msra.mxu0 %v3078
    %3121 = vmatprep.subr.bf16.mxu0 0
    %3122 = vmatpush1.bf16.msra.mxu0 0
    %3123 = vmatprep.subr.bf16.mxu0 0
    %3124 = vmatpush1.bf16.msra.mxu0 0
    %3125 = vmatprep.subr.bf16.mxu0 0
    %3126 = vmatpush1.bf16.msra.mxu0 0
    %3127 = vmatprep.subr.bf16.mxu0 0
    %3128 = vmatpush1.bf16.msra.mxu0 0
    %3129 = vmatprep.subr.bf16.mxu0 0
    %3130 = vmatpush1.bf16.msra.mxu0 0
    %3131 = vmatprep.subr.bf16.mxu0 0
    %3132 = vmatpush1.bf16.msra.mxu0 0
    %3133 = vmatprep.subr.bf16.mxu0 0
    %3134 = vmatpush1.bf16.msra.mxu0 0
    %3135 = vmatprep.subr.bf16.mxu0 0
    %3136 = vmatpush1.bf16.msra.mxu0 0
    %3137 = vmatprep.mubr.bf16.mxu0 0
    %3138 = vmatmul.mubr.bf16.gmra.mrb[0].mxu0 %v2958
    %v3139 = vpop.f32.mrb[0].mxu0
    %v3140 = vadd.f32 %v2965, %v3139
    %v3141 = vpop.f32.mrb[0].mxu0
    %v3142 = vadd.f32 %v2969, %v3141
    %v3143 = vpop.f32.mrb[0].mxu0
    %v3144 = vadd.f32 %v2965, %v3143
    %v3145 = vpop.f32.mrb[0].mxu0
    %v3146 = vadd.f32 %v2969, %v3145
    %3147 = vdwg.mxu0
    %3148 = vmatprep.subr.bf16.mxu0 0
    %3149 = vmatpush1.bf16.msra.mxu0 %v3059
    %3150 = vmatprep.subr.bf16.mxu0 0
    %3151 = vmatpush1.bf16.msra.mxu0 %v3062
    %3152 = vmatprep.subr.bf16.mxu0 0
    %3153 = vmatpush1.bf16.msra.mxu0 %v3065
    %3154 = vmatprep.subr.bf16.mxu0 0
    %3155 = vmatpush1.bf16.msra.mxu0 %v3068
    %3156 = vmatprep.subr.bf16.mxu0 0
    %3157 = vmatpush1.bf16.msra.mxu0 %v3071
    %3158 = vmatprep.subr.bf16.mxu0 0
    %3159 = vmatpush1.bf16.msra.mxu0 %v3074
    %3160 = vmatprep.subr.bf16.mxu0 0
    %3161 = vmatpush1.bf16.msra.mxu0 %v3077
    %3162 = vmatprep.subr.bf16.mxu0 0
    %3163 = vmatpush1.bf16.msra.mxu0 %v3080
    %3164 = vmatprep.subr.bf16.mxu0 0
    %3165 = vmatpush1.bf16.msra.mxu0 0
    %3166 = vmatprep.subr.bf16.mxu0 0
    %3167 = vmatpush1.bf16.msra.mxu0 0
    %3168 = vmatprep.subr.bf16.mxu0 0
    %3169 = vmatpush1.bf16.msra.mxu0 0
    %3170 = vmatprep.subr.bf16.mxu0 0
    %3171 = vmatpush1.bf16.msra.mxu0 0
    %3172 = vmatprep.subr.bf16.mxu0 0
    %3173 = vmatpush1.bf16.msra.mxu0 0
    %3174 = vmatprep.subr.bf16.mxu0 0
    %3175 = vmatpush1.bf16.msra.mxu0 0
    %3176 = vmatprep.subr.bf16.mxu0 0
    %3177 = vmatpush1.bf16.msra.mxu0 0
    %3178 = vmatprep.subr.bf16.mxu0 0
    %3179 = vmatpush1.bf16.msra.mxu0 0
    %3180 = vmatprep.mubr.bf16.mxu0 0
    %3181 = vmatmul.mubr.bf16.gmra.mrb[0].mxu0 %v2958
    %v3182 = vpop.f32.mrb[0].mxu0
    %v3183 = vadd.f32 %v2973, %v3182
    %v3184 = vpop.f32.mrb[0].mxu0
    %v3185 = vpop.f32.mrb[0].mxu0
    %v3186 = vadd.f32 %v2973, %v3185
    %v3187 = vpop.f32.mrb[0].mxu0
    %3188 = vdwg.mxu0
    %v3189 = vmul.f32 %v3140, %v965
    %v3190 = vmul.f32 %v3144, %v966
    %v3191 = vmul.f32 %v3140, %v967
    %v3192 = vmul.f32 %v3144, %v968
    %v3193 = vmul.f32 %v3140, %v969
    %v3194 = vmul.f32 %v3144, %v970
    %v3195 = vmul.f32 %v3140, %v971
    %v3196 = vmul.f32 %v3144, %v972
    %v3197 = vpack.c.bf16 %v3190, %v3189
    %v3198 = vpack.c.bf16 %v3192, %v3191
    %v3199 = vpack.c.bf16 %v3194, %v3193
    %v3200 = vpack.c.bf16 %v3196, %v3195
    %v3201 = vpack.c.bf16 %v3146, %v3142
    %3202 = vmatprep.subr.bf16.mxu0 0
    %3203 = vmatpush1.bf16.xpose.msra.mxu0 %v3201
    %3204 = vmatprep.subr.bf16.mxu0 0
    %3205 = vmatpush1.bf16.xpose.msra.mxu0 0
    %3206 = vmatprep.subr.bf16.mxu0 0
    %3207 = vmatpush1.bf16.xpose.msra.mxu0 0
    %3208 = vmatprep.subr.bf16.mxu0 0
    %3209 = vmatpush1.bf16.xpose.msra.mxu0 0
    %3210 = vmatprep.subr.bf16.mxu0 0
    %3211 = vmatpush1.bf16.xpose.msra.mxu0 0
    %3212 = vmatprep.subr.bf16.mxu0 0
    %3213 = vmatpush1.bf16.xpose.msra.mxu0 0
    %3214 = vmatprep.subr.bf16.mxu0 0
    %3215 = vmatpush1.bf16.xpose.msra.mxu0 0
    %3216 = vmatprep.subr.bf16.mxu0 0
    %3217 = vmatpush1.bf16.xpose.msra.mxu0 0
    %3218 = vmatprep.subr.bf16.mxu0 0
    %3219 = vmatpush1.bf16.xpose.msra.mxu0 0
    %3220 = vmatprep.subr.bf16.mxu0 0
    %3221 = vmatpush1.bf16.xpose.msra.mxu0 0
    %3222 = vmatprep.subr.bf16.mxu0 0
    %3223 = vmatpush1.bf16.xpose.msra.mxu0 0
    %3224 = vmatprep.subr.bf16.mxu0 0
    %3225 = vmatpush1.bf16.xpose.msra.mxu0 0
    %3226 = vmatprep.subr.bf16.mxu0 0
    %3227 = vmatpush1.bf16.xpose.msra.mxu0 0
    %3228 = vmatprep.subr.bf16.mxu0 0
    %3229 = vmatpush1.bf16.xpose.msra.mxu0 0
    %3230 = vmatprep.subr.bf16.mxu0 0
    %3231 = vmatpush1.bf16.xpose.msra.mxu0 0
    %3232 = vmatprep.subr.bf16.mxu0 0
    %3233 = vmatpush1.bf16.xpose.msra.mxu0 0
    %3234 = vmatprep.mubr.bf16.mxu0 0
    %3235 = vmatmul.mubr.bf16.gmra.mrb[0].mxu0 %v3197
    %v3236 = vpop.f32.mrb[0].mxu0
    %v3237 = vadd.f32 0.0, %v3236
    %v3238 = vpop.f32.mrb[0].mxu0
    %v3239 = vpop.f32.mrb[0].mxu0
    %v3240 = vadd.f32 0.0, %v3239
    %v3241 = vpop.f32.mrb[0].mxu0
    %3242 = vmatprep.mubr.bf16.mxu0 0
    %3243 = vmatmul.mubr.bf16.gmra.mrb[0].mxu0 %v3198
    %v3244 = vpop.f32.mrb[0].mxu0
    %v3245 = vadd.f32 0.0, %v3244
    %v3246 = vpop.f32.mrb[0].mxu0
    %v3247 = vpop.f32.mrb[0].mxu0
    %v3248 = vadd.f32 0.0, %v3247
    %v3249 = vpop.f32.mrb[0].mxu0
    %3250 = vmatprep.mubr.bf16.mxu0 0
    %3251 = vmatmul.mubr.bf16.gmra.mrb[0].mxu0 %v3199
    %v3252 = vpop.f32.mrb[0].mxu0
    %v3253 = vadd.f32 0.0, %v3252
    %v3254 = vpop.f32.mrb[0].mxu0
    %v3255 = vpop.f32.mrb[0].mxu0
    %v3256 = vadd.f32 0.0, %v3255
    %v3257 = vpop.f32.mrb[0].mxu0
    %3258 = vmatprep.mubr.bf16.mxu0 0
    %3259 = vmatmul.mubr.bf16.gmra.mrb[0].mxu0 %v3200
    %v3260 = vpop.f32.mrb[0].mxu0
    %v3261 = vadd.f32 0.0, %v3260
    %v3262 = vpop.f32.mrb[0].mxu0
    %v3263 = vpop.f32.mrb[0].mxu0
    %v3264 = vadd.f32 0.0, %v3263
    %v3265 = vpop.f32.mrb[0].mxu0
    %3266 = vdwg.mxu0
    %v3267 = vmul.f32 %v3237, 0.17677669
    %v3268 = vmul.f32 %v3240, 0.17677669
    %v3269 = vmul.f32 %v3245, 0.17677669
    %v3270 = vmul.f32 %v3248, 0.17677669
    %v3271 = vmul.f32 %v3253, 0.17677669
    %v3272 = vmul.f32 %v3256, 0.17677669
    %v3273 = vmul.f32 %v3261, 0.17677669
    %v3274 = vmul.f32 %v3264, 0.17677669
    %v3275 = vadd.f32 %v3267, %v973
    %v3276 = vadd.f32 %v3268, %v974
    %v3277 = vadd.f32 %v3269, %v975
    %v3278 = vadd.f32 %v3270, %v976
    %v3279 = vadd.f32 %v3271, %v977
    %v3280 = vadd.f32 %v3272, %v978
    %v3281 = vadd.f32 %v3273, %v979
    %v3282 = vadd.f32 %v3274, %v980
    %v3283 = vsel %vm1337, %v3275, -inf
    %3284 = vmax.xlane.f32.xlu0 %v3283
    %v3285 = vpop.xlane.xlu0 %3284
    %v3286 = vsel %vm1337, %v3276, -inf
    %3287 = vmax.xlane.f32.xlu0 %v3286
    %v3288 = vpop.xlane.xlu0 %3287
    %v3289 = vsel %vm1337, %v3277, -inf
    %3290 = vmax.xlane.f32.xlu0 %v3289
    %v3291 = vpop.xlane.xlu0 %3290
    %v3292 = vsel %vm1337, %v3278, -inf
    %3293 = vmax.xlane.f32.xlu0 %v3292
    %v3294 = vpop.xlane.xlu0 %3293
    %v3295 = vsel %vm1337, %v3279, -inf
    %3296 = vmax.xlane.f32.xlu0 %v3295
    %v3297 = vpop.xlane.xlu0 %3296
    %v3298 = vsel %vm1337, %v3280, -inf
    %3299 = vmax.xlane.f32.xlu0 %v3298
    %v3300 = vpop.xlane.xlu0 %3299
    %v3301 = vsel %vm1337, %v3281, -inf
    %3302 = vmax.xlane.f32.xlu0 %v3301
    %v3303 = vpop.xlane.xlu0 %3302
    %v3304 = vsel %vm1337, %v3282, -inf
    %3305 = vmax.xlane.f32.xlu0 %v3304
    %v3306 = vpop.xlane.xlu0 %3305
    %v3307 = vsub.f32 %v3275, %v3285
    %v3308 = vsub.f32 %v3276, %v3288
    %v3309 = vsub.f32 %v3277, %v3291
    %v3310 = vsub.f32 %v3278, %v3294
    %v3311 = vsub.f32 %v3279, %v3297
    %v3312 = vsub.f32 %v3280, %v3300
    %v3313 = vsub.f32 %v3281, %v3303
    %v3314 = vsub.f32 %v3282, %v3306
    %v3315 = vmul.f32 %v3307, 1.442695
    %v3316 = vpow.pop %v3315
    %v3317 = vmul.f32 %v3308, 1.442695
    %v3318 = vpow.pop %v3317
    %v3319 = vmul.f32 %v3309, 1.442695
    %v3320 = vpow.pop %v3319
    %v3321 = vmul.f32 %v3310, 1.442695
    %v3322 = vpow.pop %v3321
    %v3323 = vmul.f32 %v3311, 1.442695
    %v3324 = vpow.pop %v3323
    %v3325 = vmul.f32 %v3312, 1.442695
    %v3326 = vpow.pop %v3325
    %v3327 = vmul.f32 %v3313, 1.442695
    %v3328 = vpow.pop %v3327
    %v3329 = vmul.f32 %v3314, 1.442695
    %v3330 = vpow.pop %v3329
    %v3331 = vsel %vm1337, %v3316, 0.0
    %3332 = vadd.xlane.f32.xlu0 %v3331
    %v3333 = vpop.xlane.xlu0 %3332
    %v3334 = vsel %vm1337, %v3318, 0.0
    %3335 = vadd.xlane.f32.xlu0 %v3334
    %v3336 = vpop.xlane.xlu0 %3335
    %v3337 = vsel %vm1337, %v3320, 0.0
    %3338 = vadd.xlane.f32.xlu0 %v3337
    %v3339 = vpop.xlane.xlu0 %3338
    %v3340 = vsel %vm1337, %v3322, 0.0
    %3341 = vadd.xlane.f32.xlu0 %v3340
    %v3342 = vpop.xlane.xlu0 %3341
    %v3343 = vsel %vm1337, %v3324, 0.0
    %3344 = vadd.xlane.f32.xlu0 %v3343
    %v3345 = vpop.xlane.xlu0 %3344
    %v3346 = vsel %vm1337, %v3326, 0.0
    %3347 = vadd.xlane.f32.xlu0 %v3346
    %v3348 = vpop.xlane.xlu0 %3347
    %v3349 = vsel %vm1337, %v3328, 0.0
    %3350 = vadd.xlane.f32.xlu0 %v3349
    %v3351 = vpop.xlane.xlu0 %3350
    %v3352 = vsel %vm1337, %v3330, 0.0
    %3353 = vadd.xlane.f32.xlu0 %v3352
    %v3354 = vpop.xlane.xlu0 %3353
    %v3355 = vrcp.pop %v3333
    %v3356 = vrcp.pop %v3336
    %v3357 = vrcp.pop %v3339
    %v3358 = vrcp.pop %v3342
    %v3359 = vrcp.pop %v3345
    %v3360 = vrcp.pop %v3348
    %v3361 = vrcp.pop %v3351
    %v3362 = vrcp.pop %v3354
    %v3363 = vmul.f32 %v3316, %v3355
    %v3364 = vmul.f32 %v3318, %v3356
    %v3365 = vmul.f32 %v3320, %v3357
    %v3366 = vmul.f32 %v3322, %v3358
    %v3367 = vmul.f32 %v3324, %v3359
    %v3368 = vmul.f32 %v3326, %v3360
    %v3369 = vmul.f32 %v3328, %v3361
    %v3370 = vmul.f32 %v3330, %v3362
    %v3371 = vpack.c.bf16 %v3364, %v3363
    %v3372 = vpack.c.bf16 %v3366, %v3365
    %v3373 = vpack.c.bf16 %v3368, %v3367
    %v3374 = vpack.c.bf16 %v3370, %v3369
    %v3375 = vpack.c.bf16 %v3186, %v3183
    %v3377 = vsel %vm1337, %v3371, 0
    %v3380 = vsel %vm1337, %v3372, 0
    %v3383 = vsel %vm1337, %v3373, 0
    %v3386 = vsel %vm1337, %v3374, 0
    %3388 = vmatprep.subr.bf16.mxu0 0
    %3389 = vmatpush1.bf16.msra.mxu0 %v3375
    %3390 = vmatprep.subr.bf16.mxu0 0
    %3391 = vmatpush1.bf16.msra.mxu0 0
    %3392 = vmatprep.subr.bf16.mxu0 0
    %3393 = vmatpush1.bf16.msra.mxu0 0
    %3394 = vmatprep.subr.bf16.mxu0 0
    %3395 = vmatpush1.bf16.msra.mxu0 0
    %3396 = vmatprep.subr.bf16.mxu0 0
    %3397 = vmatpush1.bf16.msra.mxu0 0
    %3398 = vmatprep.subr.bf16.mxu0 0
    %3399 = vmatpush1.bf16.msra.mxu0 0
    %3400 = vmatprep.subr.bf16.mxu0 0
    %3401 = vmatpush1.bf16.msra.mxu0 0
    %3402 = vmatprep.subr.bf16.mxu0 0
    %3403 = vmatpush1.bf16.msra.mxu0 0
    %3404 = vmatprep.subr.bf16.mxu0 0
    %3405 = vmatpush1.bf16.msra.mxu0 0
    %3406 = vmatprep.subr.bf16.mxu0 0
    %3407 = vmatpush1.bf16.msra.mxu0 0
    %3408 = vmatprep.subr.bf16.mxu0 0
    %3409 = vmatpush1.bf16.msra.mxu0 0
    %3410 = vmatprep.subr.bf16.mxu0 0
    %3411 = vmatpush1.bf16.msra.mxu0 0
    %3412 = vmatprep.subr.bf16.mxu0 0
    %3413 = vmatpush1.bf16.msra.mxu0 0
    %3414 = vmatprep.subr.bf16.mxu0 0
    %3415 = vmatpush1.bf16.msra.mxu0 0
    %3416 = vmatprep.subr.bf16.mxu0 0
    %3417 = vmatpush1.bf16.msra.mxu0 0
    %3418 = vmatprep.subr.bf16.mxu0 0
    %3419 = vmatpush1.bf16.msra.mxu0 0
    %3420 = vmatprep.mubr.bf16.mxu0 0
    %3421 = vmatmul.mubr.bf16.gmra.mrb[0].mxu0 %v3377
    %v3422 = vpop.f32.mrb[0].mxu0
    %v3423 = vadd.f32 0.0, %v3422
    %v3424 = vpop.f32.mrb[0].mxu0
    %v3425 = vpop.f32.mrb[0].mxu0
    %v3426 = vadd.f32 0.0, %v3425
    %v3427 = vpop.f32.mrb[0].mxu0
    %3428 = vmatprep.mubr.bf16.mxu0 0
    %3429 = vmatmul.mubr.bf16.gmra.mrb[0].mxu0 %v3380
    %v3430 = vpop.f32.mrb[0].mxu0
    %v3431 = vadd.f32 0.0, %v3430
    %v3432 = vpop.f32.mrb[0].mxu0
    %v3433 = vpop.f32.mrb[0].mxu0
    %v3434 = vadd.f32 0.0, %v3433
    %v3435 = vpop.f32.mrb[0].mxu0
    %3436 = vmatprep.mubr.bf16.mxu0 0
    %3437 = vmatmul.mubr.bf16.gmra.mrb[0].mxu0 %v3383
    %v3438 = vpop.f32.mrb[0].mxu0
    %v3439 = vadd.f32 0.0, %v3438
    %v3440 = vpop.f32.mrb[0].mxu0
    %v3441 = vpop.f32.mrb[0].mxu0
    %v3442 = vadd.f32 0.0, %v3441
    %v3443 = vpop.f32.mrb[0].mxu0
    %3444 = vmatprep.mubr.bf16.mxu0 0
    %3445 = vmatmul.mubr.bf16.gmra.mrb[0].mxu0 %v3386
    %v3446 = vpop.f32.mrb[0].mxu0
    %v3447 = vadd.f32 0.0, %v3446
    %v3448 = vpop.f32.mrb[0].mxu0
    %v3449 = vpop.f32.mrb[0].mxu0
    %v3450 = vadd.f32 0.0, %v3449
    %v3451 = vpop.f32.mrb[0].mxu0
    %3452 = vdwg.mxu0
    %v3453 = vmul.f32 %v3423, %v965
    %v3454 = vmul.f32 %v3426, %v966
    %v3455 = vmul.f32 %v3431, %v967
    %v3456 = vmul.f32 %v3434, %v968
    %v3457 = vmul.f32 %v3439, %v969
    %v3458 = vmul.f32 %v3442, %v970
    %v3459 = vmul.f32 %v3447, %v971
    %v3460 = vmul.f32 %v3450, %v972
    %v3461 = vadd.f32 %v3453, %v3455
    %v3462 = vadd.f32 %v3454, %v3456
    %v3463 = vadd.f32 %v3461, %v3457
    %v3464 = vadd.f32 %v3462, %v3458
    %v3465 = vadd.f32 %v3463, %v3459
    %v3466 = vadd.f32 %v3464, %v3460
    %s3467 = scalar_lea.vmem [#allocation11], 128
    %v3468 = vld [vmem:[%s3467] sm:$0xf]
    %v3469 = vld [vmem:[%s3467 + $0x4] sm:$0xf]
    %v3470 = vld [vmem:[%s3467 + $0x8] sm:$0xf]
    %v3471 = vld [vmem:[%s3467 + $0xc] sm:$0xf]
    %v3472 = vld [vmem:[%s3467 + $0x10] sm:$0xf]
    %v3473 = vld [vmem:[%s3467 + $0x14] sm:$0xf]
    %v3474 = vld [vmem:[%s3467 + $0x18] sm:$0xf]
    %v3475 = vld [vmem:[%s3467 + $0x1c] sm:$0xf]
    %v3476 = vld [vmem:[%s3467 + $0x20] sm:$0xf]
    %v3477 = vld [vmem:[%s3467 + $0x24] sm:$0xf]
    %v3478 = vld [vmem:[%s3467 + $0x28] sm:$0xf]
    %v3479 = vld [vmem:[%s3467 + $0x2c] sm:$0xf]
    %v3480 = vld [vmem:[%s3467 + $0x30] sm:$0xf]
    %v3481 = vld [vmem:[%s3467 + $0x34] sm:$0xf]
    %v3482 = vld [vmem:[%s3467 + $0x38] sm:$0xf]
    %v3483 = vld [vmem:[%s3467 + $0x3c] sm:$0xf]
    %v3484 = vpack.c.bf16 %v3466, %v3465
    %s3485 = scalar_lea.vmem [#allocation13], 2
    %v3486 = vld [vmem:[%s3485] sm:$0x1]
    %v3488 = vlaneseq
    %v3489 = vshrl.u32 %v3488, 7
    %v3490 = vsub.s32 0, %v3489
    %v3491 = vrot.slane %v3486, %v3490
    %v3509 = vunpack.c.l.b16 %v3468
    %v3510 = vunpack.c.l.b16 %v3469
    %v3511 = vunpack.c.l.b16 %v3470
    %v3512 = vunpack.c.l.b16 %v3471
    %v3513 = vunpack.c.l.b16 %v3472
    %v3514 = vunpack.c.l.b16 %v3473
    %v3515 = vunpack.c.l.b16 %v3474
    %v3516 = vunpack.c.l.b16 %v3475
    %v3517 = vunpack.c.l.b16 %v3476
    %v3518 = vunpack.c.l.b16 %v3477
    %v3519 = vunpack.c.l.b16 %v3478
    %v3520 = vunpack.c.l.b16 %v3479
    %v3521 = vunpack.c.l.b16 %v3480
    %v3522 = vunpack.c.l.b16 %v3481
    %v3523 = vunpack.c.l.b16 %v3482
    %v3524 = vunpack.c.l.b16 %v3483
    %v3525 = vpack.c.b16 %v3510, %v3509
    %v3526 = vpack.c.b16 %v3512, %v3511
    %v3527 = vpack.c.b16 %v3514, %v3513
    %v3528 = vpack.c.b16 %v3516, %v3515
    %v3529 = vpack.c.b16 %v3518, %v3517
    %v3530 = vpack.c.b16 %v3520, %v3519
    %v3531 = vpack.c.b16 %v3522, %v3521
    %v3532 = vpack.c.b16 %v3524, %v3523
    %3541 = vmatprep.subr.bf16.mxu0 0
    %3542 = vmatpush1.bf16.msra.mxu0 %v3525
    %3543 = vmatprep.subr.bf16.mxu0 0
    %3544 = vmatpush1.bf16.msra.mxu0 %v3526
    %3545 = vmatprep.subr.bf16.mxu0 0
    %3546 = vmatpush1.bf16.msra.mxu0 %v3527
    %3547 = vmatprep.subr.bf16.mxu0 0
    %3548 = vmatpush1.bf16.msra.mxu0 %v3528
    %3549 = vmatprep.subr.bf16.mxu0 0
    %3550 = vmatpush1.bf16.msra.mxu0 %v3529
    %3551 = vmatprep.subr.bf16.mxu0 0
    %3552 = vmatpush1.bf16.msra.mxu0 %v3530
    %3553 = vmatprep.subr.bf16.mxu0 0
    %3554 = vmatpush1.bf16.msra.mxu0 %v3531
    %3555 = vmatprep.subr.bf16.mxu0 0
    %3556 = vmatpush1.bf16.msra.mxu0 %v3532
    %3557 = vmatprep.subr.bf16.mxu0 0
    %3558 = vmatpush1.bf16.msra.mxu0 0
    %3559 = vmatprep.subr.bf16.mxu0 0
    %3560 = vmatpush1.bf16.msra.mxu0 0
    %3561 = vmatprep.subr.bf16.mxu0 0
    %3562 = vmatpush1.bf16.msra.mxu0 0
    %3563 = vmatprep.subr.bf16.mxu0 0
    %3564 = vmatpush1.bf16.msra.mxu0 0
    %3565 = vmatprep.subr.bf16.mxu0 0
    %3566 = vmatpush1.bf16.msra.mxu0 0
    %3567 = vmatprep.subr.bf16.mxu0 0
    %3568 = vmatpush1.bf16.msra.mxu0 0
    %3569 = vmatprep.subr.bf16.mxu0 0
    %3570 = vmatpush1.bf16.msra.mxu0 0
    %3571 = vmatprep.subr.bf16.mxu0 0
    %3572 = vmatpush1.bf16.msra.mxu0 0
    %3573 = vmatprep.mubr.bf16.mxu0 0
    %3574 = vmatmul.mubr.bf16.gmra.mrb[0].mxu0 %v3484
    %v3575 = vpop.f32.mrb[0].mxu0
    %v3576 = vadd.f32 %v3491, %v3575
    %v3577 = vpop.f32.mrb[0].mxu0
    %v3578 = vpop.f32.mrb[0].mxu0
    %v3579 = vadd.f32 %v3491, %v3578
    %v3580 = vpop.f32.mrb[0].mxu0
    %3581 = vdwg.mxu0
    %v3582 = vadd.f32 %v2923, %v3576
    %v3583 = vadd.f32 %v2924, %v3579
    %s3584 = scalar_lea.vmem [#allocation14], 2
    %v3585 = vld [vmem:[%s3584] sm:$0x1]
    %s3586 = scalar_lea.vmem [#allocation16], 2
    %v3587 = vld [vmem:[%s3586] sm:$0x1]
    %3588 = vadd.xlane.f32.xlu0 %v3582
    %v3589 = vpop.xlane.xlu0 %3588
    %3590 = vadd.xlane.f32.xlu0 %v3583
    %v3591 = vpop.xlane.xlu0 %3590
    %v3592 = vmul.f32 %v3589, %v1643
    %v3593 = vmul.f32 %v3591, %v1643
    %v3594 = vsub.f32 %v3582, %v3592
    %v3595 = vsub.f32 %v3583, %v3593
    %v3596 = vmul.f32 %v3594, %v3594
    %v3597 = vmul.f32 %v3595, %v3595
    %3598 = vadd.xlane.f32.xlu0 %v3596
    %v3599 = vpop.xlane.xlu0 %3598
    %3600 = vadd.xlane.f32.xlu0 %v3597
    %v3601 = vpop.xlane.xlu0 %3600
    %v3602 = vmul.f32 %v3599, %v1643
    %v3603 = vmul.f32 %v3601, %v1643
    %v3604 = vadd.f32 %v3602, 1e-05
    %v3605 = vadd.f32 %v3603, 1e-05
    %v3606 = vrsqrt.pop %v3604
    %v3607 = vrsqrt.pop %v3605
    %v3608 = vmul.f32 %v3594, %v3606
    %v3609 = vmul.f32 %v3595, %v3607
    %v3611 = vlaneseq
    %v3612 = vshrl.u32 %v3611, 7
    %v3613 = vsub.s32 0, %v3612
    %v3614 = vrot.slane %v3585, %v3613
    %v3616 = vmul.f32 %v3608, %v3614
    %v3617 = vmul.f32 %v3609, %v3614
    %v3619 = vlaneseq
    %v3620 = vshrl.u32 %v3619, 7
    %v3621 = vsub.s32 0, %v3620
    %v3622 = vrot.slane %v3587, %v3621
    %v3624 = vadd.f32 %v3616, %v3622
    %v3625 = vadd.f32 %v3617, %v3622
    %s3626 = scalar_lea.vmem [#allocation17], 128
    %v3627 = vld [vmem:[%s3626] sm:$0xf]
    %v3628 = vld [vmem:[%s3626 + $0x4] sm:$0xf]
    %v3629 = vld [vmem:[%s3626 + $0x8] sm:$0xf]
    %v3630 = vld [vmem:[%s3626 + $0xc] sm:$0xf]
    %v3631 = vld [vmem:[%s3626 + $0x10] sm:$0xf]
    %v3632 = vld [vmem:[%s3626 + $0x14] sm:$0xf]
    %v3633 = vld [vmem:[%s3626 + $0x18] sm:$0xf]
    %v3634 = vld [vmem:[%s3626 + $0x1c] sm:$0xf]
    %v3635 = vld [vmem:[%s3626 + $0x20] sm:$0xf]
    %v3636 = vld [vmem:[%s3626 + $0x24] sm:$0xf]
    %v3637 = vld [vmem:[%s3626 + $0x28] sm:$0xf]
    %v3638 = vld [vmem:[%s3626 + $0x2c] sm:$0xf]
    %v3639 = vld [vmem:[%s3626 + $0x30] sm:$0xf]
    %v3640 = vld [vmem:[%s3626 + $0x34] sm:$0xf]
    %v3641 = vld [vmem:[%s3626 + $0x38] sm:$0xf]
    %v3642 = vld [vmem:[%s3626 + $0x3c] sm:$0xf]
    %v3643 = vpack.c.bf16 %v3625, %v3624
    %s3644 = scalar_lea.vmem [#allocation19], 2
    %v3645 = vld [vmem:[%s3644] sm:$0x1]
    %v3647 = vlaneseq
    %v3648 = vshrl.u32 %v3647, 7
    %v3649 = vsub.s32 0, %v3648
    %v3650 = vrot.slane %v3645, %v3649
    %v3668 = vunpack.c.l.b16 %v3627
    %v3669 = vunpack.c.l.b16 %v3628
    %v3670 = vunpack.c.l.b16 %v3629
    %v3671 = vunpack.c.l.b16 %v3630
    %v3672 = vunpack.c.l.b16 %v3631
    %v3673 = vunpack.c.l.b16 %v3632
    %v3674 = vunpack.c.l.b16 %v3633
    %v3675 = vunpack.c.l.b16 %v3634
    %v3676 = vunpack.c.l.b16 %v3635
    %v3677 = vunpack.c.l.b16 %v3636
    %v3678 = vunpack.c.l.b16 %v3637
    %v3679 = vunpack.c.l.b16 %v3638
    %v3680 = vunpack.c.l.b16 %v3639
    %v3681 = vunpack.c.l.b16 %v3640
    %v3682 = vunpack.c.l.b16 %v3641
    %v3683 = vunpack.c.l.b16 %v3642
    %v3684 = vpack.c.b16 %v3669, %v3668
    %v3685 = vpack.c.b16 %v3671, %v3670
    %v3686 = vpack.c.b16 %v3673, %v3672
    %v3687 = vpack.c.b16 %v3675, %v3674
    %v3688 = vpack.c.b16 %v3677, %v3676
    %v3689 = vpack.c.b16 %v3679, %v3678
    %v3690 = vpack.c.b16 %v3681, %v3680
    %v3691 = vpack.c.b16 %v3683, %v3682
    %3700 = vmatprep.subr.bf16.mxu0 0
    %3701 = vmatpush1.bf16.msra.mxu0 %v3684
    %3702 = vmatprep.subr.bf16.mxu0 0
    %3703 = vmatpush1.bf16.msra.mxu0 %v3685
    %3704 = vmatprep.subr.bf16.mxu0 0
    %3705 = vmatpush1.bf16.msra.mxu0 %v3686
    %3706 = vmatprep.subr.bf16.mxu0 0
    %3707 = vmatpush1.bf16.msra.mxu0 %v3687
    %3708 = vmatprep.subr.bf16.mxu0 0
    %3709 = vmatpush1.bf16.msra.mxu0 %v3688
    %3710 = vmatprep.subr.bf16.mxu0 0
    %3711 = vmatpush1.bf16.msra.mxu0 %v3689
    %3712 = vmatprep.subr.bf16.mxu0 0
    %3713 = vmatpush1.bf16.msra.mxu0 %v3690
    %3714 = vmatprep.subr.bf16.mxu0 0
    %3715 = vmatpush1.bf16.msra.mxu0 %v3691
    %3716 = vmatprep.subr.bf16.mxu0 0
    %3717 = vmatpush1.bf16.msra.mxu0 0
    %3718 = vmatprep.subr.bf16.mxu0 0
    %3719 = vmatpush1.bf16.msra.mxu0 0
    %3720 = vmatprep.subr.bf16.mxu0 0
    %3721 = vmatpush1.bf16.msra.mxu0 0
    %3722 = vmatprep.subr.bf16.mxu0 0
    %3723 = vmatpush1.bf16.msra.mxu0 0
    %3724 = vmatprep.subr.bf16.mxu0 0
    %3725 = vmatpush1.bf16.msra.mxu0 0
    %3726 = vmatprep.subr.bf16.mxu0 0
    %3727 = vmatpush1.bf16.msra.mxu0 0
    %3728 = vmatprep.subr.bf16.mxu0 0
    %3729 = vmatpush1.bf16.msra.mxu0 0
    %3730 = vmatprep.subr.bf16.mxu0 0
    %3731 = vmatpush1.bf16.msra.mxu0 0
    %3732 = vmatprep.mubr.bf16.mxu0 0
    %3733 = vmatmul.mubr.bf16.gmra.mrb[0].mxu0 %v3643
    %v3734 = vpop.f32.mrb[0].mxu0
    %v3735 = vadd.f32 %v3650, %v3734
    %v3736 = vpop.f32.mrb[0].mxu0
    %v3737 = vpop.f32.mrb[0].mxu0
    %v3738 = vadd.f32 %v3650, %v3737
    %v3739 = vpop.f32.mrb[0].mxu0
    %3740 = vdwg.mxu0
    %v3741 = vmax.f32 %v3735, 0.0
    %v3742 = vmax.f32 %v3738, 0.0
    %s3743 = scalar_lea.vmem [#allocation20], 128
    %v3744 = vld [vmem:[%s3743] sm:$0xf]
    %v3745 = vld [vmem:[%s3743 + $0x4] sm:$0xf]
    %v3746 = vld [vmem:[%s3743 + $0x8] sm:$0xf]
    %v3747 = vld [vmem:[%s3743 + $0xc] sm:$0xf]
    %v3748 = vld [vmem:[%s3743 + $0x10] sm:$0xf]
    %v3749 = vld [vmem:[%s3743 + $0x14] sm:$0xf]
    %v3750 = vld [vmem:[%s3743 + $0x18] sm:$0xf]
    %v3751 = vld [vmem:[%s3743 + $0x1c] sm:$0xf]
    %v3752 = vld [vmem:[%s3743 + $0x20] sm:$0xf]
    %v3753 = vld [vmem:[%s3743 + $0x24] sm:$0xf]
    %v3754 = vld [vmem:[%s3743 + $0x28] sm:$0xf]
    %v3755 = vld [vmem:[%s3743 + $0x2c] sm:$0xf]
    %v3756 = vld [vmem:[%s3743 + $0x30] sm:$0xf]
    %v3757 = vld [vmem:[%s3743 + $0x34] sm:$0xf]
    %v3758 = vld [vmem:[%s3743 + $0x38] sm:$0xf]
    %v3759 = vld [vmem:[%s3743 + $0x3c] sm:$0xf]
    %v3760 = vpack.c.bf16 %v3742, %v3741
    %s3761 = scalar_lea.vmem [#allocation22], 2
    %v3762 = vld [vmem:[%s3761] sm:$0x1]
    %v3764 = vlaneseq
    %v3765 = vshrl.u32 %v3764, 7
    %v3766 = vsub.s32 0, %v3765
    %v3767 = vrot.slane %v3762, %v3766
    %v3785 = vunpack.c.l.b16 %v3744
    %v3786 = vunpack.c.l.b16 %v3745
    %v3787 = vunpack.c.l.b16 %v3746
    %v3788 = vunpack.c.l.b16 %v3747
    %v3789 = vunpack.c.l.b16 %v3748
    %v3790 = vunpack.c.l.b16 %v3749
    %v3791 = vunpack.c.l.b16 %v3750
    %v3792 = vunpack.c.l.b16 %v3751
    %v3793 = vunpack.c.l.b16 %v3752
    %v3794 = vunpack.c.l.b16 %v3753
    %v3795 = vunpack.c.l.b16 %v3754
    %v3796 = vunpack.c.l.b16 %v3755
    %v3797 = vunpack.c.l.b16 %v3756
    %v3798 = vunpack.c.l.b16 %v3757
    %v3799 = vunpack.c.l.b16 %v3758
    %v3800 = vunpack.c.l.b16 %v3759
    %v3801 = vpack.c.b16 %v3786, %v3785
    %v3802 = vpack.c.b16 %v3788, %v3787
    %v3803 = vpack.c.b16 %v3790, %v3789
    %v3804 = vpack.c.b16 %v3792, %v3791
    %v3805 = vpack.c.b16 %v3794, %v3793
    %v3806 = vpack.c.b16 %v3796, %v3795
    %v3807 = vpack.c.b16 %v3798, %v3797
    %v3808 = vpack.c.b16 %v3800, %v3799
    %3817 = vmatprep.subr.bf16.mxu0 0
    %3818 = vmatpush1.bf16.msra.mxu0 %v3801
    %3819 = vmatprep.subr.bf16.mxu0 0
    %3820 = vmatpush1.bf16.msra.mxu0 %v3802
    %3821 = vmatprep.subr.bf16.mxu0 0
    %3822 = vmatpush1.bf16.msra.mxu0 %v3803
    %3823 = vmatprep.subr.bf16.mxu0 0
    %3824 = vmatpush1.bf16.msra.mxu0 %v3804
    %3825 = vmatprep.subr.bf16.mxu0 0
    %3826 = vmatpush1.bf16.msra.mxu0 %v3805
    %3827 = vmatprep.subr.bf16.mxu0 0
    %3828 = vmatpush1.bf16.msra.mxu0 %v3806
    %3829 = vmatprep.subr.bf16.mxu0 0
    %3830 = vmatpush1.bf16.msra.mxu0 %v3807
    %3831 = vmatprep.subr.bf16.mxu0 0
    %3832 = vmatpush1.bf16.msra.mxu0 %v3808
    %3833 = vmatprep.subr.bf16.mxu0 0
    %3834 = vmatpush1.bf16.msra.mxu0 0
    %3835 = vmatprep.subr.bf16.mxu0 0
    %3836 = vmatpush1.bf16.msra.mxu0 0
    %3837 = vmatprep.subr.bf16.mxu0 0
    %3838 = vmatpush1.bf16.msra.mxu0 0
    %3839 = vmatprep.subr.bf16.mxu0 0
    %3840 = vmatpush1.bf16.msra.mxu0 0
    %3841 = vmatprep.subr.bf16.mxu0 0
    %3842 = vmatpush1.bf16.msra.mxu0 0
    %3843 = vmatprep.subr.bf16.mxu0 0
    %3844 = vmatpush1.bf16.msra.mxu0 0
    %3845 = vmatprep.subr.bf16.mxu0 0
    %3846 = vmatpush1.bf16.msra.mxu0 0
    %3847 = vmatprep.subr.bf16.mxu0 0
    %3848 = vmatpush1.bf16.msra.mxu0 0
    %3849 = vmatprep.mubr.bf16.mxu0 0
    %3850 = vmatmul.mubr.bf16.gmra.mrb[0].mxu0 %v3760
    %v3851 = vpop.f32.mrb[0].mxu0
    %v3852 = vadd.f32 %v3767, %v3851
    %v3853 = vpop.f32.mrb[0].mxu0
    %v3854 = vpop.f32.mrb[0].mxu0
    %v3855 = vadd.f32 %v3767, %v3854
    %v3856 = vpop.f32.mrb[0].mxu0
    %3857 = vdwg.mxu0
    %v3858 = vadd.f32 %v3624, %v3852
    %v3859 = vadd.f32 %v3625, %v3855
    %s3860 = scalar_lea.vmem [#allocation23], 2
    %v3861 = vld [vmem:[%s3860] sm:$0x1]
    %s3862 = scalar_lea.vmem [#allocation25], 2
    %v3863 = vld [vmem:[%s3862] sm:$0x1]
    %3864 = vadd.xlane.f32.xlu0 %v3858
    %v3865 = vpop.xlane.xlu0 %3864
    %3866 = vadd.xlane.f32.xlu0 %v3859
    %v3867 = vpop.xlane.xlu0 %3866
    %v3868 = vmul.f32 %v3865, %v1643
    %v3869 = vmul.f32 %v3867, %v1643
    %v3870 = vsub.f32 %v3858, %v3868
    %v3871 = vsub.f32 %v3859, %v3869
    %v3872 = vmul.f32 %v3870, %v3870
    %v3873 = vmul.f32 %v3871, %v3871
    %3874 = vadd.xlane.f32.xlu0 %v3872
    %v3875 = vpop.xlane.xlu0 %3874
    %3876 = vadd.xlane.f32.xlu0 %v3873
    %v3877 = vpop.xlane.xlu0 %3876
    %v3878 = vmul.f32 %v3875, %v1643
    %v3879 = vmul.f32 %v3877, %v1643
    %v3880 = vadd.f32 %v3878, 1e-05
    %v3881 = vadd.f32 %v3879, 1e-05
    %v3882 = vrsqrt.pop %v3880
    %v3883 = vrsqrt.pop %v3881
    %v3884 = vmul.f32 %v3870, %v3882
    %v3885 = vmul.f32 %v3871, %v3883
    %v3887 = vlaneseq
    %v3888 = vshrl.u32 %v3887, 7
    %v3889 = vsub.s32 0, %v3888
    %v3890 = vrot.slane %v3861, %v3889
    %v3892 = vmul.f32 %v3884, %v3890
    %v3893 = vmul.f32 %v3885, %v3890
    %v3895 = vlaneseq
    %v3896 = vshrl.u32 %v3895, 7
    %v3897 = vsub.s32 0, %v3896
    %v3898 = vrot.slane %v3863, %v3897
    %v3900 = vadd.f32 %v3892, %v3898
    %v3901 = vadd.f32 %v3893, %v3898
    %v3902 = vld [vmem:[%s11] sm:$0xff]
    %v3903 = vld [vmem:[%s11 + $0x8] sm:$0xff]
    %v3904 = vadd.f32 %v3900, %v3902
    %v3905 = vadd.f32 %v3901, %v3903
    %v3906 = vrot.slane %v3904, 4
    %v3907 = vmax.f32 %v3904, %v3906
    %v3908 = vrot.slane %v3907, 2
    %v3909 = vmax.f32 %v3907, %v3908
    %v3910 = vrot.slane %v3909, 1
    %v3911 = vmax.f32 %v3909, %v3910
    %v3912 = vrot.slane %v3905, 4
    %v3913 = vmax.f32 %v3905, %v3912
    %v3914 = vrot.slane %v3913, 2
    %v3915 = vmax.f32 %v3913, %v3914
    %v3916 = vrot.slane %v3915, 1
    %v3917 = vmax.f32 %v3915, %v3916
    %vm3920 = vcmask 1041409
    %v3921 = vsel %vm3920, %v847, %v840
    %v3925 = vsel %vm3920, %v3917, %v3911
    %v3927 = vld [vmem:[#allocation26] sm:$0xf]
    %v3928 = vld [vmem:[#allocation26 + $0x4] sm:$0xf]
    %v3929 = vld [vmem:[#allocation26 + $0x8] sm:$0xf]
    %v3930 = vld [vmem:[#allocation26 + $0xc] sm:$0xf]
    %v3931 = vld [vmem:[#allocation26 + $0x10] sm:$0xf]
    %v3932 = vld [vmem:[#allocation26 + $0x14] sm:$0xf]
    %v3933 = vld [vmem:[#allocation26 + $0x18] sm:$0xf]
    %v3934 = vld [vmem:[#allocation26 + $0x1c] sm:$0xf]
    %v3935 = vld [vmem:[#allocation26 + $0x20] sm:$0xf]
    %v3936 = vld [vmem:[#allocation26 + $0x24] sm:$0xf]
    %v3937 = vld [vmem:[#allocation26 + $0x28] sm:$0xf]
    %v3938 = vld [vmem:[#allocation26 + $0x2c] sm:$0xf]
    %v3939 = vld [vmem:[#allocation26 + $0x30] sm:$0xf]
    %v3940 = vld [vmem:[#allocation26 + $0x34] sm:$0xf]
    %v3941 = vld [vmem:[#allocation26 + $0x38] sm:$0xf]
    %v3942 = vld [vmem:[#allocation26 + $0x3c] sm:$0xf]
    %v3943 = vld [vmem:[#allocation26 + $0x40] sm:$0xf]
    %v3944 = vld [vmem:[#allocation26 + $0x44] sm:$0xf]
    %v3945 = vld [vmem:[#allocation26 + $0x48] sm:$0xf]
    %v3946 = vld [vmem:[#allocation26 + $0x4c] sm:$0xf]
    %v3947 = vld [vmem:[#allocation26 + $0x50] sm:$0xf]
    %v3948 = vld [vmem:[#allocation26 + $0x54] sm:$0xf]
    %v3949 = vld [vmem:[#allocation26 + $0x58] sm:$0xf]
    %v3950 = vld [vmem:[#allocation26 + $0x5c] sm:$0xf]
    %v3951 = vld [vmem:[#allocation26 + $0x60] sm:$0xf]
    %v3952 = vld [vmem:[#allocation26 + $0x64] sm:$0xf]
    %v3953 = vld [vmem:[#allocation26 + $0x68] sm:$0xf]
    %v3954 = vld [vmem:[#allocation26 + $0x6c] sm:$0xf]
    %v3955 = vld [vmem:[#allocation26 + $0x70] sm:$0xf]
    %v3956 = vld [vmem:[#allocation26 + $0x74] sm:$0xf]
    %v3957 = vld [vmem:[#allocation26 + $0x78] sm:$0xf]
    %v3958 = vld [vmem:[#allocation26 + $0x7c] sm:$0xf]
    %v3959 = vpack.c.bf16 %v3921, %v3921
    %v3960 = vpack.c.bf16 %v3925, %v3925
    %v3961 = vld [vmem:[#allocation28] sm:$0x1]
    %v3963 = vlaneseq
    %v3964 = vshrl.u32 %v3963, 7
    %v3965 = vsub.s32 0, %v3964
    %v3966 = vrot.slane %v3961, %v3965
    %v4000 = vunpack.c.l.b16 %v3927
    %v4001 = vunpack.c.l.b16 %v3928
    %v4002 = vunpack.c.l.b16 %v3929
    %v4003 = vunpack.c.l.b16 %v3930
    %v4004 = vunpack.c.l.b16 %v3931
    %v4005 = vunpack.c.l.b16 %v3932
    %v4006 = vunpack.c.l.b16 %v3933
    %v4007 = vunpack.c.l.b16 %v3934
    %v4008 = vunpack.c.l.b16 %v3935
    %v4009 = vunpack.c.l.b16 %v3936
    %v4010 = vunpack.c.l.b16 %v3937
    %v4011 = vunpack.c.l.b16 %v3938
    %v4012 = vunpack.c.l.b16 %v3939
    %v4013 = vunpack.c.l.b16 %v3940
    %v4014 = vunpack.c.l.b16 %v3941
    %v4015 = vunpack.c.l.b16 %v3942
    %v4016 = vunpack.c.l.b16 %v3943
    %v4017 = vunpack.c.l.b16 %v3944
    %v4018 = vunpack.c.l.b16 %v3945
    %v4019 = vunpack.c.l.b16 %v3946
    %v4020 = vunpack.c.l.b16 %v3947
    %v4021 = vunpack.c.l.b16 %v3948
    %v4022 = vunpack.c.l.b16 %v3949
    %v4023 = vunpack.c.l.b16 %v3950
    %v4024 = vunpack.c.l.b16 %v3951
    %v4025 = vunpack.c.l.b16 %v3952
    %v4026 = vunpack.c.l.b16 %v3953
    %v4027 = vunpack.c.l.b16 %v3954
    %v4028 = vunpack.c.l.b16 %v3955
    %v4029 = vunpack.c.l.b16 %v3956
    %v4030 = vunpack.c.l.b16 %v3957
    %v4031 = vunpack.c.l.b16 %v3958
    %v4032 = vpack.c.b16 %v4001, %v4000
    %v4033 = vpack.c.b16 %v4003, %v4002
    %v4034 = vpack.c.b16 %v4005, %v4004
    %v4035 = vpack.c.b16 %v4007, %v4006
    %v4036 = vpack.c.b16 %v4009, %v4008
    %v4037 = vpack.c.b16 %v4011, %v4010
    %v4038 = vpack.c.b16 %v4013, %v4012
    %v4039 = vpack.c.b16 %v4015, %v4014
    %v4040 = vpack.c.b16 %v4017, %v4016
    %v4041 = vpack.c.b16 %v4019, %v4018
    %v4042 = vpack.c.b16 %v4021, %v4020
    %v4043 = vpack.c.b16 %v4023, %v4022
    %v4044 = vpack.c.b16 %v4025, %v4024
    %v4045 = vpack.c.b16 %v4027, %v4026
    %v4046 = vpack.c.b16 %v4029, %v4028
    %v4047 = vpack.c.b16 %v4031, %v4030
    %4064 = vmatprep.subr.bf16.mxu0 0
    %4065 = vmatpush1.bf16.msra.mxu0 %v4032
    %4066 = vmatprep.subr.bf16.mxu0 0
    %4067 = vmatpush1.bf16.msra.mxu0 %v4033
    %4068 = vmatprep.subr.bf16.mxu0 0
    %4069 = vmatpush1.bf16.msra.mxu0 %v4034
    %4070 = vmatprep.subr.bf16.mxu0 0
    %4071 = vmatpush1.bf16.msra.mxu0 %v4035
    %4072 = vmatprep.subr.bf16.mxu0 0
    %4073 = vmatpush1.bf16.msra.mxu0 %v4036
    %4074 = vmatprep.subr.bf16.mxu0 0
    %4075 = vmatpush1.bf16.msra.mxu0 %v4037
    %4076 = vmatprep.subr.bf16.mxu0 0
    %4077 = vmatpush1.bf16.msra.mxu0 %v4038
    %4078 = vmatprep.subr.bf16.mxu0 0
    %4079 = vmatpush1.bf16.msra.mxu0 %v4039
    %4080 = vmatprep.subr.bf16.mxu0 0
    %4081 = vmatpush1.bf16.msra.mxu0 %v4040
    %4082 = vmatprep.subr.bf16.mxu0 0
    %4083 = vmatpush1.bf16.msra.mxu0 %v4041
    %4084 = vmatprep.subr.bf16.mxu0 0
    %4085 = vmatpush1.bf16.msra.mxu0 %v4042
    %4086 = vmatprep.subr.bf16.mxu0 0
    %4087 = vmatpush1.bf16.msra.mxu0 %v4043
    %4088 = vmatprep.subr.bf16.mxu0 0
    %4089 = vmatpush1.bf16.msra.mxu0 %v4044
    %4090 = vmatprep.subr.bf16.mxu0 0
    %4091 = vmatpush1.bf16.msra.mxu0 %v4045
    %4092 = vmatprep.subr.bf16.mxu0 0
    %4093 = vmatpush1.bf16.msra.mxu0 %v4046
    %4094 = vmatprep.subr.bf16.mxu0 0
    %4095 = vmatpush1.bf16.msra.mxu0 %v4047
    %4096 = vmatprep.mubr.bf16.mxu0 %v3960
    %4097 = vmatmul.mubr.bf16.gmra.mrb[0].mxu0 %v3959
    %v4098 = vpop.f32.mrb[0].mxu0
    %v4099 = vadd.f32 %v3966, %v4098
    %v4100 = vpop.f32.mrb[0].mxu0
    %v4101 = vpop.f32.mrb[0].mxu0
    %v4102 = vpop.f32.mrb[0].mxu0
    %4103 = vdwg.mxu0
    %4104 = vst [vmem:[#allocation29] sm:$0x3] %v4099
    // Predicated region
    $region174: #{net_forward.1} parent=1 // pred_check
      _
    $region175: #{net_forward.1} parent=1 // pred_check_branch
      %4106 = sbr.rel (0) target = $region177
    $region176: #{net_forward.1} parent=1 // pred_region
      %s4108 = ssub.s32 32, 32
      %4109 = vsyncadd [#allocation4], %s4108
      %s4111 = sshll.u32 [#allocation29], 4
      %s4112 = int_to_ptr.vmem [resolvable:$true] %s4111
      %4114 = dma.vmem_to_hbm [thread:$0]  %s4112, 32, %s26, [#allocation4]
    $region177: #{net_forward.1} parent=1 // pred_fallthru
      _
    // Predicated region
    $region178: #{net_forward.1} parent=1 // pred_check
      _
    $region179: #{net_forward.1} parent=1 // pred_check_branch
      %4116 = sbr.rel (0) target = $region181
    $region180: #{net_forward.1} parent=1 // pred_region
      %4117 = dma.done [#allocation4], 32
    $region181: #{net_forward.1} parent=1 // pred_fallthru
      _
    %4118 = vsyncpa [#allocation3], 1
    %4119 = vsyncpa [#allocation6], 1
    %4120 = vsyncpa [#allocation9], 1
    %4121 = vsyncpa [#allocation12], 1
    %4122 = vsyncpa [#allocation15], 1
    %4123 = vsyncpa [#allocation18], 1
    %4124 = vsyncpa [#allocation21], 1
    %4125 = vsyncpa [#allocation24], 1
    %4126 = vsyncpa [#allocation27], 1
    %4127 = vsyncpa [#allocation4], 1

</llo_original>
